<compile_context>
chip_gen: v7x
topology: tpu7x:2x2x1
jax: 0.10.0
libtpu: 0.0.40
codegen_flags: <defaults>
</compile_context>

<pallas_src>
import math
import functools

import jax
import jax.numpy as jnp
from jax import lax
from jax.experimental import pallas as pl
from jax.experimental.pallas import tpu as pltpu

D_MODEL = 512
CONTEXT_LENGTH = 128
DROPOUT = 0.1  # unused at eval time


def _attention_kernel(x_ref, w_ref, o_ref, *, scale, head_size):
    # x_ref: (Bt, T, C) bf16 tile (Bt batch rows per grid step)
    # w_ref: (C, 3H)    bf16 fused [Wq | Wk | Wv], resident across grid steps
    # o_ref: (Bt, T, H) f32 output tile
    Bt, T, C = x_ref.shape
    H = head_size

    # ---- fused QKV projection: one MXU matmul, M = Bt*T, N = 3H ------------
    x2 = x_ref[...].reshape(Bt * T, C)                       # leading-dim merge (free)
    qkv = jnp.dot(x2, w_ref[...],
                  preferred_element_type=jnp.float32)        # (Bt*T, 3H) f32 accum

    # scale folded into q (T*H elements instead of T*T)
    q = (qkv[:, 0 * H:1 * H] * scale).astype(jnp.bfloat16).reshape(Bt, T, H)
    k = qkv[:, 1 * H:2 * H].astype(jnp.bfloat16).reshape(Bt, T, H)
    v = qkv[:, 2 * H:3 * H].astype(jnp.bfloat16).reshape(Bt, T, H)

    # ---- scores: contract on head dim directly (no k.T / XLU transpose) ----
    s = lax.dot_general(q, k,
                        dimension_numbers=(((2,), (2,)), ((0,), (0,))),
                        preferred_element_type=jnp.float32)  # (Bt, T, T)

    # causal mask: position j > i -> -inf
    row = lax.broadcasted_iota(jnp.int32, (T, T), 0)
    col = lax.broadcasted_iota(jnp.int32, (T, T), 1)
    s = jnp.where((col <= row)[None, :, :], s, -jnp.inf)

    # numerically-stable softmax; element-wise math kept in f32
    m = jnp.max(s, axis=-1, keepdims=True)
    e = jnp.exp(s - m)
    denom = jnp.sum(e, axis=-1, keepdims=True)

    # dropout on attention weights: eval mode -> identity (see TODO above)

    # ---- P @ V on the MXU (bf16 inputs, f32 accum); divide folded after ----
    ev = lax.dot_general(e.astype(jnp.bfloat16), v,
                         dimension_numbers=(((2,), (1,)), ((0,), (0,))),
                         preferred_element_type=jnp.float32)  # (Bt, T, H)
    out = ev * pl.reciprocal(denom, approx=True)               # EUP reciprocal
    o_ref[...] = out.astype(o_ref.dtype)


def _pick_block_batch(B, max_bt=8):
    """Largest divisor of B that is <= max_bt (keeps the grid exact)."""
    bt = min(B, max_bt)
    while B % bt:
        bt -= 1
    return bt


def attention_forward(x, wq, wk, wv, *, block_b=8):
    """x: (B, T, C) float32; wq/wk/wv: (C, H) float32. Returns (B, T, H) f32."""
    B, T, C = x.shape
    assert T <= CONTEXT_LENGTH
    assert C == D_MODEL
    H = wq.shape[1]
    scale = 1.0 / math.sqrt(H)

    # Fuse the three projections into one (C, 3H) weight: one resident VMEM
    # buffer, one DMA, one MXU weight-push per tile (N=3H vs three N=H passes).
    w_qkv = jnp.concatenate([wq, wk, wv], axis=1).astype(jnp.bfloat16)
    # bf16 activations at the boundary: bf16-native MXU + half the x HBM bytes.
    x_b = x.astype(jnp.bfloat16)

    bt = _pick_block_batch(B, block_b)   # batch rows per grid step
    grid = (B // bt,)                    # >= 2 steps whenever B > block_b (v7x megacore)

    kernel = functools.partial(_attention_kernel, scale=scale, head_size=H)

    return pl.pallas_call(
        kernel,
        out_shape=jax.ShapeDtypeStruct((B, T, H), x.dtype),
        grid_spec=pltpu.PrefetchScalarGridSpec(
            num_scalar_prefetch=0,
            grid=grid,
            in_specs=[
                pl.BlockSpec((bt, T, C), lambda b: (b, 0, 0)),   # x: Bt batch rows
                pl.BlockSpec((C, 3 * H), lambda b: (0, 0)),      # fused W (resident)
            ],
            out_specs=pl.BlockSpec((bt, T, H), lambda b: (b, 0, 0)),
        ),
        compiler_params=pltpu.CompilerParams(
            dimension_semantics=("parallel",),
        ),
    )(x_b, w_qkv)


def reference_forward(x, wq, wk, wv):
    """Pure-JAX f32 reference mirroring the PyTorch forward (eval mode)."""
    H = wq.shape[1]
    q = x @ wq
    k = x @ wk
    v = x @ wv
    s = (q @ jnp.swapaxes(k, -2, -1)) * (1.0 / math.sqrt(H))
    T = x.shape[1]
    tril = jnp.tril(jnp.ones((T, T), dtype=bool))
    s = jnp.where(tril, s, -jnp.inf)
    p = jax.nn.softmax(s, axis=-1)
    return p @ v


if __name__ == "__main__":
    B = 4
    T = 128          # == context_length, keeps tiles (8,128)-aligned
    C = D_MODEL      # 512 (forward asserts C == d_model)
    HEAD_SIZE = 64

    key = jax.random.PRNGKey(0)
    kx, kq, kk, kv = jax.random.split(key, 4)

    x = jax.random.normal(kx, (B, T, C), dtype=jnp.float32)

    # PyTorch nn.Linear(d_model, head_size, bias=False) init:
    # uniform(-1/sqrt(in), 1/sqrt(in)), weight shape (H, C); we store (C, H).
    bound = 1.0 / math.sqrt(C)
    wq = jax.random.uniform(kq, (C, HEAD_SIZE), jnp.float32, -bound, bound)
    wk = jax.random.uniform(kk, (C, HEAD_SIZE), jnp.float32, -bound, bound)
    wv = jax.random.uniform(kv, (C, HEAD_SIZE), jnp.float32, -bound, bound)

    out = attention_forward(x, wq, wk, wv)
    out = jax.block_until_ready(out)

    ref = reference_forward(x, wq, wk, wv)
    assert out.shape == (B, T, HEAD_SIZE), out.shape
    # bf16 matmul inputs + approx (EUP) reciprocal -> relaxed tolerance vs the
    # pure-f32 reference (bf16 attention typically lands around ~1e-2).
    assert jnp.allclose(out, ref, atol=4e-2, rtol=4e-2), (
        float(jnp.max(jnp.abs(out - ref)))
    )

    print("KERNEL_OK")
</pallas_src>

<mosaic_0001>
module attributes {stable_mosaic.version = 11 : i64} {
  func.func @_attention_kernel(%arg0: i32, %arg1: memref<4x128x512xbf16, #tpu.memory_space<vmem>>, %arg2: memref<512x192xbf16, #tpu.memory_space<vmem>>, %arg3: memref<4x128x64xf32, #tpu.memory_space<vmem>>) attributes {dimension_semantics = [#tpu.dimension_semantics<parallel>], iteration_bounds = array<i64: 1>, scalar_prefetch = 0 : i64, scratch_operands = 0 : i64, tpu.core_type = #tpu.core_type<tc>, window_params = [{transform_indices = @transform_0, window_bounds = array<i64: 4, 128, 512>}, {pipeline_mode = #tpu.pipeline_mode<synchronous>, transform_indices = @transform_1, window_bounds = array<i64: 512, 192>}, {transform_indices = @transform_2, window_bounds = array<i64: 4, 128, 64>}]} {
    %c0 = arith.constant 0 : index
    %c0_0 = arith.constant 0 : index
    %c0_1 = arith.constant 0 : index
    %0 = vector.load %arg1[%c0, %c0_0, %c0_1] : memref<4x128x512xbf16, #tpu.memory_space<vmem>>, vector<4x128x512xbf16>
    %1 = vector.shape_cast %0 : vector<4x128x512xbf16> to vector<512x512xbf16>
    %c0_2 = arith.constant 0 : index
    %c0_3 = arith.constant 0 : index
    %2 = vector.load %arg2[%c0_2, %c0_3] : memref<512x192xbf16, #tpu.memory_space<vmem>>, vector<512x192xbf16>
    %cst = arith.constant dense<0.000000e+00> : vector<512x192xf32>
    %3 = tpu.matmul %1, %2, %cst {dimension_numbers = #tpu.dot_dimension_numbers<[1], [0], [0], [1], [0, 0, 1, 1], [], []>} : vector<512x512xbf16>, vector<512x192xbf16>, vector<512x192xf32> -> vector<512x192xf32>
    %4 = vector.extract_strided_slice %3 {offsets = [0, 0], sizes = [512, 64], strides = [1, 1]} : vector<512x192xf32> to vector<512x64xf32>
    %cst_4 = arith.constant 1.250000e-01 : f32
    %5 = vector.broadcast %cst_4 : f32 to vector<512x64xf32>
    %6 = arith.mulf %4, %5 : vector<512x64xf32>
    %7 = arith.truncf %6 : vector<512x64xf32> to vector<512x64xbf16>
    %8 = vector.shape_cast %7 : vector<512x64xbf16> to vector<4x128x64xbf16>
    %9 = vector.extract_strided_slice %3 {offsets = [0, 64], sizes = [512, 64], strides = [1, 1]} : vector<512x192xf32> to vector<512x64xf32>
    %10 = arith.truncf %9 : vector<512x64xf32> to vector<512x64xbf16>
    %11 = vector.shape_cast %10 : vector<512x64xbf16> to vector<4x128x64xbf16>
    %12 = vector.extract_strided_slice %3 {offsets = [0, 128], sizes = [512, 64], strides = [1, 1]} : vector<512x192xf32> to vector<512x64xf32>
    %13 = arith.truncf %12 : vector<512x64xf32> to vector<512x64xbf16>
    %14 = vector.shape_cast %13 : vector<512x64xbf16> to vector<4x128x64xbf16>
    %cst_5 = arith.constant dense<0.000000e+00> : vector<4x128x128xf32>
    %15 = tpu.matmul %8, %11, %cst_5 {dimension_numbers = #tpu.dot_dimension_numbers<[2], [2], [1], [1], [0, 0, 0, 1, 1, 1], [0], [0]>} : vector<4x128x64xbf16>, vector<4x128x64xbf16>, vector<4x128x128xf32> -> vector<4x128x128xf32>
    %16 = tpu.iota {dimensions = array<i32: 0>} : vector<128x128xi32>
    %17 = tpu.iota {dimensions = array<i32: 1>} : vector<128x128xi32>
    %18 = arith.cmpi sle, %17, %16 : vector<128x128xi32>
    %19 = vector.shape_cast %18 : vector<128x128xi1> to vector<1x128x128xi1>
    %cst_6 = arith.constant 0xFF800000 : f32
    %20 = vector.shape_cast %19 : vector<1x128x128xi1> to vector<1x128x128xi1>
    %21 = vector.broadcast %20 : vector<1x128x128xi1> to vector<4x128x128xi1>
    %22 = vector.broadcast %cst_6 : f32 to vector<4x128x128xf32>
    %23 = arith.select %21, %15, %22 : vector<4x128x128xi1>, vector<4x128x128xf32>
    %cst_7 = arith.constant dense<0xFF800000> : vector<4x128xf32>
    %24 = vector.multi_reduction <maximumf>, %23, %cst_7 [2] : vector<4x128x128xf32> to vector<4x128xf32>
    %25 = vector.shape_cast %24 : vector<4x128xf32> to vector<4x128x1xf32>
    %26 = vector.broadcast %25 : vector<4x128x1xf32> to vector<4x128x128xf32>
    %27 = arith.subf %23, %26 : vector<4x128x128xf32>
    %28 = math.exp %27 : vector<4x128x128xf32>
    %cst_8 = arith.constant dense<0.000000e+00> : vector<4x128xf32>
    %29 = vector.multi_reduction <add>, %28, %cst_8 [2] : vector<4x128x128xf32> to vector<4x128xf32>
    %30 = vector.shape_cast %29 : vector<4x128xf32> to vector<4x128x1xf32>
    %31 = arith.truncf %28 : vector<4x128x128xf32> to vector<4x128x128xbf16>
    %cst_9 = arith.constant dense<0.000000e+00> : vector<4x128x64xf32>
    %32 = tpu.matmul %31, %14, %cst_9 {dimension_numbers = #tpu.dot_dimension_numbers<[2], [1], [1], [2], [0, 0, 0, 1, 1, 2], [0], [0]>} : vector<4x128x128xbf16>, vector<4x128x64xbf16>, vector<4x128x64xf32> -> vector<4x128x64xf32>
    %33 = tpu.reciprocal %30 {approx = true} : vector<4x128x1xf32> -> vector<4x128x1xf32>
    %34 = vector.broadcast %33 : vector<4x128x1xf32> to vector<4x128x64xf32>
    %35 = arith.mulf %32, %34 : vector<4x128x64xf32>
    %c0_10 = arith.constant 0 : index
    %c0_11 = arith.constant 0 : index
    %c0_12 = arith.constant 0 : index
    %36 = vector.load %arg3[%c0_10, %c0_11, %c0_12] : memref<4x128x64xf32, #tpu.memory_space<vmem>>, vector<4x128x64xf32>
    tpu.vector_store %arg3[%c0_10, %c0_11, %c0_12], %35 {strides = array<i32>} : memref<4x128x64xf32, #tpu.memory_space<vmem>>, vector<4x128x64xf32>,
    return
  }
  func.func @transform_0(%arg0: i32) -> (i32, i32, i32) {
    %c0_i32 = arith.constant 0 : i32
    %c0_i32_0 = arith.constant 0 : i32
    %c0_i32_1 = arith.constant 0 : i32
    return %arg0, %c0_i32, %c0_i32_0 : i32, i32, i32
  }
  func.func @transform_1(%arg0: i32) -> (i32, i32) {
    %c0_i32 = arith.constant 0 : i32
    %c0_i32_0 = arith.constant 0 : i32
    %c0_i32_1 = arith.constant 0 : i32
    return %c0_i32, %c0_i32_0 : i32, i32
  }
  func.func @transform_2(%arg0: i32) -> (i32, i32, i32) {
    %c0_i32 = arith.constant 0 : i32
    %c0_i32_0 = arith.constant 0 : i32
    %c0_i32_1 = arith.constant 0 : i32
    return %arg0, %c0_i32, %c0_i32_0 : i32, i32, i32
  }
}

</mosaic_0001>

<llo_original>
// kernel: tpu_custom_call.1
$region0: #{tpu_custom_call.1}
  #allocation0 [shape = 'u32[]', space=smem, size = 0x4, offset = 0x4, fixed_abs, tag = 'smem constant byte address 0x4 - core index']
  #allocation1 [shape = 'u32[144,128]{1,0:T(1,128)}', space=vmem, size = 0x12000, scoped, tag = 'internal scratch']
  %s0 = inlined_call_operand.hbm [shape: bf16[4,128,512], index: 0, kind: input, shape index: {}]
  %s1 = inlined_call_operand.vmem [shape: bf16[512,192], index: 1, kind: input, shape index: {}]
  %s2 = inlined_call_operand.vmem [shape: f32[4,128,64], index: 2, kind: output, shape index: {}]
  %s3 = sld [smem:[#allocation0]]
  $region22: #{tpu_custom_call.1} parent=0
    _
  %s5 = ssub.s32 1, %s3
  %s6 = scalar_select 0, %s5, %s3
  $region1: #{tpu_custom_call.1} parent=0
    #allocation2 [shape = 'u8[524288]{0}', space=vmem, size = 0x80000, scoped, tag = 'input window, operand 0, single buffered']
    #allocation3 [shape = 's32[1]{0}', space=sflag, size = 0x4, scoped, tag = 'scoped memory for tpu_custom_call.1']
    %7 = vsyncpa [#allocation3], 0
    // Predicated region
    $region2: #{tpu_custom_call.1} parent=1 // pred_check
      _
    $region3: #{tpu_custom_call.1} parent=1 // pred_check_branch
      %9 = sbr.rel (0) target = $region5
    $region4: #{tpu_custom_call.1} parent=1 // pred_region
      %s11 = ssub.s32 16384, 16384
      %12 = vsyncadd [#allocation3], %s11
      %s13 = sshll.u32 [#allocation2], 4
      %s14 = int_to_ptr.vmem [resolvable:$true] %s13
      %19 = dma.hbm_to_vmem [thread:$0]  %s0, 16384, %s14, [#allocation3], 256, 256, 16
    $region5: #{tpu_custom_call.1} parent=1 // pred_fallthru
      _
    // Predicated region
    $region6: #{tpu_custom_call.1} parent=1 // pred_check
      _
    $region7: #{tpu_custom_call.1} parent=1 // pred_check_branch
      %21 = sbr.rel (0) target = $region9
    $region8: #{tpu_custom_call.1} parent=1 // pred_region
      _
    $region9: #{tpu_custom_call.1} parent=1 // pred_fallthru
      _
    // Predicated region
    $region10: #{tpu_custom_call.1} parent=1 // pred_check
      _
    $region11: #{tpu_custom_call.1} parent=1 // pred_check_branch
      %23 = sbr.rel (0) target = $region13
    $region12: #{tpu_custom_call.1} parent=1 // pred_region
      %24 = dma.done [#allocation3], 16384
    $region13: #{tpu_custom_call.1} parent=1 // pred_fallthru
      _
    %v26 = vld [vmem:[#allocation2] sm:$0xff]
    %v27 = vld [vmem:[#allocation2 + $0x8] sm:$0xff]
    %v28 = vld [vmem:[#allocation2 + $0x10] sm:$0xff]
    %v29 = vld [vmem:[#allocation2 + $0x18] sm:$0xff]
    %v30 = vld [vmem:[#allocation2 + $0x20] sm:$0xff]
    %v31 = vld [vmem:[#allocation2 + $0x28] sm:$0xff]
    %v32 = vld [vmem:[#allocation2 + $0x30] sm:$0xff]
    %v33 = vld [vmem:[#allocation2 + $0x38] sm:$0xff]
    %v34 = vld [vmem:[#allocation2 + $0x40] sm:$0xff]
    %v35 = vld [vmem:[#allocation2 + $0x48] sm:$0xff]
    %v36 = vld [vmem:[#allocation2 + $0x50] sm:$0xff]
    %v37 = vld [vmem:[#allocation2 + $0x58] sm:$0xff]
    %v38 = vld [vmem:[#allocation2 + $0x60] sm:$0xff]
    %v39 = vld [vmem:[#allocation2 + $0x68] sm:$0xff]
    %v40 = vld [vmem:[#allocation2 + $0x70] sm:$0xff]
    %v41 = vld [vmem:[#allocation2 + $0x78] sm:$0xff]
    %v42 = vld [vmem:[#allocation2 + $0x80] sm:$0xff]
    %v43 = vld [vmem:[#allocation2 + $0x88] sm:$0xff]
    %v44 = vld [vmem:[#allocation2 + $0x90] sm:$0xff]
    %v45 = vld [vmem:[#allocation2 + $0x98] sm:$0xff]
    %v46 = vld [vmem:[#allocation2 + $0xa0] sm:$0xff]
    %v47 = vld [vmem:[#allocation2 + $0xa8] sm:$0xff]
    %v48 = vld [vmem:[#allocation2 + $0xb0] sm:$0xff]
    %v49 = vld [vmem:[#allocation2 + $0xb8] sm:$0xff]
    %v50 = vld [vmem:[#allocation2 + $0xc0] sm:$0xff]
    %v51 = vld [vmem:[#allocation2 + $0xc8] sm:$0xff]
    %v52 = vld [vmem:[#allocation2 + $0xd0] sm:$0xff]
    %v53 = vld [vmem:[#allocation2 + $0xd8] sm:$0xff]
    %v54 = vld [vmem:[#allocation2 + $0xe0] sm:$0xff]
    %v55 = vld [vmem:[#allocation2 + $0xe8] sm:$0xff]
    %v56 = vld [vmem:[#allocation2 + $0xf0] sm:$0xff]
    %v57 = vld [vmem:[#allocation2 + $0xf8] sm:$0xff]
    %v58 = vld [vmem:[#allocation2 + $0x100] sm:$0xff]
    %v59 = vld [vmem:[#allocation2 + $0x108] sm:$0xff]
    %v60 = vld [vmem:[#allocation2 + $0x110] sm:$0xff]
    %v61 = vld [vmem:[#allocation2 + $0x118] sm:$0xff]
    %v62 = vld [vmem:[#allocation2 + $0x120] sm:$0xff]
    %v63 = vld [vmem:[#allocation2 + $0x128] sm:$0xff]
    %v64 = vld [vmem:[#allocation2 + $0x130] sm:$0xff]
    %v65 = vld [vmem:[#allocation2 + $0x138] sm:$0xff]
    %v66 = vld [vmem:[#allocation2 + $0x140] sm:$0xff]
    %v67 = vld [vmem:[#allocation2 + $0x148] sm:$0xff]
    %v68 = vld [vmem:[#allocation2 + $0x150] sm:$0xff]
    %v69 = vld [vmem:[#allocation2 + $0x158] sm:$0xff]
    %v70 = vld [vmem:[#allocation2 + $0x160] sm:$0xff]
    %v71 = vld [vmem:[#allocation2 + $0x168] sm:$0xff]
    %v72 = vld [vmem:[#allocation2 + $0x170] sm:$0xff]
    %v73 = vld [vmem:[#allocation2 + $0x178] sm:$0xff]
    %v74 = vld [vmem:[#allocation2 + $0x180] sm:$0xff]
    %v75 = vld [vmem:[#allocation2 + $0x188] sm:$0xff]
    %v76 = vld [vmem:[#allocation2 + $0x190] sm:$0xff]
    %v77 = vld [vmem:[#allocation2 + $0x198] sm:$0xff]
    %v78 = vld [vmem:[#allocation2 + $0x1a0] sm:$0xff]
    %v79 = vld [vmem:[#allocation2 + $0x1a8] sm:$0xff]
    %v80 = vld [vmem:[#allocation2 + $0x1b0] sm:$0xff]
    %v81 = vld [vmem:[#allocation2 + $0x1b8] sm:$0xff]
    %v82 = vld [vmem:[#allocation2 + $0x1c0] sm:$0xff]
    %v83 = vld [vmem:[#allocation2 + $0x1c8] sm:$0xff]
    %v84 = vld [vmem:[#allocation2 + $0x1d0] sm:$0xff]
    %v85 = vld [vmem:[#allocation2 + $0x1d8] sm:$0xff]
    %v86 = vld [vmem:[#allocation2 + $0x1e0] sm:$0xff]
    %v87 = vld [vmem:[#allocation2 + $0x1e8] sm:$0xff]
    %v88 = vld [vmem:[#allocation2 + $0x1f0] sm:$0xff]
    %v89 = vld [vmem:[#allocation2 + $0x1f8] sm:$0xff]
    %v90 = vld [vmem:[#allocation2 + $0x200] sm:$0xff]
    %v91 = vld [vmem:[#allocation2 + $0x208] sm:$0xff]
    %v92 = vld [vmem:[#allocation2 + $0x210] sm:$0xff]
    %v93 = vld [vmem:[#allocation2 + $0x218] sm:$0xff]
    %v94 = vld [vmem:[#allocation2 + $0x220] sm:$0xff]
    %v95 = vld [vmem:[#allocation2 + $0x228] sm:$0xff]
    %v96 = vld [vmem:[#allocation2 + $0x230] sm:$0xff]
    %v97 = vld [vmem:[#allocation2 + $0x238] sm:$0xff]
    %v98 = vld [vmem:[#allocation2 + $0x240] sm:$0xff]
    %v99 = vld [vmem:[#allocation2 + $0x248] sm:$0xff]
    %v100 = vld [vmem:[#allocation2 + $0x250] sm:$0xff]
    %v101 = vld [vmem:[#allocation2 + $0x258] sm:$0xff]
    %v102 = vld [vmem:[#allocation2 + $0x260] sm:$0xff]
    %v103 = vld [vmem:[#allocation2 + $0x268] sm:$0xff]
    %v104 = vld [vmem:[#allocation2 + $0x270] sm:$0xff]
    %v105 = vld [vmem:[#allocation2 + $0x278] sm:$0xff]
    %v106 = vld [vmem:[#allocation2 + $0x280] sm:$0xff]
    %v107 = vld [vmem:[#allocation2 + $0x288] sm:$0xff]
    %v108 = vld [vmem:[#allocation2 + $0x290] sm:$0xff]
    %v109 = vld [vmem:[#allocation2 + $0x298] sm:$0xff]
    %v110 = vld [vmem:[#allocation2 + $0x2a0] sm:$0xff]
    %v111 = vld [vmem:[#allocation2 + $0x2a8] sm:$0xff]
    %v112 = vld [vmem:[#allocation2 + $0x2b0] sm:$0xff]
    %v113 = vld [vmem:[#allocation2 + $0x2b8] sm:$0xff]
    %v114 = vld [vmem:[#allocation2 + $0x2c0] sm:$0xff]
    %v115 = vld [vmem:[#allocation2 + $0x2c8] sm:$0xff]
    %v116 = vld [vmem:[#allocation2 + $0x2d0] sm:$0xff]
    %v117 = vld [vmem:[#allocation2 + $0x2d8] sm:$0xff]
    %v118 = vld [vmem:[#allocation2 + $0x2e0] sm:$0xff]
    %v119 = vld [vmem:[#allocation2 + $0x2e8] sm:$0xff]
    %v120 = vld [vmem:[#allocation2 + $0x2f0] sm:$0xff]
    %v121 = vld [vmem:[#allocation2 + $0x2f8] sm:$0xff]
    %v122 = vld [vmem:[#allocation2 + $0x300] sm:$0xff]
    %v123 = vld [vmem:[#allocation2 + $0x308] sm:$0xff]
    %v124 = vld [vmem:[#allocation2 + $0x310] sm:$0xff]
    %v125 = vld [vmem:[#allocation2 + $0x318] sm:$0xff]
    %v126 = vld [vmem:[#allocation2 + $0x320] sm:$0xff]
    %v127 = vld [vmem:[#allocation2 + $0x328] sm:$0xff]
    %v128 = vld [vmem:[#allocation2 + $0x330] sm:$0xff]
    %v129 = vld [vmem:[#allocation2 + $0x338] sm:$0xff]
    %v130 = vld [vmem:[#allocation2 + $0x340] sm:$0xff]
    %v131 = vld [vmem:[#allocation2 + $0x348] sm:$0xff]
    %v132 = vld [vmem:[#allocation2 + $0x350] sm:$0xff]
    %v133 = vld [vmem:[#allocation2 + $0x358] sm:$0xff]
    %v134 = vld [vmem:[#allocation2 + $0x360] sm:$0xff]
    %v135 = vld [vmem:[#allocation2 + $0x368] sm:$0xff]
    %v136 = vld [vmem:[#allocation2 + $0x370] sm:$0xff]
    %v137 = vld [vmem:[#allocation2 + $0x378] sm:$0xff]
    %v138 = vld [vmem:[#allocation2 + $0x380] sm:$0xff]
    %v139 = vld [vmem:[#allocation2 + $0x388] sm:$0xff]
    %v140 = vld [vmem:[#allocation2 + $0x390] sm:$0xff]
    %v141 = vld [vmem:[#allocation2 + $0x398] sm:$0xff]
    %v142 = vld [vmem:[#allocation2 + $0x3a0] sm:$0xff]
    %v143 = vld [vmem:[#allocation2 + $0x3a8] sm:$0xff]
    %v144 = vld [vmem:[#allocation2 + $0x3b0] sm:$0xff]
    %v145 = vld [vmem:[#allocation2 + $0x3b8] sm:$0xff]
    %v146 = vld [vmem:[#allocation2 + $0x3c0] sm:$0xff]
    %v147 = vld [vmem:[#allocation2 + $0x3c8] sm:$0xff]
    %v148 = vld [vmem:[#allocation2 + $0x3d0] sm:$0xff]
    %v149 = vld [vmem:[#allocation2 + $0x3d8] sm:$0xff]
    %v150 = vld [vmem:[#allocation2 + $0x3e0] sm:$0xff]
    %v151 = vld [vmem:[#allocation2 + $0x3e8] sm:$0xff]
    %v152 = vld [vmem:[#allocation2 + $0x3f0] sm:$0xff]
    %v153 = vld [vmem:[#allocation2 + $0x3f8] sm:$0xff]
    %v154 = vld [vmem:[%s1] sm:$0xff]
    %v155 = vld [vmem:[%s1 + $0x8] sm:$0xff]
    %v156 = vld [vmem:[%s1 + $0x10] sm:$0xff]
    %v157 = vld [vmem:[%s1 + $0x18] sm:$0xff]
    %v158 = vld [vmem:[%s1 + $0x20] sm:$0xff]
    %v159 = vld [vmem:[%s1 + $0x28] sm:$0xff]
    %v160 = vld [vmem:[%s1 + $0x30] sm:$0xff]
    %v161 = vld [vmem:[%s1 + $0x38] sm:$0xff]
    %v162 = vld [vmem:[%s1 + $0x40] sm:$0xff]
    %v163 = vld [vmem:[%s1 + $0x48] sm:$0xff]
    %v164 = vld [vmem:[%s1 + $0x50] sm:$0xff]
    %v165 = vld [vmem:[%s1 + $0x58] sm:$0xff]
    %v166 = vld [vmem:[%s1 + $0x60] sm:$0xff]
    %v167 = vld [vmem:[%s1 + $0x68] sm:$0xff]
    %v168 = vld [vmem:[%s1 + $0x70] sm:$0xff]
    %v169 = vld [vmem:[%s1 + $0x78] sm:$0xff]
    %v170 = vld [vmem:[%s1 + $0x80] sm:$0xff]
    %v171 = vld [vmem:[%s1 + $0x88] sm:$0xff]
    %v172 = vld [vmem:[%s1 + $0x90] sm:$0xff]
    %v173 = vld [vmem:[%s1 + $0x98] sm:$0xff]
    %v174 = vld [vmem:[%s1 + $0xa0] sm:$0xff]
    %v175 = vld [vmem:[%s1 + $0xa8] sm:$0xff]
    %v176 = vld [vmem:[%s1 + $0xb0] sm:$0xff]
    %v177 = vld [vmem:[%s1 + $0xb8] sm:$0xff]
    %v178 = vld [vmem:[%s1 + $0xc0] sm:$0xff]
    %v179 = vld [vmem:[%s1 + $0xc8] sm:$0xff]
    %v180 = vld [vmem:[%s1 + $0xd0] sm:$0xff]
    %v181 = vld [vmem:[%s1 + $0xd8] sm:$0xff]
    %v182 = vld [vmem:[%s1 + $0xe0] sm:$0xff]
    %v183 = vld [vmem:[%s1 + $0xe8] sm:$0xff]
    %v184 = vld [vmem:[%s1 + $0xf0] sm:$0xff]
    %v185 = vld [vmem:[%s1 + $0xf8] sm:$0xff]
    %v186 = vld [vmem:[%s1 + $0x100] sm:$0xff]
    %v187 = vld [vmem:[%s1 + $0x108] sm:$0xff]
    %v188 = vld [vmem:[%s1 + $0x110] sm:$0xff]
    %v189 = vld [vmem:[%s1 + $0x118] sm:$0xff]
    %v190 = vld [vmem:[%s1 + $0x120] sm:$0xff]
    %v191 = vld [vmem:[%s1 + $0x128] sm:$0xff]
    %v192 = vld [vmem:[%s1 + $0x130] sm:$0xff]
    %v193 = vld [vmem:[%s1 + $0x138] sm:$0xff]
    %v194 = vld [vmem:[%s1 + $0x140] sm:$0xff]
    %v195 = vld [vmem:[%s1 + $0x148] sm:$0xff]
    %v196 = vld [vmem:[%s1 + $0x150] sm:$0xff]
    %v197 = vld [vmem:[%s1 + $0x158] sm:$0xff]
    %v198 = vld [vmem:[%s1 + $0x160] sm:$0xff]
    %v199 = vld [vmem:[%s1 + $0x168] sm:$0xff]
    %v200 = vld [vmem:[%s1 + $0x170] sm:$0xff]
    %v201 = vld [vmem:[%s1 + $0x178] sm:$0xff]
    %v202 = vld [vmem:[%s1 + $0x180] sm:$0xff]
    %v203 = vld [vmem:[%s1 + $0x188] sm:$0xff]
    %v204 = vld [vmem:[%s1 + $0x190] sm:$0xff]
    %v205 = vld [vmem:[%s1 + $0x198] sm:$0xff]
    %v206 = vld [vmem:[%s1 + $0x1a0] sm:$0xff]
    %v207 = vld [vmem:[%s1 + $0x1a8] sm:$0xff]
    %v208 = vld [vmem:[%s1 + $0x1b0] sm:$0xff]
    %v209 = vld [vmem:[%s1 + $0x1b8] sm:$0xff]
    %v210 = vld [vmem:[%s1 + $0x1c0] sm:$0xff]
    %v211 = vld [vmem:[%s1 + $0x1c8] sm:$0xff]
    %v212 = vld [vmem:[%s1 + $0x1d0] sm:$0xff]
    %v213 = vld [vmem:[%s1 + $0x1d8] sm:$0xff]
    %v214 = vld [vmem:[%s1 + $0x1e0] sm:$0xff]
    %v215 = vld [vmem:[%s1 + $0x1e8] sm:$0xff]
    %v216 = vld [vmem:[%s1 + $0x1f0] sm:$0xff]
    %v217 = vld [vmem:[%s1 + $0x1f8] sm:$0xff]
    %v346 = vunpack.c.l.b16 %v26
    %v347 = vunpack.c.h.b16 %v26
    %v348 = vunpack.c.l.b16 %v27
    %v349 = vunpack.c.h.b16 %v27
    %v350 = vunpack.c.l.b16 %v28
    %v351 = vunpack.c.h.b16 %v28
    %v352 = vunpack.c.l.b16 %v29
    %v353 = vunpack.c.h.b16 %v29
    %v354 = vunpack.c.l.b16 %v30
    %v355 = vunpack.c.h.b16 %v30
    %v356 = vunpack.c.l.b16 %v31
    %v357 = vunpack.c.h.b16 %v31
    %v358 = vunpack.c.l.b16 %v32
    %v359 = vunpack.c.h.b16 %v32
    %v360 = vunpack.c.l.b16 %v33
    %v361 = vunpack.c.h.b16 %v33
    %v362 = vunpack.c.l.b16 %v34
    %v363 = vunpack.c.h.b16 %v34
    %v364 = vunpack.c.l.b16 %v35
    %v365 = vunpack.c.h.b16 %v35
    %v366 = vunpack.c.l.b16 %v36
    %v367 = vunpack.c.h.b16 %v36
    %v368 = vunpack.c.l.b16 %v37
    %v369 = vunpack.c.h.b16 %v37
    %v370 = vunpack.c.l.b16 %v38
    %v371 = vunpack.c.h.b16 %v38
    %v372 = vunpack.c.l.b16 %v39
    %v373 = vunpack.c.h.b16 %v39
    %v374 = vunpack.c.l.b16 %v40
    %v375 = vunpack.c.h.b16 %v40
    %v376 = vunpack.c.l.b16 %v41
    %v377 = vunpack.c.h.b16 %v41
    %v378 = vunpack.c.l.b16 %v42
    %v379 = vunpack.c.h.b16 %v42
    %v380 = vunpack.c.l.b16 %v43
    %v381 = vunpack.c.h.b16 %v43
    %v382 = vunpack.c.l.b16 %v44
    %v383 = vunpack.c.h.b16 %v44
    %v384 = vunpack.c.l.b16 %v45
    %v385 = vunpack.c.h.b16 %v45
    %v386 = vunpack.c.l.b16 %v46
    %v387 = vunpack.c.h.b16 %v46
    %v388 = vunpack.c.l.b16 %v47
    %v389 = vunpack.c.h.b16 %v47
    %v390 = vunpack.c.l.b16 %v48
    %v391 = vunpack.c.h.b16 %v48
    %v392 = vunpack.c.l.b16 %v49
    %v393 = vunpack.c.h.b16 %v49
    %v394 = vunpack.c.l.b16 %v50
    %v395 = vunpack.c.h.b16 %v50
    %v396 = vunpack.c.l.b16 %v51
    %v397 = vunpack.c.h.b16 %v51
    %v398 = vunpack.c.l.b16 %v52
    %v399 = vunpack.c.h.b16 %v52
    %v400 = vunpack.c.l.b16 %v53
    %v401 = vunpack.c.h.b16 %v53
    %v402 = vunpack.c.l.b16 %v54
    %v403 = vunpack.c.h.b16 %v54
    %v404 = vunpack.c.l.b16 %v55
    %v405 = vunpack.c.h.b16 %v55
    %v406 = vunpack.c.l.b16 %v56
    %v407 = vunpack.c.h.b16 %v56
    %v408 = vunpack.c.l.b16 %v57
    %v409 = vunpack.c.h.b16 %v57
    %v410 = vunpack.c.l.b16 %v58
    %v411 = vunpack.c.h.b16 %v58
    %v412 = vunpack.c.l.b16 %v59
    %v413 = vunpack.c.h.b16 %v59
    %v414 = vunpack.c.l.b16 %v60
    %v415 = vunpack.c.h.b16 %v60
    %v416 = vunpack.c.l.b16 %v61
    %v417 = vunpack.c.h.b16 %v61
    %v418 = vunpack.c.l.b16 %v62
    %v419 = vunpack.c.h.b16 %v62
    %v420 = vunpack.c.l.b16 %v63
    %v421 = vunpack.c.h.b16 %v63
    %v422 = vunpack.c.l.b16 %v64
    %v423 = vunpack.c.h.b16 %v64
    %v424 = vunpack.c.l.b16 %v65
    %v425 = vunpack.c.h.b16 %v65
    %v426 = vunpack.c.l.b16 %v66
    %v427 = vunpack.c.h.b16 %v66
    %v428 = vunpack.c.l.b16 %v67
    %v429 = vunpack.c.h.b16 %v67
    %v430 = vunpack.c.l.b16 %v68
    %v431 = vunpack.c.h.b16 %v68
    %v432 = vunpack.c.l.b16 %v69
    %v433 = vunpack.c.h.b16 %v69
    %v434 = vunpack.c.l.b16 %v70
    %v435 = vunpack.c.h.b16 %v70
    %v436 = vunpack.c.l.b16 %v71
    %v437 = vunpack.c.h.b16 %v71
    %v438 = vunpack.c.l.b16 %v72
    %v439 = vunpack.c.h.b16 %v72
    %v440 = vunpack.c.l.b16 %v73
    %v441 = vunpack.c.h.b16 %v73
    %v442 = vunpack.c.l.b16 %v74
    %v443 = vunpack.c.h.b16 %v74
    %v444 = vunpack.c.l.b16 %v75
    %v445 = vunpack.c.h.b16 %v75
    %v446 = vunpack.c.l.b16 %v76
    %v447 = vunpack.c.h.b16 %v76
    %v448 = vunpack.c.l.b16 %v77
    %v449 = vunpack.c.h.b16 %v77
    %v450 = vunpack.c.l.b16 %v78
    %v451 = vunpack.c.h.b16 %v78
    %v452 = vunpack.c.l.b16 %v79
    %v453 = vunpack.c.h.b16 %v79
    %v454 = vunpack.c.l.b16 %v80
    %v455 = vunpack.c.h.b16 %v80
    %v456 = vunpack.c.l.b16 %v81
    %v457 = vunpack.c.h.b16 %v81
    %v458 = vunpack.c.l.b16 %v82
    %v459 = vunpack.c.h.b16 %v82
    %v460 = vunpack.c.l.b16 %v83
    %v461 = vunpack.c.h.b16 %v83
    %v462 = vunpack.c.l.b16 %v84
    %v463 = vunpack.c.h.b16 %v84
    %v464 = vunpack.c.l.b16 %v85
    %v465 = vunpack.c.h.b16 %v85
    %v466 = vunpack.c.l.b16 %v86
    %v467 = vunpack.c.h.b16 %v86
    %v468 = vunpack.c.l.b16 %v87
    %v469 = vunpack.c.h.b16 %v87
    %v470 = vunpack.c.l.b16 %v88
    %v471 = vunpack.c.h.b16 %v88
    %v472 = vunpack.c.l.b16 %v89
    %v473 = vunpack.c.h.b16 %v89
    %v474 = vunpack.c.l.b16 %v90
    %v475 = vunpack.c.h.b16 %v90
    %v476 = vunpack.c.l.b16 %v91
    %v477 = vunpack.c.h.b16 %v91
    %v478 = vunpack.c.l.b16 %v92
    %v479 = vunpack.c.h.b16 %v92
    %v480 = vunpack.c.l.b16 %v93
    %v481 = vunpack.c.h.b16 %v93
    %v482 = vunpack.c.l.b16 %v94
    %v483 = vunpack.c.h.b16 %v94
    %v484 = vunpack.c.l.b16 %v95
    %v485 = vunpack.c.h.b16 %v95
    %v486 = vunpack.c.l.b16 %v96
    %v487 = vunpack.c.h.b16 %v96
    %v488 = vunpack.c.l.b16 %v97
    %v489 = vunpack.c.h.b16 %v97
    %v490 = vunpack.c.l.b16 %v98
    %v491 = vunpack.c.h.b16 %v98
    %v492 = vunpack.c.l.b16 %v99
    %v493 = vunpack.c.h.b16 %v99
    %v494 = vunpack.c.l.b16 %v100
    %v495 = vunpack.c.h.b16 %v100
    %v496 = vunpack.c.l.b16 %v101
    %v497 = vunpack.c.h.b16 %v101
    %v498 = vunpack.c.l.b16 %v102
    %v499 = vunpack.c.h.b16 %v102
    %v500 = vunpack.c.l.b16 %v103
    %v501 = vunpack.c.h.b16 %v103
    %v502 = vunpack.c.l.b16 %v104
    %v503 = vunpack.c.h.b16 %v104
    %v504 = vunpack.c.l.b16 %v105
    %v505 = vunpack.c.h.b16 %v105
    %v506 = vunpack.c.l.b16 %v106
    %v507 = vunpack.c.h.b16 %v106
    %v508 = vunpack.c.l.b16 %v107
    %v509 = vunpack.c.h.b16 %v107
    %v510 = vunpack.c.l.b16 %v108
    %v511 = vunpack.c.h.b16 %v108
    %v512 = vunpack.c.l.b16 %v109
    %v513 = vunpack.c.h.b16 %v109
    %v514 = vunpack.c.l.b16 %v110
    %v515 = vunpack.c.h.b16 %v110
    %v516 = vunpack.c.l.b16 %v111
    %v517 = vunpack.c.h.b16 %v111
    %v518 = vunpack.c.l.b16 %v112
    %v519 = vunpack.c.h.b16 %v112
    %v520 = vunpack.c.l.b16 %v113
    %v521 = vunpack.c.h.b16 %v113
    %v522 = vunpack.c.l.b16 %v114
    %v523 = vunpack.c.h.b16 %v114
    %v524 = vunpack.c.l.b16 %v115
    %v525 = vunpack.c.h.b16 %v115
    %v526 = vunpack.c.l.b16 %v116
    %v527 = vunpack.c.h.b16 %v116
    %v528 = vunpack.c.l.b16 %v117
    %v529 = vunpack.c.h.b16 %v117
    %v530 = vunpack.c.l.b16 %v118
    %v531 = vunpack.c.h.b16 %v118
    %v532 = vunpack.c.l.b16 %v119
    %v533 = vunpack.c.h.b16 %v119
    %v534 = vunpack.c.l.b16 %v120
    %v535 = vunpack.c.h.b16 %v120
    %v536 = vunpack.c.l.b16 %v121
    %v537 = vunpack.c.h.b16 %v121
    %v538 = vunpack.c.l.b16 %v122
    %v539 = vunpack.c.h.b16 %v122
    %v540 = vunpack.c.l.b16 %v123
    %v541 = vunpack.c.h.b16 %v123
    %v542 = vunpack.c.l.b16 %v124
    %v543 = vunpack.c.h.b16 %v124
    %v544 = vunpack.c.l.b16 %v125
    %v545 = vunpack.c.h.b16 %v125
    %v546 = vunpack.c.l.b16 %v126
    %v547 = vunpack.c.h.b16 %v126
    %v548 = vunpack.c.l.b16 %v127
    %v549 = vunpack.c.h.b16 %v127
    %v550 = vunpack.c.l.b16 %v128
    %v551 = vunpack.c.h.b16 %v128
    %v552 = vunpack.c.l.b16 %v129
    %v553 = vunpack.c.h.b16 %v129
    %v554 = vunpack.c.l.b16 %v130
    %v555 = vunpack.c.h.b16 %v130
    %v556 = vunpack.c.l.b16 %v131
    %v557 = vunpack.c.h.b16 %v131
    %v558 = vunpack.c.l.b16 %v132
    %v559 = vunpack.c.h.b16 %v132
    %v560 = vunpack.c.l.b16 %v133
    %v561 = vunpack.c.h.b16 %v133
    %v562 = vunpack.c.l.b16 %v134
    %v563 = vunpack.c.h.b16 %v134
    %v564 = vunpack.c.l.b16 %v135
    %v565 = vunpack.c.h.b16 %v135
    %v566 = vunpack.c.l.b16 %v136
    %v567 = vunpack.c.h.b16 %v136
    %v568 = vunpack.c.l.b16 %v137
    %v569 = vunpack.c.h.b16 %v137
    %v570 = vunpack.c.l.b16 %v138
    %v571 = vunpack.c.h.b16 %v138
    %v572 = vunpack.c.l.b16 %v139
    %v573 = vunpack.c.h.b16 %v139
    %v574 = vunpack.c.l.b16 %v140
    %v575 = vunpack.c.h.b16 %v140
    %v576 = vunpack.c.l.b16 %v141
    %v577 = vunpack.c.h.b16 %v141
    %v578 = vunpack.c.l.b16 %v142
    %v579 = vunpack.c.h.b16 %v142
    %v580 = vunpack.c.l.b16 %v143
    %v581 = vunpack.c.h.b16 %v143
    %v582 = vunpack.c.l.b16 %v144
    %v583 = vunpack.c.h.b16 %v144
    %v584 = vunpack.c.l.b16 %v145
    %v585 = vunpack.c.h.b16 %v145
    %v586 = vunpack.c.l.b16 %v146
    %v587 = vunpack.c.h.b16 %v146
    %v588 = vunpack.c.l.b16 %v147
    %v589 = vunpack.c.h.b16 %v147
    %v590 = vunpack.c.l.b16 %v148
    %v591 = vunpack.c.h.b16 %v148
    %v592 = vunpack.c.l.b16 %v149
    %v593 = vunpack.c.h.b16 %v149
    %v594 = vunpack.c.l.b16 %v150
    %v595 = vunpack.c.h.b16 %v150
    %v596 = vunpack.c.l.b16 %v151
    %v597 = vunpack.c.h.b16 %v151
    %v598 = vunpack.c.l.b16 %v152
    %v599 = vunpack.c.h.b16 %v152
    %v600 = vunpack.c.l.b16 %v153
    %v601 = vunpack.c.h.b16 %v153
    %v602 = vpack.c.b16 %v350, %v346
    %v603 = vpack.c.b16 %v351, %v347
    %v604 = vpack.c.b16 %v352, %v348
    %v605 = vpack.c.b16 %v353, %v349
    %v606 = vpack.c.b16 %v358, %v354
    %v607 = vpack.c.b16 %v359, %v355
    %v608 = vpack.c.b16 %v360, %v356
    %v609 = vpack.c.b16 %v361, %v357
    %v610 = vpack.c.b16 %v366, %v362
    %v611 = vpack.c.b16 %v367, %v363
    %v612 = vpack.c.b16 %v368, %v364
    %v613 = vpack.c.b16 %v369, %v365
    %v614 = vpack.c.b16 %v374, %v370
    %v615 = vpack.c.b16 %v375, %v371
    %v616 = vpack.c.b16 %v376, %v372
    %v617 = vpack.c.b16 %v377, %v373
    %v618 = vpack.c.b16 %v382, %v378
    %v619 = vpack.c.b16 %v383, %v379
    %v620 = vpack.c.b16 %v384, %v380
    %v621 = vpack.c.b16 %v385, %v381
    %v622 = vpack.c.b16 %v390, %v386
    %v623 = vpack.c.b16 %v391, %v387
    %v624 = vpack.c.b16 %v392, %v388
    %v625 = vpack.c.b16 %v393, %v389
    %v626 = vpack.c.b16 %v398, %v394
    %v627 = vpack.c.b16 %v399, %v395
    %v628 = vpack.c.b16 %v400, %v396
    %v629 = vpack.c.b16 %v401, %v397
    %v630 = vpack.c.b16 %v406, %v402
    %v631 = vpack.c.b16 %v407, %v403
    %v632 = vpack.c.b16 %v408, %v404
    %v633 = vpack.c.b16 %v409, %v405
    %v634 = vpack.c.b16 %v414, %v410
    %v635 = vpack.c.b16 %v415, %v411
    %v636 = vpack.c.b16 %v416, %v412
    %v637 = vpack.c.b16 %v417, %v413
    %v638 = vpack.c.b16 %v422, %v418
    %v639 = vpack.c.b16 %v423, %v419
    %v640 = vpack.c.b16 %v424, %v420
    %v641 = vpack.c.b16 %v425, %v421
    %v642 = vpack.c.b16 %v430, %v426
    %v643 = vpack.c.b16 %v431, %v427
    %v644 = vpack.c.b16 %v432, %v428
    %v645 = vpack.c.b16 %v433, %v429
    %v646 = vpack.c.b16 %v438, %v434
    %v647 = vpack.c.b16 %v439, %v435
    %v648 = vpack.c.b16 %v440, %v436
    %v649 = vpack.c.b16 %v441, %v437
    %v650 = vpack.c.b16 %v446, %v442
    %v651 = vpack.c.b16 %v447, %v443
    %v652 = vpack.c.b16 %v448, %v444
    %v653 = vpack.c.b16 %v449, %v445
    %v654 = vpack.c.b16 %v454, %v450
    %v655 = vpack.c.b16 %v455, %v451
    %v656 = vpack.c.b16 %v456, %v452
    %v657 = vpack.c.b16 %v457, %v453
    %v658 = vpack.c.b16 %v462, %v458
    %v659 = vpack.c.b16 %v463, %v459
    %v660 = vpack.c.b16 %v464, %v460
    %v661 = vpack.c.b16 %v465, %v461
    %v662 = vpack.c.b16 %v470, %v466
    %v663 = vpack.c.b16 %v471, %v467
    %v664 = vpack.c.b16 %v472, %v468
    %v665 = vpack.c.b16 %v473, %v469
    %v666 = vpack.c.b16 %v478, %v474
    %v667 = vpack.c.b16 %v479, %v475
    %v668 = vpack.c.b16 %v480, %v476
    %v669 = vpack.c.b16 %v481, %v477
    %v670 = vpack.c.b16 %v486, %v482
    %v671 = vpack.c.b16 %v487, %v483
    %v672 = vpack.c.b16 %v488, %v484
    %v673 = vpack.c.b16 %v489, %v485
    %v674 = vpack.c.b16 %v494, %v490
    %v675 = vpack.c.b16 %v495, %v491
    %v676 = vpack.c.b16 %v496, %v492
    %v677 = vpack.c.b16 %v497, %v493
    %v678 = vpack.c.b16 %v502, %v498
    %v679 = vpack.c.b16 %v503, %v499
    %v680 = vpack.c.b16 %v504, %v500
    %v681 = vpack.c.b16 %v505, %v501
    %v682 = vpack.c.b16 %v510, %v506
    %v683 = vpack.c.b16 %v511, %v507
    %v684 = vpack.c.b16 %v512, %v508
    %v685 = vpack.c.b16 %v513, %v509
    %v686 = vpack.c.b16 %v518, %v514
    %v687 = vpack.c.b16 %v519, %v515
    %v688 = vpack.c.b16 %v520, %v516
    %v689 = vpack.c.b16 %v521, %v517
    %v690 = vpack.c.b16 %v526, %v522
    %v691 = vpack.c.b16 %v527, %v523
    %v692 = vpack.c.b16 %v528, %v524
    %v693 = vpack.c.b16 %v529, %v525
    %v694 = vpack.c.b16 %v534, %v530
    %v695 = vpack.c.b16 %v535, %v531
    %v696 = vpack.c.b16 %v536, %v532
    %v697 = vpack.c.b16 %v537, %v533
    %v698 = vpack.c.b16 %v542, %v538
    %v699 = vpack.c.b16 %v543, %v539
    %v700 = vpack.c.b16 %v544, %v540
    %v701 = vpack.c.b16 %v545, %v541
    %v702 = vpack.c.b16 %v550, %v546
    %v703 = vpack.c.b16 %v551, %v547
    %v704 = vpack.c.b16 %v552, %v548
    %v705 = vpack.c.b16 %v553, %v549
    %v706 = vpack.c.b16 %v558, %v554
    %v707 = vpack.c.b16 %v559, %v555
    %v708 = vpack.c.b16 %v560, %v556
    %v709 = vpack.c.b16 %v561, %v557
    %v710 = vpack.c.b16 %v566, %v562
    %v711 = vpack.c.b16 %v567, %v563
    %v712 = vpack.c.b16 %v568, %v564
    %v713 = vpack.c.b16 %v569, %v565
    %v714 = vpack.c.b16 %v574, %v570
    %v715 = vpack.c.b16 %v575, %v571
    %v716 = vpack.c.b16 %v576, %v572
    %v717 = vpack.c.b16 %v577, %v573
    %v718 = vpack.c.b16 %v582, %v578
    %v719 = vpack.c.b16 %v583, %v579
    %v720 = vpack.c.b16 %v584, %v580
    %v721 = vpack.c.b16 %v585, %v581
    %v722 = vpack.c.b16 %v590, %v586
    %v723 = vpack.c.b16 %v591, %v587
    %v724 = vpack.c.b16 %v592, %v588
    %v725 = vpack.c.b16 %v593, %v589
    %v726 = vpack.c.b16 %v598, %v594
    %v727 = vpack.c.b16 %v599, %v595
    %v728 = vpack.c.b16 %v600, %v596
    %v729 = vpack.c.b16 %v601, %v597
    %v922 = vunpack.c.l.b16 %v154
    %v923 = vunpack.c.h.b16 %v154
    %v924 = vunpack.c.l.b16 %v155
    %v925 = vunpack.c.h.b16 %v155
    %v926 = vunpack.c.l.b16 %v156
    %v927 = vunpack.c.h.b16 %v156
    %v928 = vunpack.c.l.b16 %v157
    %v929 = vunpack.c.h.b16 %v157
    %v930 = vunpack.c.l.b16 %v158
    %v931 = vunpack.c.h.b16 %v158
    %v932 = vunpack.c.l.b16 %v159
    %v933 = vunpack.c.h.b16 %v159
    %v934 = vunpack.c.l.b16 %v160
    %v935 = vunpack.c.h.b16 %v160
    %v936 = vunpack.c.l.b16 %v161
    %v937 = vunpack.c.h.b16 %v161
    %v938 = vunpack.c.l.b16 %v162
    %v939 = vunpack.c.h.b16 %v162
    %v940 = vunpack.c.l.b16 %v163
    %v941 = vunpack.c.h.b16 %v163
    %v942 = vunpack.c.l.b16 %v164
    %v943 = vunpack.c.h.b16 %v164
    %v944 = vunpack.c.l.b16 %v165
    %v945 = vunpack.c.h.b16 %v165
    %v946 = vunpack.c.l.b16 %v166
    %v947 = vunpack.c.h.b16 %v166
    %v948 = vunpack.c.l.b16 %v167
    %v949 = vunpack.c.h.b16 %v167
    %v950 = vunpack.c.l.b16 %v168
    %v951 = vunpack.c.h.b16 %v168
    %v952 = vunpack.c.l.b16 %v169
    %v953 = vunpack.c.h.b16 %v169
    %v954 = vunpack.c.l.b16 %v170
    %v955 = vunpack.c.h.b16 %v170
    %v956 = vunpack.c.l.b16 %v171
    %v957 = vunpack.c.h.b16 %v171
    %v958 = vunpack.c.l.b16 %v172
    %v959 = vunpack.c.h.b16 %v172
    %v960 = vunpack.c.l.b16 %v173
    %v961 = vunpack.c.h.b16 %v173
    %v962 = vunpack.c.l.b16 %v174
    %v963 = vunpack.c.h.b16 %v174
    %v964 = vunpack.c.l.b16 %v175
    %v965 = vunpack.c.h.b16 %v175
    %v966 = vunpack.c.l.b16 %v176
    %v967 = vunpack.c.h.b16 %v176
    %v968 = vunpack.c.l.b16 %v177
    %v969 = vunpack.c.h.b16 %v177
    %v970 = vunpack.c.l.b16 %v178
    %v971 = vunpack.c.h.b16 %v178
    %v972 = vunpack.c.l.b16 %v179
    %v973 = vunpack.c.h.b16 %v179
    %v974 = vunpack.c.l.b16 %v180
    %v975 = vunpack.c.h.b16 %v180
    %v976 = vunpack.c.l.b16 %v181
    %v977 = vunpack.c.h.b16 %v181
    %v978 = vunpack.c.l.b16 %v182
    %v979 = vunpack.c.h.b16 %v182
    %v980 = vunpack.c.l.b16 %v183
    %v981 = vunpack.c.h.b16 %v183
    %v982 = vunpack.c.l.b16 %v184
    %v983 = vunpack.c.h.b16 %v184
    %v984 = vunpack.c.l.b16 %v185
    %v985 = vunpack.c.h.b16 %v185
    %v986 = vunpack.c.l.b16 %v186
    %v987 = vunpack.c.h.b16 %v186
    %v988 = vunpack.c.l.b16 %v187
    %v989 = vunpack.c.h.b16 %v187
    %v990 = vunpack.c.l.b16 %v188
    %v991 = vunpack.c.h.b16 %v188
    %v992 = vunpack.c.l.b16 %v189
    %v993 = vunpack.c.h.b16 %v189
    %v994 = vunpack.c.l.b16 %v190
    %v995 = vunpack.c.h.b16 %v190
    %v996 = vunpack.c.l.b16 %v191
    %v997 = vunpack.c.h.b16 %v191
    %v998 = vunpack.c.l.b16 %v192
    %v999 = vunpack.c.h.b16 %v192
    %v1000 = vunpack.c.l.b16 %v193
    %v1001 = vunpack.c.h.b16 %v193
    %v1002 = vunpack.c.l.b16 %v194
    %v1003 = vunpack.c.h.b16 %v194
    %v1004 = vunpack.c.l.b16 %v195
    %v1005 = vunpack.c.h.b16 %v195
    %v1006 = vunpack.c.l.b16 %v196
    %v1007 = vunpack.c.h.b16 %v196
    %v1008 = vunpack.c.l.b16 %v197
    %v1009 = vunpack.c.h.b16 %v197
    %v1010 = vunpack.c.l.b16 %v198
    %v1011 = vunpack.c.h.b16 %v198
    %v1012 = vunpack.c.l.b16 %v199
    %v1013 = vunpack.c.h.b16 %v199
    %v1014 = vunpack.c.l.b16 %v200
    %v1015 = vunpack.c.h.b16 %v200
    %v1016 = vunpack.c.l.b16 %v201
    %v1017 = vunpack.c.h.b16 %v201
    %v1018 = vunpack.c.l.b16 %v202
    %v1019 = vunpack.c.h.b16 %v202
    %v1020 = vunpack.c.l.b16 %v203
    %v1021 = vunpack.c.h.b16 %v203
    %v1022 = vunpack.c.l.b16 %v204
    %v1023 = vunpack.c.h.b16 %v204
    %v1024 = vunpack.c.l.b16 %v205
    %v1025 = vunpack.c.h.b16 %v205
    %v1026 = vunpack.c.l.b16 %v206
    %v1027 = vunpack.c.h.b16 %v206
    %v1028 = vunpack.c.l.b16 %v207
    %v1029 = vunpack.c.h.b16 %v207
    %v1030 = vunpack.c.l.b16 %v208
    %v1031 = vunpack.c.h.b16 %v208
    %v1032 = vunpack.c.l.b16 %v209
    %v1033 = vunpack.c.h.b16 %v209
    %v1034 = vunpack.c.l.b16 %v210
    %v1035 = vunpack.c.h.b16 %v210
    %v1036 = vunpack.c.l.b16 %v211
    %v1037 = vunpack.c.h.b16 %v211
    %v1038 = vunpack.c.l.b16 %v212
    %v1039 = vunpack.c.h.b16 %v212
    %v1040 = vunpack.c.l.b16 %v213
    %v1041 = vunpack.c.h.b16 %v213
    %v1042 = vunpack.c.l.b16 %v214
    %v1043 = vunpack.c.h.b16 %v214
    %v1044 = vunpack.c.l.b16 %v215
    %v1045 = vunpack.c.h.b16 %v215
    %v1046 = vunpack.c.l.b16 %v216
    %v1047 = vunpack.c.h.b16 %v216
    %v1048 = vunpack.c.l.b16 %v217
    %v1049 = vunpack.c.h.b16 %v217
    %v1050 = vpack.c.b16 %v924, %v922
    %v1051 = vpack.c.b16 %v925, %v923
    %v1052 = vpack.c.b16 %v928, %v926
    %v1053 = vpack.c.b16 %v929, %v927
    %v1054 = vpack.c.b16 %v932, %v930
    %v1055 = vpack.c.b16 %v933, %v931
    %v1056 = vpack.c.b16 %v936, %v934
    %v1057 = vpack.c.b16 %v937, %v935
    %v1058 = vpack.c.b16 %v940, %v938
    %v1059 = vpack.c.b16 %v941, %v939
    %v1060 = vpack.c.b16 %v944, %v942
    %v1061 = vpack.c.b16 %v945, %v943
    %v1062 = vpack.c.b16 %v948, %v946
    %v1063 = vpack.c.b16 %v949, %v947
    %v1064 = vpack.c.b16 %v952, %v950
    %v1065 = vpack.c.b16 %v953, %v951
    %v1066 = vpack.c.b16 %v956, %v954
    %v1067 = vpack.c.b16 %v957, %v955
    %v1068 = vpack.c.b16 %v960, %v958
    %v1069 = vpack.c.b16 %v961, %v959
    %v1070 = vpack.c.b16 %v964, %v962
    %v1071 = vpack.c.b16 %v965, %v963
    %v1072 = vpack.c.b16 %v968, %v966
    %v1073 = vpack.c.b16 %v969, %v967
    %v1074 = vpack.c.b16 %v972, %v970
    %v1075 = vpack.c.b16 %v973, %v971
    %v1076 = vpack.c.b16 %v976, %v974
    %v1077 = vpack.c.b16 %v977, %v975
    %v1078 = vpack.c.b16 %v980, %v978
    %v1079 = vpack.c.b16 %v981, %v979
    %v1080 = vpack.c.b16 %v984, %v982
    %v1081 = vpack.c.b16 %v985, %v983
    %v1082 = vpack.c.b16 %v988, %v986
    %v1083 = vpack.c.b16 %v989, %v987
    %v1084 = vpack.c.b16 %v992, %v990
    %v1085 = vpack.c.b16 %v993, %v991
    %v1086 = vpack.c.b16 %v996, %v994
    %v1087 = vpack.c.b16 %v997, %v995
    %v1088 = vpack.c.b16 %v1000, %v998
    %v1089 = vpack.c.b16 %v1001, %v999
    %v1090 = vpack.c.b16 %v1004, %v1002
    %v1091 = vpack.c.b16 %v1005, %v1003
    %v1092 = vpack.c.b16 %v1008, %v1006
    %v1093 = vpack.c.b16 %v1009, %v1007
    %v1094 = vpack.c.b16 %v1012, %v1010
    %v1095 = vpack.c.b16 %v1013, %v1011
    %v1096 = vpack.c.b16 %v1016, %v1014
    %v1097 = vpack.c.b16 %v1017, %v1015
    %v1098 = vpack.c.b16 %v1020, %v1018
    %v1099 = vpack.c.b16 %v1021, %v1019
    %v1100 = vpack.c.b16 %v1024, %v1022
    %v1101 = vpack.c.b16 %v1025, %v1023
    %v1102 = vpack.c.b16 %v1028, %v1026
    %v1103 = vpack.c.b16 %v1029, %v1027
    %v1104 = vpack.c.b16 %v1032, %v1030
    %v1105 = vpack.c.b16 %v1033, %v1031
    %v1106 = vpack.c.b16 %v1036, %v1034
    %v1107 = vpack.c.b16 %v1037, %v1035
    %v1108 = vpack.c.b16 %v1040, %v1038
    %v1109 = vpack.c.b16 %v1041, %v1039
    %v1110 = vpack.c.b16 %v1044, %v1042
    %v1111 = vpack.c.b16 %v1045, %v1043
    %v1112 = vpack.c.b16 %v1048, %v1046
    %v1113 = vpack.c.b16 %v1049, %v1047
    %1178 = vmatprep.subr.bf16.mxu0 %v1051
    %1179 = vmatpush1.bf16.msra.mxu0 %v1050
    %1180 = vmatprep.subr.bf16.mxu0 %v1053
    %1181 = vmatpush1.bf16.msra.mxu0 %v1052
    %1182 = vmatprep.subr.bf16.mxu0 %v1055
    %1183 = vmatpush1.bf16.msra.mxu0 %v1054
    %1184 = vmatprep.subr.bf16.mxu0 %v1057
    %1185 = vmatpush1.bf16.msra.mxu0 %v1056
    %1186 = vmatprep.subr.bf16.mxu0 %v1059
    %1187 = vmatpush1.bf16.msra.mxu0 %v1058
    %1188 = vmatprep.subr.bf16.mxu0 %v1061
    %1189 = vmatpush1.bf16.msra.mxu0 %v1060
    %1190 = vmatprep.subr.bf16.mxu0 %v1063
    %1191 = vmatpush1.bf16.msra.mxu0 %v1062
    %1192 = vmatprep.subr.bf16.mxu0 %v1065
    %1193 = vmatpush1.bf16.msra.mxu0 %v1064
    %1194 = vmatprep.subr.bf16.mxu0 %v1067
    %1195 = vmatpush1.bf16.msra.mxu0 %v1066
    %1196 = vmatprep.subr.bf16.mxu0 %v1069
    %1197 = vmatpush1.bf16.msra.mxu0 %v1068
    %1198 = vmatprep.subr.bf16.mxu0 %v1071
    %1199 = vmatpush1.bf16.msra.mxu0 %v1070
    %1200 = vmatprep.subr.bf16.mxu0 %v1073
    %1201 = vmatpush1.bf16.msra.mxu0 %v1072
    %1202 = vmatprep.subr.bf16.mxu0 %v1075
    %1203 = vmatpush1.bf16.msra.mxu0 %v1074
    %1204 = vmatprep.subr.bf16.mxu0 %v1077
    %1205 = vmatpush1.bf16.msra.mxu0 %v1076
    %1206 = vmatprep.subr.bf16.mxu0 %v1079
    %1207 = vmatpush1.bf16.msra.mxu0 %v1078
    %1208 = vmatprep.subr.bf16.mxu0 %v1081
    %1209 = vmatpush1.bf16.msra.mxu0 %v1080
    %1210 = vmatprep.mubr.bf16.mxu0 %v603
    %1211 = vmatmul.mubr.bf16.gmra.mrb[0].mxu0 %v602
    %v1212 = vpop.f32.mrb[0].mxu0
    %v1213 = vadd.f32 0.0, %v1212
    %v1214 = vpop.f32.mrb[0].mxu0
    %v1215 = vadd.f32 0.0, %v1214
    %v1216 = vpop.f32.mrb[0].mxu0
    %v1217 = vadd.f32 0.0, %v1216
    %v1218 = vpop.f32.mrb[0].mxu0
    %v1219 = vadd.f32 0.0, %v1218
    %1220 = vmatprep.mubr.bf16.mxu0 %v607
    %1221 = vmatmul.mubr.bf16.gmra.mrb[0].mxu0 %v606
    %v1222 = vpop.f32.mrb[0].mxu0
    %v1223 = vadd.f32 0.0, %v1222
    %v1224 = vpop.f32.mrb[0].mxu0
    %v1225 = vadd.f32 0.0, %v1224
    %v1226 = vpop.f32.mrb[0].mxu0
    %v1227 = vadd.f32 0.0, %v1226
    %v1228 = vpop.f32.mrb[0].mxu0
    %v1229 = vadd.f32 0.0, %v1228
    %1230 = vmatprep.mubr.bf16.mxu0 %v611
    %1231 = vmatmul.mubr.bf16.gmra.mrb[0].mxu0 %v610
    %v1232 = vpop.f32.mrb[0].mxu0
    %v1233 = vadd.f32 0.0, %v1232
    %v1234 = vpop.f32.mrb[0].mxu0
    %v1235 = vadd.f32 0.0, %v1234
    %v1236 = vpop.f32.mrb[0].mxu0
    %v1237 = vadd.f32 0.0, %v1236
    %v1238 = vpop.f32.mrb[0].mxu0
    %v1239 = vadd.f32 0.0, %v1238
    %1240 = vmatprep.mubr.bf16.mxu0 %v615
    %1241 = vmatmul.mubr.bf16.gmra.mrb[0].mxu0 %v614
    %v1242 = vpop.f32.mrb[0].mxu0
    %v1243 = vadd.f32 0.0, %v1242
    %v1244 = vpop.f32.mrb[0].mxu0
    %v1245 = vadd.f32 0.0, %v1244
    %v1246 = vpop.f32.mrb[0].mxu0
    %v1247 = vadd.f32 0.0, %v1246
    %v1248 = vpop.f32.mrb[0].mxu0
    %v1249 = vadd.f32 0.0, %v1248
    %1250 = vmatprep.mubr.bf16.mxu0 %v619
    %1251 = vmatmul.mubr.bf16.gmra.mrb[0].mxu0 %v618
    %v1252 = vpop.f32.mrb[0].mxu0
    %v1253 = vadd.f32 0.0, %v1252
    %v1254 = vpop.f32.mrb[0].mxu0
    %v1255 = vadd.f32 0.0, %v1254
    %v1256 = vpop.f32.mrb[0].mxu0
    %v1257 = vadd.f32 0.0, %v1256
    %v1258 = vpop.f32.mrb[0].mxu0
    %v1259 = vadd.f32 0.0, %v1258
    %1260 = vmatprep.mubr.bf16.mxu0 %v623
    %1261 = vmatmul.mubr.bf16.gmra.mrb[0].mxu0 %v622
    %v1262 = vpop.f32.mrb[0].mxu0
    %v1263 = vadd.f32 0.0, %v1262
    %v1264 = vpop.f32.mrb[0].mxu0
    %v1265 = vadd.f32 0.0, %v1264
    %v1266 = vpop.f32.mrb[0].mxu0
    %v1267 = vadd.f32 0.0, %v1266
    %v1268 = vpop.f32.mrb[0].mxu0
    %v1269 = vadd.f32 0.0, %v1268
    %1270 = vmatprep.mubr.bf16.mxu0 %v627
    %1271 = vmatmul.mubr.bf16.gmra.mrb[0].mxu0 %v626
    %v1272 = vpop.f32.mrb[0].mxu0
    %v1273 = vadd.f32 0.0, %v1272
    %v1274 = vpop.f32.mrb[0].mxu0
    %v1275 = vadd.f32 0.0, %v1274
    %v1276 = vpop.f32.mrb[0].mxu0
    %v1277 = vadd.f32 0.0, %v1276
    %v1278 = vpop.f32.mrb[0].mxu0
    %v1279 = vadd.f32 0.0, %v1278
    %1280 = vmatprep.mubr.bf16.mxu0 %v631
    %1281 = vmatmul.mubr.bf16.gmra.mrb[0].mxu0 %v630
    %v1282 = vpop.f32.mrb[0].mxu0
    %v1283 = vadd.f32 0.0, %v1282
    %v1284 = vpop.f32.mrb[0].mxu0
    %v1285 = vadd.f32 0.0, %v1284
    %v1286 = vpop.f32.mrb[0].mxu0
    %v1287 = vadd.f32 0.0, %v1286
    %v1288 = vpop.f32.mrb[0].mxu0
    %v1289 = vadd.f32 0.0, %v1288
    %1290 = vmatprep.mubr.bf16.mxu0 %v635
    %1291 = vmatmul.mubr.bf16.gmra.mrb[0].mxu0 %v634
    %v1292 = vpop.f32.mrb[0].mxu0
    %v1293 = vadd.f32 0.0, %v1292
    %v1294 = vpop.f32.mrb[0].mxu0
    %v1295 = vadd.f32 0.0, %v1294
    %v1296 = vpop.f32.mrb[0].mxu0
    %v1297 = vadd.f32 0.0, %v1296
    %v1298 = vpop.f32.mrb[0].mxu0
    %v1299 = vadd.f32 0.0, %v1298
    %1300 = vmatprep.mubr.bf16.mxu0 %v639
    %1301 = vmatmul.mubr.bf16.gmra.mrb[0].mxu0 %v638
    %v1302 = vpop.f32.mrb[0].mxu0
    %v1303 = vadd.f32 0.0, %v1302
    %v1304 = vpop.f32.mrb[0].mxu0
    %v1305 = vadd.f32 0.0, %v1304
    %v1306 = vpop.f32.mrb[0].mxu0
    %v1307 = vadd.f32 0.0, %v1306
    %v1308 = vpop.f32.mrb[0].mxu0
    %v1309 = vadd.f32 0.0, %v1308
    %1310 = vmatprep.mubr.bf16.mxu0 %v643
    %1311 = vmatmul.mubr.bf16.gmra.mrb[0].mxu0 %v642
    %v1312 = vpop.f32.mrb[0].mxu0
    %v1313 = vadd.f32 0.0, %v1312
    %v1314 = vpop.f32.mrb[0].mxu0
    %v1315 = vadd.f32 0.0, %v1314
    %v1316 = vpop.f32.mrb[0].mxu0
    %v1317 = vadd.f32 0.0, %v1316
    %v1318 = vpop.f32.mrb[0].mxu0
    %v1319 = vadd.f32 0.0, %v1318
    %1320 = vmatprep.mubr.bf16.mxu0 %v647
    %1321 = vmatmul.mubr.bf16.gmra.mrb[0].mxu0 %v646
    %v1322 = vpop.f32.mrb[0].mxu0
    %v1323 = vadd.f32 0.0, %v1322
    %v1324 = vpop.f32.mrb[0].mxu0
    %v1325 = vadd.f32 0.0, %v1324
    %v1326 = vpop.f32.mrb[0].mxu0
    %v1327 = vadd.f32 0.0, %v1326
    %v1328 = vpop.f32.mrb[0].mxu0
    %v1329 = vadd.f32 0.0, %v1328
    %1330 = vmatprep.mubr.bf16.mxu0 %v651
    %1331 = vmatmul.mubr.bf16.gmra.mrb[0].mxu0 %v650
    %v1332 = vpop.f32.mrb[0].mxu0
    %v1333 = vadd.f32 0.0, %v1332
    %v1334 = vpop.f32.mrb[0].mxu0
    %v1335 = vadd.f32 0.0, %v1334
    %v1336 = vpop.f32.mrb[0].mxu0
    %v1337 = vadd.f32 0.0, %v1336
    %v1338 = vpop.f32.mrb[0].mxu0
    %v1339 = vadd.f32 0.0, %v1338
    %1340 = vmatprep.mubr.bf16.mxu0 %v655
    %1341 = vmatmul.mubr.bf16.gmra.mrb[0].mxu0 %v654
    %v1342 = vpop.f32.mrb[0].mxu0
    %v1343 = vadd.f32 0.0, %v1342
    %v1344 = vpop.f32.mrb[0].mxu0
    %v1345 = vadd.f32 0.0, %v1344
    %v1346 = vpop.f32.mrb[0].mxu0
    %v1347 = vadd.f32 0.0, %v1346
    %v1348 = vpop.f32.mrb[0].mxu0
    %v1349 = vadd.f32 0.0, %v1348
    %1350 = vmatprep.mubr.bf16.mxu0 %v659
    %1351 = vmatmul.mubr.bf16.gmra.mrb[0].mxu0 %v658
    %v1352 = vpop.f32.mrb[0].mxu0
    %v1353 = vadd.f32 0.0, %v1352
    %v1354 = vpop.f32.mrb[0].mxu0
    %v1355 = vadd.f32 0.0, %v1354
    %v1356 = vpop.f32.mrb[0].mxu0
    %v1357 = vadd.f32 0.0, %v1356
    %v1358 = vpop.f32.mrb[0].mxu0
    %v1359 = vadd.f32 0.0, %v1358
    %1360 = vmatprep.mubr.bf16.mxu0 %v663
    %1361 = vmatmul.mubr.bf16.gmra.mrb[0].mxu0 %v662
    %v1362 = vpop.f32.mrb[0].mxu0
    %v1363 = vadd.f32 0.0, %v1362
    %v1364 = vpop.f32.mrb[0].mxu0
    %v1365 = vadd.f32 0.0, %v1364
    %v1366 = vpop.f32.mrb[0].mxu0
    %v1367 = vadd.f32 0.0, %v1366
    %v1368 = vpop.f32.mrb[0].mxu0
    %v1369 = vadd.f32 0.0, %v1368
    %1370 = vmatprep.mubr.bf16.mxu0 %v667
    %1371 = vmatmul.mubr.bf16.gmra.mrb[0].mxu0 %v666
    %v1372 = vpop.f32.mrb[0].mxu0
    %v1373 = vadd.f32 0.0, %v1372
    %v1374 = vpop.f32.mrb[0].mxu0
    %v1375 = vadd.f32 0.0, %v1374
    %v1376 = vpop.f32.mrb[0].mxu0
    %v1377 = vadd.f32 0.0, %v1376
    %v1378 = vpop.f32.mrb[0].mxu0
    %v1379 = vadd.f32 0.0, %v1378
    %1380 = vmatprep.mubr.bf16.mxu0 %v671
    %1381 = vmatmul.mubr.bf16.gmra.mrb[0].mxu0 %v670
    %v1382 = vpop.f32.mrb[0].mxu0
    %v1383 = vadd.f32 0.0, %v1382
    %v1384 = vpop.f32.mrb[0].mxu0
    %v1385 = vadd.f32 0.0, %v1384
    %v1386 = vpop.f32.mrb[0].mxu0
    %v1387 = vadd.f32 0.0, %v1386
    %v1388 = vpop.f32.mrb[0].mxu0
    %v1389 = vadd.f32 0.0, %v1388
    %1390 = vmatprep.mubr.bf16.mxu0 %v675
    %1391 = vmatmul.mubr.bf16.gmra.mrb[0].mxu0 %v674
    %v1392 = vpop.f32.mrb[0].mxu0
    %v1393 = vadd.f32 0.0, %v1392
    %v1394 = vpop.f32.mrb[0].mxu0
    %v1395 = vadd.f32 0.0, %v1394
    %v1396 = vpop.f32.mrb[0].mxu0
    %v1397 = vadd.f32 0.0, %v1396
    %v1398 = vpop.f32.mrb[0].mxu0
    %v1399 = vadd.f32 0.0, %v1398
    %1400 = vmatprep.mubr.bf16.mxu0 %v679
    %1401 = vmatmul.mubr.bf16.gmra.mrb[0].mxu0 %v678
    %v1402 = vpop.f32.mrb[0].mxu0
    %v1403 = vadd.f32 0.0, %v1402
    %v1404 = vpop.f32.mrb[0].mxu0
    %v1405 = vadd.f32 0.0, %v1404
    %v1406 = vpop.f32.mrb[0].mxu0
    %v1407 = vadd.f32 0.0, %v1406
    %v1408 = vpop.f32.mrb[0].mxu0
    %v1409 = vadd.f32 0.0, %v1408
    %1410 = vmatprep.mubr.bf16.mxu0 %v683
    %1411 = vmatmul.mubr.bf16.gmra.mrb[0].mxu0 %v682
    %v1412 = vpop.f32.mrb[0].mxu0
    %v1413 = vadd.f32 0.0, %v1412
    %v1414 = vpop.f32.mrb[0].mxu0
    %v1415 = vadd.f32 0.0, %v1414
    %v1416 = vpop.f32.mrb[0].mxu0
    %v1417 = vadd.f32 0.0, %v1416
    %v1418 = vpop.f32.mrb[0].mxu0
    %v1419 = vadd.f32 0.0, %v1418
    %1420 = vmatprep.mubr.bf16.mxu0 %v687
    %1421 = vmatmul.mubr.bf16.gmra.mrb[0].mxu0 %v686
    %v1422 = vpop.f32.mrb[0].mxu0
    %v1423 = vadd.f32 0.0, %v1422
    %v1424 = vpop.f32.mrb[0].mxu0
    %v1425 = vadd.f32 0.0, %v1424
    %v1426 = vpop.f32.mrb[0].mxu0
    %v1427 = vadd.f32 0.0, %v1426
    %v1428 = vpop.f32.mrb[0].mxu0
    %v1429 = vadd.f32 0.0, %v1428
    %1430 = vmatprep.mubr.bf16.mxu0 %v691
    %1431 = vmatmul.mubr.bf16.gmra.mrb[0].mxu0 %v690
    %v1432 = vpop.f32.mrb[0].mxu0
    %v1433 = vadd.f32 0.0, %v1432
    %v1434 = vpop.f32.mrb[0].mxu0
    %v1435 = vadd.f32 0.0, %v1434
    %v1436 = vpop.f32.mrb[0].mxu0
    %v1437 = vadd.f32 0.0, %v1436
    %v1438 = vpop.f32.mrb[0].mxu0
    %v1439 = vadd.f32 0.0, %v1438
    %1440 = vmatprep.mubr.bf16.mxu0 %v695
    %1441 = vmatmul.mubr.bf16.gmra.mrb[0].mxu0 %v694
    %v1442 = vpop.f32.mrb[0].mxu0
    %v1443 = vadd.f32 0.0, %v1442
    %v1444 = vpop.f32.mrb[0].mxu0
    %v1445 = vadd.f32 0.0, %v1444
    %v1446 = vpop.f32.mrb[0].mxu0
    %v1447 = vadd.f32 0.0, %v1446
    %v1448 = vpop.f32.mrb[0].mxu0
    %v1449 = vadd.f32 0.0, %v1448
    %1450 = vmatprep.mubr.bf16.mxu0 %v699
    %1451 = vmatmul.mubr.bf16.gmra.mrb[0].mxu0 %v698
    %v1452 = vpop.f32.mrb[0].mxu0
    %v1453 = vadd.f32 0.0, %v1452
    %v1454 = vpop.f32.mrb[0].mxu0
    %v1455 = vadd.f32 0.0, %v1454
    %v1456 = vpop.f32.mrb[0].mxu0
    %v1457 = vadd.f32 0.0, %v1456
    %v1458 = vpop.f32.mrb[0].mxu0
    %v1459 = vadd.f32 0.0, %v1458
    %1460 = vmatprep.mubr.bf16.mxu0 %v703
    %1461 = vmatmul.mubr.bf16.gmra.mrb[0].mxu0 %v702
    %v1462 = vpop.f32.mrb[0].mxu0
    %v1463 = vadd.f32 0.0, %v1462
    %v1464 = vpop.f32.mrb[0].mxu0
    %v1465 = vadd.f32 0.0, %v1464
    %v1466 = vpop.f32.mrb[0].mxu0
    %v1467 = vadd.f32 0.0, %v1466
    %v1468 = vpop.f32.mrb[0].mxu0
    %v1469 = vadd.f32 0.0, %v1468
    %1470 = vmatprep.mubr.bf16.mxu0 %v707
    %1471 = vmatmul.mubr.bf16.gmra.mrb[0].mxu0 %v706
    %v1472 = vpop.f32.mrb[0].mxu0
    %v1473 = vadd.f32 0.0, %v1472
    %v1474 = vpop.f32.mrb[0].mxu0
    %v1475 = vadd.f32 0.0, %v1474
    %v1476 = vpop.f32.mrb[0].mxu0
    %v1477 = vadd.f32 0.0, %v1476
    %v1478 = vpop.f32.mrb[0].mxu0
    %v1479 = vadd.f32 0.0, %v1478
    %1480 = vmatprep.mubr.bf16.mxu0 %v711
    %1481 = vmatmul.mubr.bf16.gmra.mrb[0].mxu0 %v710
    %v1482 = vpop.f32.mrb[0].mxu0
    %v1483 = vadd.f32 0.0, %v1482
    %v1484 = vpop.f32.mrb[0].mxu0
    %v1485 = vadd.f32 0.0, %v1484
    %v1486 = vpop.f32.mrb[0].mxu0
    %v1487 = vadd.f32 0.0, %v1486
    %v1488 = vpop.f32.mrb[0].mxu0
    %v1489 = vadd.f32 0.0, %v1488
    %1490 = vmatprep.mubr.bf16.mxu0 %v715
    %1491 = vmatmul.mubr.bf16.gmra.mrb[0].mxu0 %v714
    %v1492 = vpop.f32.mrb[0].mxu0
    %v1493 = vadd.f32 0.0, %v1492
    %v1494 = vpop.f32.mrb[0].mxu0
    %v1495 = vadd.f32 0.0, %v1494
    %v1496 = vpop.f32.mrb[0].mxu0
    %v1497 = vadd.f32 0.0, %v1496
    %v1498 = vpop.f32.mrb[0].mxu0
    %v1499 = vadd.f32 0.0, %v1498
    %1500 = vmatprep.mubr.bf16.mxu0 %v719
    %1501 = vmatmul.mubr.bf16.gmra.mrb[0].mxu0 %v718
    %v1502 = vpop.f32.mrb[0].mxu0
    %v1503 = vadd.f32 0.0, %v1502
    %v1504 = vpop.f32.mrb[0].mxu0
    %v1505 = vadd.f32 0.0, %v1504
    %v1506 = vpop.f32.mrb[0].mxu0
    %v1507 = vadd.f32 0.0, %v1506
    %v1508 = vpop.f32.mrb[0].mxu0
    %v1509 = vadd.f32 0.0, %v1508
    %1510 = vmatprep.mubr.bf16.mxu0 %v723
    %1511 = vmatmul.mubr.bf16.gmra.mrb[0].mxu0 %v722
    %v1512 = vpop.f32.mrb[0].mxu0
    %v1513 = vadd.f32 0.0, %v1512
    %v1514 = vpop.f32.mrb[0].mxu0
    %v1515 = vadd.f32 0.0, %v1514
    %v1516 = vpop.f32.mrb[0].mxu0
    %v1517 = vadd.f32 0.0, %v1516
    %v1518 = vpop.f32.mrb[0].mxu0
    %v1519 = vadd.f32 0.0, %v1518
    %1520 = vmatprep.mubr.bf16.mxu0 %v727
    %1521 = vmatmul.mubr.bf16.gmra.mrb[0].mxu0 %v726
    %v1522 = vpop.f32.mrb[0].mxu0
    %v1523 = vadd.f32 0.0, %v1522
    %v1524 = vpop.f32.mrb[0].mxu0
    %v1525 = vadd.f32 0.0, %v1524
    %v1526 = vpop.f32.mrb[0].mxu0
    %v1527 = vadd.f32 0.0, %v1526
    %v1528 = vpop.f32.mrb[0].mxu0
    %v1529 = vadd.f32 0.0, %v1528
    %1530 = vdwg.mxu0
    %1531 = vmatprep.subr.bf16.mxu0 %v1083
    %1532 = vmatpush1.bf16.msra.mxu0 %v1082
    %1533 = vmatprep.subr.bf16.mxu0 %v1085
    %1534 = vmatpush1.bf16.msra.mxu0 %v1084
    %1535 = vmatprep.subr.bf16.mxu0 %v1087
    %1536 = vmatpush1.bf16.msra.mxu0 %v1086
    %1537 = vmatprep.subr.bf16.mxu0 %v1089
    %1538 = vmatpush1.bf16.msra.mxu0 %v1088
    %1539 = vmatprep.subr.bf16.mxu0 %v1091
    %1540 = vmatpush1.bf16.msra.mxu0 %v1090
    %1541 = vmatprep.subr.bf16.mxu0 %v1093
    %1542 = vmatpush1.bf16.msra.mxu0 %v1092
    %1543 = vmatprep.subr.bf16.mxu0 %v1095
    %1544 = vmatpush1.bf16.msra.mxu0 %v1094
    %1545 = vmatprep.subr.bf16.mxu0 %v1097
    %1546 = vmatpush1.bf16.msra.mxu0 %v1096
    %1547 = vmatprep.subr.bf16.mxu0 %v1099
    %1548 = vmatpush1.bf16.msra.mxu0 %v1098
    %1549 = vmatprep.subr.bf16.mxu0 %v1101
    %1550 = vmatpush1.bf16.msra.mxu0 %v1100
    %1551 = vmatprep.subr.bf16.mxu0 %v1103
    %1552 = vmatpush1.bf16.msra.mxu0 %v1102
    %1553 = vmatprep.subr.bf16.mxu0 %v1105
    %1554 = vmatpush1.bf16.msra.mxu0 %v1104
    %1555 = vmatprep.subr.bf16.mxu0 %v1107
    %1556 = vmatpush1.bf16.msra.mxu0 %v1106
    %1557 = vmatprep.subr.bf16.mxu0 %v1109
    %1558 = vmatpush1.bf16.msra.mxu0 %v1108
    %1559 = vmatprep.subr.bf16.mxu0 %v1111
    %1560 = vmatpush1.bf16.msra.mxu0 %v1110
    %1561 = vmatprep.subr.bf16.mxu0 %v1113
    %1562 = vmatpush1.bf16.msra.mxu0 %v1112
    %1563 = vmatprep.mubr.bf16.mxu0 %v605
    %1564 = vmatmul.mubr.bf16.gmra.mrb[0].mxu0 %v604
    %v1565 = vpop.f32.mrb[0].mxu0
    %v1566 = vadd.f32 %v1213, %v1565
    %v1567 = vpop.f32.mrb[0].mxu0
    %v1568 = vadd.f32 %v1215, %v1567
    %v1569 = vpop.f32.mrb[0].mxu0
    %v1570 = vadd.f32 %v1217, %v1569
    %v1571 = vpop.f32.mrb[0].mxu0
    %v1572 = vadd.f32 %v1219, %v1571
    %1573 = vmatprep.mubr.bf16.mxu0 %v609
    %1574 = vmatmul.mubr.bf16.gmra.mrb[0].mxu0 %v608
    %v1575 = vpop.f32.mrb[0].mxu0
    %v1576 = vadd.f32 %v1223, %v1575
    %v1577 = vpop.f32.mrb[0].mxu0
    %v1578 = vadd.f32 %v1225, %v1577
    %v1579 = vpop.f32.mrb[0].mxu0
    %v1580 = vadd.f32 %v1227, %v1579
    %v1581 = vpop.f32.mrb[0].mxu0
    %v1582 = vadd.f32 %v1229, %v1581
    %1583 = vmatprep.mubr.bf16.mxu0 %v613
    %1584 = vmatmul.mubr.bf16.gmra.mrb[0].mxu0 %v612
    %v1585 = vpop.f32.mrb[0].mxu0
    %v1586 = vadd.f32 %v1233, %v1585
    %v1587 = vpop.f32.mrb[0].mxu0
    %v1588 = vadd.f32 %v1235, %v1587
    %v1589 = vpop.f32.mrb[0].mxu0
    %v1590 = vadd.f32 %v1237, %v1589
    %v1591 = vpop.f32.mrb[0].mxu0
    %v1592 = vadd.f32 %v1239, %v1591
    %1593 = vmatprep.mubr.bf16.mxu0 %v617
    %1594 = vmatmul.mubr.bf16.gmra.mrb[0].mxu0 %v616
    %v1595 = vpop.f32.mrb[0].mxu0
    %v1596 = vadd.f32 %v1243, %v1595
    %v1597 = vpop.f32.mrb[0].mxu0
    %v1598 = vadd.f32 %v1245, %v1597
    %v1599 = vpop.f32.mrb[0].mxu0
    %v1600 = vadd.f32 %v1247, %v1599
    %v1601 = vpop.f32.mrb[0].mxu0
    %v1602 = vadd.f32 %v1249, %v1601
    %1603 = vmatprep.mubr.bf16.mxu0 %v621
    %1604 = vmatmul.mubr.bf16.gmra.mrb[0].mxu0 %v620
    %v1605 = vpop.f32.mrb[0].mxu0
    %v1606 = vadd.f32 %v1253, %v1605
    %v1607 = vpop.f32.mrb[0].mxu0
    %v1608 = vadd.f32 %v1255, %v1607
    %v1609 = vpop.f32.mrb[0].mxu0
    %v1610 = vadd.f32 %v1257, %v1609
    %v1611 = vpop.f32.mrb[0].mxu0
    %v1612 = vadd.f32 %v1259, %v1611
    %1613 = vmatprep.mubr.bf16.mxu0 %v625
    %1614 = vmatmul.mubr.bf16.gmra.mrb[0].mxu0 %v624
    %v1615 = vpop.f32.mrb[0].mxu0
    %v1616 = vadd.f32 %v1263, %v1615
    %v1617 = vpop.f32.mrb[0].mxu0
    %v1618 = vadd.f32 %v1265, %v1617
    %v1619 = vpop.f32.mrb[0].mxu0
    %v1620 = vadd.f32 %v1267, %v1619
    %v1621 = vpop.f32.mrb[0].mxu0
    %v1622 = vadd.f32 %v1269, %v1621
    %1623 = vmatprep.mubr.bf16.mxu0 %v629
    %1624 = vmatmul.mubr.bf16.gmra.mrb[0].mxu0 %v628
    %v1625 = vpop.f32.mrb[0].mxu0
    %v1626 = vadd.f32 %v1273, %v1625
    %v1627 = vpop.f32.mrb[0].mxu0
    %v1628 = vadd.f32 %v1275, %v1627
    %v1629 = vpop.f32.mrb[0].mxu0
    %v1630 = vadd.f32 %v1277, %v1629
    %v1631 = vpop.f32.mrb[0].mxu0
    %v1632 = vadd.f32 %v1279, %v1631
    %1633 = vmatprep.mubr.bf16.mxu0 %v633
    %1634 = vmatmul.mubr.bf16.gmra.mrb[0].mxu0 %v632
    %v1635 = vpop.f32.mrb[0].mxu0
    %v1636 = vadd.f32 %v1283, %v1635
    %v1637 = vpop.f32.mrb[0].mxu0
    %v1638 = vadd.f32 %v1285, %v1637
    %v1639 = vpop.f32.mrb[0].mxu0
    %v1640 = vadd.f32 %v1287, %v1639
    %v1641 = vpop.f32.mrb[0].mxu0
    %v1642 = vadd.f32 %v1289, %v1641
    %1643 = vmatprep.mubr.bf16.mxu0 %v637
    %1644 = vmatmul.mubr.bf16.gmra.mrb[0].mxu0 %v636
    %v1645 = vpop.f32.mrb[0].mxu0
    %v1646 = vadd.f32 %v1293, %v1645
    %v1647 = vpop.f32.mrb[0].mxu0
    %v1648 = vadd.f32 %v1295, %v1647
    %v1649 = vpop.f32.mrb[0].mxu0
    %v1650 = vadd.f32 %v1297, %v1649
    %v1651 = vpop.f32.mrb[0].mxu0
    %v1652 = vadd.f32 %v1299, %v1651
    %1653 = vmatprep.mubr.bf16.mxu0 %v641
    %1654 = vmatmul.mubr.bf16.gmra.mrb[0].mxu0 %v640
    %v1655 = vpop.f32.mrb[0].mxu0
    %v1656 = vadd.f32 %v1303, %v1655
    %v1657 = vpop.f32.mrb[0].mxu0
    %v1658 = vadd.f32 %v1305, %v1657
    %v1659 = vpop.f32.mrb[0].mxu0
    %v1660 = vadd.f32 %v1307, %v1659
    %v1661 = vpop.f32.mrb[0].mxu0
    %v1662 = vadd.f32 %v1309, %v1661
    %1663 = vmatprep.mubr.bf16.mxu0 %v645
    %1664 = vmatmul.mubr.bf16.gmra.mrb[0].mxu0 %v644
    %v1665 = vpop.f32.mrb[0].mxu0
    %v1666 = vadd.f32 %v1313, %v1665
    %v1667 = vpop.f32.mrb[0].mxu0
    %v1668 = vadd.f32 %v1315, %v1667
    %v1669 = vpop.f32.mrb[0].mxu0
    %v1670 = vadd.f32 %v1317, %v1669
    %v1671 = vpop.f32.mrb[0].mxu0
    %v1672 = vadd.f32 %v1319, %v1671
    %1673 = vmatprep.mubr.bf16.mxu0 %v649
    %1674 = vmatmul.mubr.bf16.gmra.mrb[0].mxu0 %v648
    %v1675 = vpop.f32.mrb[0].mxu0
    %v1676 = vadd.f32 %v1323, %v1675
    %v1677 = vpop.f32.mrb[0].mxu0
    %v1678 = vadd.f32 %v1325, %v1677
    %v1679 = vpop.f32.mrb[0].mxu0
    %v1680 = vadd.f32 %v1327, %v1679
    %v1681 = vpop.f32.mrb[0].mxu0
    %v1682 = vadd.f32 %v1329, %v1681
    %1683 = vmatprep.mubr.bf16.mxu0 %v653
    %1684 = vmatmul.mubr.bf16.gmra.mrb[0].mxu0 %v652
    %v1685 = vpop.f32.mrb[0].mxu0
    %v1686 = vadd.f32 %v1333, %v1685
    %v1687 = vpop.f32.mrb[0].mxu0
    %v1688 = vadd.f32 %v1335, %v1687
    %v1689 = vpop.f32.mrb[0].mxu0
    %v1690 = vadd.f32 %v1337, %v1689
    %v1691 = vpop.f32.mrb[0].mxu0
    %v1692 = vadd.f32 %v1339, %v1691
    %1693 = vmatprep.mubr.bf16.mxu0 %v657
    %1694 = vmatmul.mubr.bf16.gmra.mrb[0].mxu0 %v656
    %v1695 = vpop.f32.mrb[0].mxu0
    %v1696 = vadd.f32 %v1343, %v1695
    %v1697 = vpop.f32.mrb[0].mxu0
    %v1698 = vadd.f32 %v1345, %v1697
    %v1699 = vpop.f32.mrb[0].mxu0
    %v1700 = vadd.f32 %v1347, %v1699
    %v1701 = vpop.f32.mrb[0].mxu0
    %v1702 = vadd.f32 %v1349, %v1701
    %1703 = vmatprep.mubr.bf16.mxu0 %v661
    %1704 = vmatmul.mubr.bf16.gmra.mrb[0].mxu0 %v660
    %v1705 = vpop.f32.mrb[0].mxu0
    %v1706 = vadd.f32 %v1353, %v1705
    %v1707 = vpop.f32.mrb[0].mxu0
    %v1708 = vadd.f32 %v1355, %v1707
    %v1709 = vpop.f32.mrb[0].mxu0
    %v1710 = vadd.f32 %v1357, %v1709
    %v1711 = vpop.f32.mrb[0].mxu0
    %v1712 = vadd.f32 %v1359, %v1711
    %1713 = vmatprep.mubr.bf16.mxu0 %v665
    %1714 = vmatmul.mubr.bf16.gmra.mrb[0].mxu0 %v664
    %v1715 = vpop.f32.mrb[0].mxu0
    %v1716 = vadd.f32 %v1363, %v1715
    %v1717 = vpop.f32.mrb[0].mxu0
    %v1718 = vadd.f32 %v1365, %v1717
    %v1719 = vpop.f32.mrb[0].mxu0
    %v1720 = vadd.f32 %v1367, %v1719
    %v1721 = vpop.f32.mrb[0].mxu0
    %v1722 = vadd.f32 %v1369, %v1721
    %1723 = vmatprep.mubr.bf16.mxu0 %v669
    %1724 = vmatmul.mubr.bf16.gmra.mrb[0].mxu0 %v668
    %v1725 = vpop.f32.mrb[0].mxu0
    %v1726 = vadd.f32 %v1373, %v1725
    %v1727 = vpop.f32.mrb[0].mxu0
    %v1728 = vadd.f32 %v1375, %v1727
    %v1729 = vpop.f32.mrb[0].mxu0
    %v1730 = vadd.f32 %v1377, %v1729
    %v1731 = vpop.f32.mrb[0].mxu0
    %v1732 = vadd.f32 %v1379, %v1731
    %1733 = vmatprep.mubr.bf16.mxu0 %v673
    %1734 = vmatmul.mubr.bf16.gmra.mrb[0].mxu0 %v672
    %v1735 = vpop.f32.mrb[0].mxu0
    %v1736 = vadd.f32 %v1383, %v1735
    %v1737 = vpop.f32.mrb[0].mxu0
    %v1738 = vadd.f32 %v1385, %v1737
    %v1739 = vpop.f32.mrb[0].mxu0
    %v1740 = vadd.f32 %v1387, %v1739
    %v1741 = vpop.f32.mrb[0].mxu0
    %v1742 = vadd.f32 %v1389, %v1741
    %1743 = vmatprep.mubr.bf16.mxu0 %v677
    %1744 = vmatmul.mubr.bf16.gmra.mrb[0].mxu0 %v676
    %v1745 = vpop.f32.mrb[0].mxu0
    %v1746 = vadd.f32 %v1393, %v1745
    %v1747 = vpop.f32.mrb[0].mxu0
    %v1748 = vadd.f32 %v1395, %v1747
    %v1749 = vpop.f32.mrb[0].mxu0
    %v1750 = vadd.f32 %v1397, %v1749
    %v1751 = vpop.f32.mrb[0].mxu0
    %v1752 = vadd.f32 %v1399, %v1751
    %1753 = vmatprep.mubr.bf16.mxu0 %v681
    %1754 = vmatmul.mubr.bf16.gmra.mrb[0].mxu0 %v680
    %v1755 = vpop.f32.mrb[0].mxu0
    %v1756 = vadd.f32 %v1403, %v1755
    %v1757 = vpop.f32.mrb[0].mxu0
    %v1758 = vadd.f32 %v1405, %v1757
    %v1759 = vpop.f32.mrb[0].mxu0
    %v1760 = vadd.f32 %v1407, %v1759
    %v1761 = vpop.f32.mrb[0].mxu0
    %v1762 = vadd.f32 %v1409, %v1761
    %1763 = vmatprep.mubr.bf16.mxu0 %v685
    %1764 = vmatmul.mubr.bf16.gmra.mrb[0].mxu0 %v684
    %v1765 = vpop.f32.mrb[0].mxu0
    %v1766 = vadd.f32 %v1413, %v1765
    %v1767 = vpop.f32.mrb[0].mxu0
    %v1768 = vadd.f32 %v1415, %v1767
    %v1769 = vpop.f32.mrb[0].mxu0
    %v1770 = vadd.f32 %v1417, %v1769
    %v1771 = vpop.f32.mrb[0].mxu0
    %v1772 = vadd.f32 %v1419, %v1771
    %1773 = vmatprep.mubr.bf16.mxu0 %v689
    %1774 = vmatmul.mubr.bf16.gmra.mrb[0].mxu0 %v688
    %v1775 = vpop.f32.mrb[0].mxu0
    %v1776 = vadd.f32 %v1423, %v1775
    %v1777 = vpop.f32.mrb[0].mxu0
    %v1778 = vadd.f32 %v1425, %v1777
    %v1779 = vpop.f32.mrb[0].mxu0
    %v1780 = vadd.f32 %v1427, %v1779
    %v1781 = vpop.f32.mrb[0].mxu0
    %v1782 = vadd.f32 %v1429, %v1781
    %1783 = vmatprep.mubr.bf16.mxu0 %v693
    %1784 = vmatmul.mubr.bf16.gmra.mrb[0].mxu0 %v692
    %v1785 = vpop.f32.mrb[0].mxu0
    %v1786 = vadd.f32 %v1433, %v1785
    %v1787 = vpop.f32.mrb[0].mxu0
    %v1788 = vadd.f32 %v1435, %v1787
    %v1789 = vpop.f32.mrb[0].mxu0
    %v1790 = vadd.f32 %v1437, %v1789
    %v1791 = vpop.f32.mrb[0].mxu0
    %v1792 = vadd.f32 %v1439, %v1791
    %1793 = vmatprep.mubr.bf16.mxu0 %v697
    %1794 = vmatmul.mubr.bf16.gmra.mrb[0].mxu0 %v696
    %v1795 = vpop.f32.mrb[0].mxu0
    %v1796 = vadd.f32 %v1443, %v1795
    %v1797 = vpop.f32.mrb[0].mxu0
    %v1798 = vadd.f32 %v1445, %v1797
    %v1799 = vpop.f32.mrb[0].mxu0
    %v1800 = vadd.f32 %v1447, %v1799
    %v1801 = vpop.f32.mrb[0].mxu0
    %v1802 = vadd.f32 %v1449, %v1801
    %1803 = vmatprep.mubr.bf16.mxu0 %v701
    %1804 = vmatmul.mubr.bf16.gmra.mrb[0].mxu0 %v700
    %v1805 = vpop.f32.mrb[0].mxu0
    %v1806 = vadd.f32 %v1453, %v1805
    %v1807 = vpop.f32.mrb[0].mxu0
    %v1808 = vadd.f32 %v1455, %v1807
    %v1809 = vpop.f32.mrb[0].mxu0
    %v1810 = vadd.f32 %v1457, %v1809
    %v1811 = vpop.f32.mrb[0].mxu0
    %v1812 = vadd.f32 %v1459, %v1811
    %1813 = vmatprep.mubr.bf16.mxu0 %v705
    %1814 = vmatmul.mubr.bf16.gmra.mrb[0].mxu0 %v704
    %v1815 = vpop.f32.mrb[0].mxu0
    %v1816 = vadd.f32 %v1463, %v1815
    %v1817 = vpop.f32.mrb[0].mxu0
    %v1818 = vadd.f32 %v1465, %v1817
    %v1819 = vpop.f32.mrb[0].mxu0
    %v1820 = vadd.f32 %v1467, %v1819
    %v1821 = vpop.f32.mrb[0].mxu0
    %v1822 = vadd.f32 %v1469, %v1821
    %1823 = vmatprep.mubr.bf16.mxu0 %v709
    %1824 = vmatmul.mubr.bf16.gmra.mrb[0].mxu0 %v708
    %v1825 = vpop.f32.mrb[0].mxu0
    %v1826 = vadd.f32 %v1473, %v1825
    %v1827 = vpop.f32.mrb[0].mxu0
    %v1828 = vadd.f32 %v1475, %v1827
    %v1829 = vpop.f32.mrb[0].mxu0
    %v1830 = vadd.f32 %v1477, %v1829
    %v1831 = vpop.f32.mrb[0].mxu0
    %v1832 = vadd.f32 %v1479, %v1831
    %1833 = vmatprep.mubr.bf16.mxu0 %v713
    %1834 = vmatmul.mubr.bf16.gmra.mrb[0].mxu0 %v712
    %v1835 = vpop.f32.mrb[0].mxu0
    %v1836 = vadd.f32 %v1483, %v1835
    %v1837 = vpop.f32.mrb[0].mxu0
    %v1838 = vadd.f32 %v1485, %v1837
    %v1839 = vpop.f32.mrb[0].mxu0
    %v1840 = vadd.f32 %v1487, %v1839
    %v1841 = vpop.f32.mrb[0].mxu0
    %v1842 = vadd.f32 %v1489, %v1841
    %1843 = vmatprep.mubr.bf16.mxu0 %v717
    %1844 = vmatmul.mubr.bf16.gmra.mrb[0].mxu0 %v716
    %v1845 = vpop.f32.mrb[0].mxu0
    %v1846 = vadd.f32 %v1493, %v1845
    %v1847 = vpop.f32.mrb[0].mxu0
    %v1848 = vadd.f32 %v1495, %v1847
    %v1849 = vpop.f32.mrb[0].mxu0
    %v1850 = vadd.f32 %v1497, %v1849
    %v1851 = vpop.f32.mrb[0].mxu0
    %v1852 = vadd.f32 %v1499, %v1851
    %1853 = vmatprep.mubr.bf16.mxu0 %v721
    %1854 = vmatmul.mubr.bf16.gmra.mrb[0].mxu0 %v720
    %v1855 = vpop.f32.mrb[0].mxu0
    %v1856 = vadd.f32 %v1503, %v1855
    %v1857 = vpop.f32.mrb[0].mxu0
    %v1858 = vadd.f32 %v1505, %v1857
    %v1859 = vpop.f32.mrb[0].mxu0
    %v1860 = vadd.f32 %v1507, %v1859
    %v1861 = vpop.f32.mrb[0].mxu0
    %v1862 = vadd.f32 %v1509, %v1861
    %1863 = vmatprep.mubr.bf16.mxu0 %v725
    %1864 = vmatmul.mubr.bf16.gmra.mrb[0].mxu0 %v724
    %v1865 = vpop.f32.mrb[0].mxu0
    %v1866 = vadd.f32 %v1513, %v1865
    %v1867 = vpop.f32.mrb[0].mxu0
    %v1868 = vadd.f32 %v1515, %v1867
    %v1869 = vpop.f32.mrb[0].mxu0
    %v1870 = vadd.f32 %v1517, %v1869
    %v1871 = vpop.f32.mrb[0].mxu0
    %v1872 = vadd.f32 %v1519, %v1871
    %1873 = vmatprep.mubr.bf16.mxu0 %v729
    %1874 = vmatmul.mubr.bf16.gmra.mrb[0].mxu0 %v728
    %v1875 = vpop.f32.mrb[0].mxu0
    %v1876 = vadd.f32 %v1523, %v1875
    %v1877 = vpop.f32.mrb[0].mxu0
    %v1878 = vadd.f32 %v1525, %v1877
    %v1879 = vpop.f32.mrb[0].mxu0
    %v1880 = vadd.f32 %v1527, %v1879
    %v1881 = vpop.f32.mrb[0].mxu0
    %v1882 = vadd.f32 %v1529, %v1881
    %1883 = vdwg.mxu0
    %v1884 = vmul.f32 %v1566, 0.125
    %v1885 = vmul.f32 %v1570, 0.125
    %v1886 = vmul.f32 %v1576, 0.125
    %v1887 = vmul.f32 %v1580, 0.125
    %v1888 = vmul.f32 %v1586, 0.125
    %v1889 = vmul.f32 %v1590, 0.125
    %v1890 = vmul.f32 %v1596, 0.125
    %v1891 = vmul.f32 %v1600, 0.125
    %v1892 = vmul.f32 %v1606, 0.125
    %v1893 = vmul.f32 %v1610, 0.125
    %v1894 = vmul.f32 %v1616, 0.125
    %v1895 = vmul.f32 %v1620, 0.125
    %v1896 = vmul.f32 %v1626, 0.125
    %v1897 = vmul.f32 %v1630, 0.125
    %v1898 = vmul.f32 %v1636, 0.125
    %v1899 = vmul.f32 %v1640, 0.125
    %v1900 = vmul.f32 %v1646, 0.125
    %v1901 = vmul.f32 %v1650, 0.125
    %v1902 = vmul.f32 %v1656, 0.125
    %v1903 = vmul.f32 %v1660, 0.125
    %v1904 = vmul.f32 %v1666, 0.125
    %v1905 = vmul.f32 %v1670, 0.125
    %v1906 = vmul.f32 %v1676, 0.125
    %v1907 = vmul.f32 %v1680, 0.125
    %v1908 = vmul.f32 %v1686, 0.125
    %v1909 = vmul.f32 %v1690, 0.125
    %v1910 = vmul.f32 %v1696, 0.125
    %v1911 = vmul.f32 %v1700, 0.125
    %v1912 = vmul.f32 %v1706, 0.125
    %v1913 = vmul.f32 %v1710, 0.125
    %v1914 = vmul.f32 %v1716, 0.125
    %v1915 = vmul.f32 %v1720, 0.125
    %v1916 = vmul.f32 %v1726, 0.125
    %v1917 = vmul.f32 %v1730, 0.125
    %v1918 = vmul.f32 %v1736, 0.125
    %v1919 = vmul.f32 %v1740, 0.125
    %v1920 = vmul.f32 %v1746, 0.125
    %v1921 = vmul.f32 %v1750, 0.125
    %v1922 = vmul.f32 %v1756, 0.125
    %v1923 = vmul.f32 %v1760, 0.125
    %v1924 = vmul.f32 %v1766, 0.125
    %v1925 = vmul.f32 %v1770, 0.125
    %v1926 = vmul.f32 %v1776, 0.125
    %v1927 = vmul.f32 %v1780, 0.125
    %v1928 = vmul.f32 %v1786, 0.125
    %v1929 = vmul.f32 %v1790, 0.125
    %v1930 = vmul.f32 %v1796, 0.125
    %v1931 = vmul.f32 %v1800, 0.125
    %v1932 = vmul.f32 %v1806, 0.125
    %v1933 = vmul.f32 %v1810, 0.125
    %v1934 = vmul.f32 %v1816, 0.125
    %v1935 = vmul.f32 %v1820, 0.125
    %v1936 = vmul.f32 %v1826, 0.125
    %v1937 = vmul.f32 %v1830, 0.125
    %v1938 = vmul.f32 %v1836, 0.125
    %v1939 = vmul.f32 %v1840, 0.125
    %v1940 = vmul.f32 %v1846, 0.125
    %v1941 = vmul.f32 %v1850, 0.125
    %v1942 = vmul.f32 %v1856, 0.125
    %v1943 = vmul.f32 %v1860, 0.125
    %v1944 = vmul.f32 %v1866, 0.125
    %v1945 = vmul.f32 %v1870, 0.125
    %v1946 = vmul.f32 %v1876, 0.125
    %v1947 = vmul.f32 %v1880, 0.125
    %v1948 = vpack.c.bf16 %v1885, %v1884
    %v1949 = vpack.c.bf16 %v1887, %v1886
    %v1950 = vpack.c.bf16 %v1889, %v1888
    %v1951 = vpack.c.bf16 %v1891, %v1890
    %v1952 = vpack.c.bf16 %v1893, %v1892
    %v1953 = vpack.c.bf16 %v1895, %v1894
    %v1954 = vpack.c.bf16 %v1897, %v1896
    %v1955 = vpack.c.bf16 %v1899, %v1898
    %v1956 = vpack.c.bf16 %v1901, %v1900
    %v1957 = vpack.c.bf16 %v1903, %v1902
    %v1958 = vpack.c.bf16 %v1905, %v1904
    %v1959 = vpack.c.bf16 %v1907, %v1906
    %v1960 = vpack.c.bf16 %v1909, %v1908
    %v1961 = vpack.c.bf16 %v1911, %v1910
    %v1962 = vpack.c.bf16 %v1913, %v1912
    %v1963 = vpack.c.bf16 %v1915, %v1914
    %v1964 = vpack.c.bf16 %v1917, %v1916
    %v1965 = vpack.c.bf16 %v1919, %v1918
    %v1966 = vpack.c.bf16 %v1921, %v1920
    %v1967 = vpack.c.bf16 %v1923, %v1922
    %v1968 = vpack.c.bf16 %v1925, %v1924
    %v1969 = vpack.c.bf16 %v1927, %v1926
    %v1970 = vpack.c.bf16 %v1929, %v1928
    %v1971 = vpack.c.bf16 %v1931, %v1930
    %v1972 = vpack.c.bf16 %v1933, %v1932
    %v1973 = vpack.c.bf16 %v1935, %v1934
    %v1974 = vpack.c.bf16 %v1937, %v1936
    %v1975 = vpack.c.bf16 %v1939, %v1938
    %v1976 = vpack.c.bf16 %v1941, %v1940
    %v1977 = vpack.c.bf16 %v1943, %v1942
    %v1978 = vpack.c.bf16 %v1945, %v1944
    %v1979 = vpack.c.bf16 %v1947, %v1946
    %v1980 = vpack.c.bf16 %v1570, %v1566
    %v1981 = vpack.c.bf16 %v1580, %v1576
    %v1982 = vpack.c.bf16 %v1590, %v1586
    %v1983 = vpack.c.bf16 %v1600, %v1596
    %v1984 = vpack.c.bf16 %v1610, %v1606
    %v1985 = vpack.c.bf16 %v1620, %v1616
    %v1986 = vpack.c.bf16 %v1630, %v1626
    %v1987 = vpack.c.bf16 %v1640, %v1636
    %v1988 = vpack.c.bf16 %v1650, %v1646
    %v1989 = vpack.c.bf16 %v1660, %v1656
    %v1990 = vpack.c.bf16 %v1670, %v1666
    %v1991 = vpack.c.bf16 %v1680, %v1676
    %v1992 = vpack.c.bf16 %v1690, %v1686
    %v1993 = vpack.c.bf16 %v1700, %v1696
    %v1994 = vpack.c.bf16 %v1710, %v1706
    %v1995 = vpack.c.bf16 %v1720, %v1716
    %v1996 = vpack.c.bf16 %v1730, %v1726
    %v1997 = vpack.c.bf16 %v1740, %v1736
    %v1998 = vpack.c.bf16 %v1750, %v1746
    %v1999 = vpack.c.bf16 %v1760, %v1756
    %v2000 = vpack.c.bf16 %v1770, %v1766
    %v2001 = vpack.c.bf16 %v1780, %v1776
    %v2002 = vpack.c.bf16 %v1790, %v1786
    %v2003 = vpack.c.bf16 %v1800, %v1796
    %v2004 = vpack.c.bf16 %v1810, %v1806
    %v2005 = vpack.c.bf16 %v1820, %v1816
    %v2006 = vpack.c.bf16 %v1830, %v1826
    %v2007 = vpack.c.bf16 %v1840, %v1836
    %v2008 = vpack.c.bf16 %v1850, %v1846
    %v2009 = vpack.c.bf16 %v1860, %v1856
    %v2010 = vpack.c.bf16 %v1870, %v1866
    %v2011 = vpack.c.bf16 %v1880, %v1876
    %v2012 = vpack.c.bf16 %v1572, %v1568
    %v2013 = vpack.c.bf16 %v1582, %v1578
    %v2014 = vpack.c.bf16 %v1592, %v1588
    %v2015 = vpack.c.bf16 %v1602, %v1598
    %v2016 = vpack.c.bf16 %v1612, %v1608
    %v2017 = vpack.c.bf16 %v1622, %v1618
    %v2018 = vpack.c.bf16 %v1632, %v1628
    %v2019 = vpack.c.bf16 %v1642, %v1638
    %v2020 = vpack.c.bf16 %v1652, %v1648
    %v2021 = vpack.c.bf16 %v1662, %v1658
    %v2022 = vpack.c.bf16 %v1672, %v1668
    %v2023 = vpack.c.bf16 %v1682, %v1678
    %v2024 = vpack.c.bf16 %v1692, %v1688
    %v2025 = vpack.c.bf16 %v1702, %v1698
    %v2026 = vpack.c.bf16 %v1712, %v1708
    %v2027 = vpack.c.bf16 %v1722, %v1718
    %v2028 = vpack.c.bf16 %v1732, %v1728
    %v2029 = vpack.c.bf16 %v1742, %v1738
    %v2030 = vpack.c.bf16 %v1752, %v1748
    %v2031 = vpack.c.bf16 %v1762, %v1758
    %v2032 = vpack.c.bf16 %v1772, %v1768
    %v2033 = vpack.c.bf16 %v1782, %v1778
    %v2034 = vpack.c.bf16 %v1792, %v1788
    %v2035 = vpack.c.bf16 %v1802, %v1798
    %v2036 = vpack.c.bf16 %v1812, %v1808
    %v2037 = vpack.c.bf16 %v1822, %v1818
    %v2038 = vpack.c.bf16 %v1832, %v1828
    %v2039 = vpack.c.bf16 %v1842, %v1838
    %v2040 = vpack.c.bf16 %v1852, %v1848
    %v2041 = vpack.c.bf16 %v1862, %v1858
    %v2042 = vpack.c.bf16 %v1872, %v1868
    %v2043 = vpack.c.bf16 %v1882, %v1878
    %2052 = vrot.lane.b32.xlu0 %v1980, 64
    %v2053 = vpop.permute.xlu0 %2052
    %2054 = vrot.lane.b32.xlu0 %v1981, 64
    %v2055 = vpop.permute.xlu0 %2054
    %2056 = vrot.lane.b32.xlu0 %v1982, 64
    %v2057 = vpop.permute.xlu0 %2056
    %2058 = vrot.lane.b32.xlu0 %v1983, 64
    %v2059 = vpop.permute.xlu0 %2058
    %2060 = vrot.lane.b32.xlu0 %v1984, 64
    %v2061 = vpop.permute.xlu0 %2060
    %2062 = vrot.lane.b32.xlu0 %v1985, 64
    %v2063 = vpop.permute.xlu0 %2062
    %2064 = vrot.lane.b32.xlu0 %v1986, 64
    %v2065 = vpop.permute.xlu0 %2064
    %2066 = vrot.lane.b32.xlu0 %v1987, 64
    %v2067 = vpop.permute.xlu0 %2066
    %vm2068 = vcmask 523264
    %v2070 = vsel %vm2068, %v1948, 0
    %v2073 = vsel %vm2068, %v1949, 0
    %v2076 = vsel %vm2068, %v1950, 0
    %v2079 = vsel %vm2068, %v1951, 0
    %v2082 = vsel %vm2068, %v1952, 0
    %v2085 = vsel %vm2068, %v1953, 0
    %v2088 = vsel %vm2068, %v1954, 0
    %v2091 = vsel %vm2068, %v1955, 0
    %v2094 = vsel %vm2068, %v2053, 0
    %v2097 = vsel %vm2068, %v2055, 0
    %v2100 = vsel %vm2068, %v2057, 0
    %v2103 = vsel %vm2068, %v2059, 0
    %v2106 = vsel %vm2068, %v2061, 0
    %v2109 = vsel %vm2068, %v2063, 0
    %v2112 = vsel %vm2068, %v2065, 0
    %v2115 = vsel %vm2068, %v2067, 0
    %2117 = vmatprep.subr.bf16.mxu0 0
    %2118 = vmatpush1.bf16.xpose.msra.mxu0 %v2094
    %2119 = vmatprep.subr.bf16.mxu0 0
    %2120 = vmatpush1.bf16.xpose.msra.mxu0 %v2097
    %2121 = vmatprep.subr.bf16.mxu0 0
    %2122 = vmatpush1.bf16.xpose.msra.mxu0 %v2100
    %2123 = vmatprep.subr.bf16.mxu0 0
    %2124 = vmatpush1.bf16.xpose.msra.mxu0 %v2103
    %2125 = vmatprep.subr.bf16.mxu0 0
    %2126 = vmatpush1.bf16.xpose.msra.mxu0 %v2106
    %2127 = vmatprep.subr.bf16.mxu0 0
    %2128 = vmatpush1.bf16.xpose.msra.mxu0 %v2109
    %2129 = vmatprep.subr.bf16.mxu0 0
    %2130 = vmatpush1.bf16.xpose.msra.mxu0 %v2112
    %2131 = vmatprep.subr.bf16.mxu0 0
    %2132 = vmatpush1.bf16.xpose.msra.mxu0 %v2115
    %2133 = vmatprep.subr.bf16.mxu0 0
    %2134 = vmatpush1.bf16.xpose.msra.mxu0 0
    %2135 = vmatprep.subr.bf16.mxu0 0
    %2136 = vmatpush1.bf16.xpose.msra.mxu0 0
    %2137 = vmatprep.subr.bf16.mxu0 0
    %2138 = vmatpush1.bf16.xpose.msra.mxu0 0
    %2139 = vmatprep.subr.bf16.mxu0 0
    %2140 = vmatpush1.bf16.xpose.msra.mxu0 0
    %2141 = vmatprep.subr.bf16.mxu0 0
    %2142 = vmatpush1.bf16.xpose.msra.mxu0 0
    %2143 = vmatprep.subr.bf16.mxu0 0
    %2144 = vmatpush1.bf16.xpose.msra.mxu0 0
    %2145 = vmatprep.subr.bf16.mxu0 0
    %2146 = vmatpush1.bf16.xpose.msra.mxu0 0
    %2147 = vmatprep.subr.bf16.mxu0 0
    %2148 = vmatpush1.bf16.xpose.msra.mxu0 0
    %2149 = vmatprep.mubr.bf16.mxu0 0
    %2150 = vmatmul.mubr.bf16.gmra.mrb[0].mxu0 %v2070
    %v2151 = vpop.f32.mrb[0].mxu0
    %v2152 = vadd.f32 0.0, %v2151
    %v2153 = vpop.f32.mrb[0].mxu0
    %v2154 = vpop.f32.mrb[0].mxu0
    %v2155 = vadd.f32 0.0, %v2154
    %v2156 = vpop.f32.mrb[0].mxu0
    %2157 = vmatprep.mubr.bf16.mxu0 0
    %2158 = vmatmul.mubr.bf16.gmra.mrb[0].mxu0 %v2073
    %v2159 = vpop.f32.mrb[0].mxu0
    %v2160 = vadd.f32 0.0, %v2159
    %v2161 = vpop.f32.mrb[0].mxu0
    %v2162 = vpop.f32.mrb[0].mxu0
    %v2163 = vadd.f32 0.0, %v2162
    %v2164 = vpop.f32.mrb[0].mxu0
    %2165 = vmatprep.mubr.bf16.mxu0 0
    %2166 = vmatmul.mubr.bf16.gmra.mrb[0].mxu0 %v2076
    %v2167 = vpop.f32.mrb[0].mxu0
    %v2168 = vadd.f32 0.0, %v2167
    %v2169 = vpop.f32.mrb[0].mxu0
    %v2170 = vpop.f32.mrb[0].mxu0
    %v2171 = vadd.f32 0.0, %v2170
    %v2172 = vpop.f32.mrb[0].mxu0
    %2173 = vmatprep.mubr.bf16.mxu0 0
    %2174 = vmatmul.mubr.bf16.gmra.mrb[0].mxu0 %v2079
    %v2175 = vpop.f32.mrb[0].mxu0
    %v2176 = vadd.f32 0.0, %v2175
    %v2177 = vpop.f32.mrb[0].mxu0
    %v2178 = vpop.f32.mrb[0].mxu0
    %v2179 = vadd.f32 0.0, %v2178
    %v2180 = vpop.f32.mrb[0].mxu0
    %2181 = vmatprep.mubr.bf16.mxu0 0
    %2182 = vmatmul.mubr.bf16.gmra.mrb[0].mxu0 %v2082
    %v2183 = vpop.f32.mrb[0].mxu0
    %v2184 = vadd.f32 0.0, %v2183
    %v2185 = vpop.f32.mrb[0].mxu0
    %v2186 = vpop.f32.mrb[0].mxu0
    %v2187 = vadd.f32 0.0, %v2186
    %v2188 = vpop.f32.mrb[0].mxu0
    %2189 = vmatprep.mubr.bf16.mxu0 0
    %2190 = vmatmul.mubr.bf16.gmra.mrb[0].mxu0 %v2085
    %v2191 = vpop.f32.mrb[0].mxu0
    %v2192 = vadd.f32 0.0, %v2191
    %v2193 = vpop.f32.mrb[0].mxu0
    %v2194 = vpop.f32.mrb[0].mxu0
    %v2195 = vadd.f32 0.0, %v2194
    %v2196 = vpop.f32.mrb[0].mxu0
    %2197 = vmatprep.mubr.bf16.mxu0 0
    %2198 = vmatmul.mubr.bf16.gmra.mrb[0].mxu0 %v2088
    %v2199 = vpop.f32.mrb[0].mxu0
    %v2200 = vadd.f32 0.0, %v2199
    %v2201 = vpop.f32.mrb[0].mxu0
    %v2202 = vpop.f32.mrb[0].mxu0
    %v2203 = vadd.f32 0.0, %v2202
    %v2204 = vpop.f32.mrb[0].mxu0
    %2205 = vmatprep.mubr.bf16.mxu0 0
    %2206 = vmatmul.mubr.bf16.gmra.mrb[0].mxu0 %v2091
    %v2207 = vpop.f32.mrb[0].mxu0
    %v2208 = vadd.f32 0.0, %v2207
    %v2209 = vpop.f32.mrb[0].mxu0
    %v2210 = vpop.f32.mrb[0].mxu0
    %v2211 = vadd.f32 0.0, %v2210
    %v2212 = vpop.f32.mrb[0].mxu0
    %2213 = vdwg.mxu0
    %2222 = vrot.lane.b32.xlu0 %v1988, 64
    %v2223 = vpop.permute.xlu0 %2222
    %2224 = vrot.lane.b32.xlu0 %v1989, 64
    %v2225 = vpop.permute.xlu0 %2224
    %2226 = vrot.lane.b32.xlu0 %v1990, 64
    %v2227 = vpop.permute.xlu0 %2226
    %2228 = vrot.lane.b32.xlu0 %v1991, 64
    %v2229 = vpop.permute.xlu0 %2228
    %2230 = vrot.lane.b32.xlu0 %v1992, 64
    %v2231 = vpop.permute.xlu0 %2230
    %2232 = vrot.lane.b32.xlu0 %v1993, 64
    %v2233 = vpop.permute.xlu0 %2232
    %2234 = vrot.lane.b32.xlu0 %v1994, 64
    %v2235 = vpop.permute.xlu0 %2234
    %2236 = vrot.lane.b32.xlu0 %v1995, 64
    %v2237 = vpop.permute.xlu0 %2236
    %v2239 = vsel %vm2068, %v1956, 0
    %v2242 = vsel %vm2068, %v1957, 0
    %v2245 = vsel %vm2068, %v1958, 0
    %v2248 = vsel %vm2068, %v1959, 0
    %v2251 = vsel %vm2068, %v1960, 0
    %v2254 = vsel %vm2068, %v1961, 0
    %v2257 = vsel %vm2068, %v1962, 0
    %v2260 = vsel %vm2068, %v1963, 0
    %v2263 = vsel %vm2068, %v2223, 0
    %v2266 = vsel %vm2068, %v2225, 0
    %v2269 = vsel %vm2068, %v2227, 0
    %v2272 = vsel %vm2068, %v2229, 0
    %v2275 = vsel %vm2068, %v2231, 0
    %v2278 = vsel %vm2068, %v2233, 0
    %v2281 = vsel %vm2068, %v2235, 0
    %v2284 = vsel %vm2068, %v2237, 0
    %2286 = vmatprep.subr.bf16.mxu0 0
    %2287 = vmatpush1.bf16.xpose.msra.mxu0 %v2263
    %2288 = vmatprep.subr.bf16.mxu0 0
    %2289 = vmatpush1.bf16.xpose.msra.mxu0 %v2266
    %2290 = vmatprep.subr.bf16.mxu0 0
    %2291 = vmatpush1.bf16.xpose.msra.mxu0 %v2269
    %2292 = vmatprep.subr.bf16.mxu0 0
    %2293 = vmatpush1.bf16.xpose.msra.mxu0 %v2272
    %2294 = vmatprep.subr.bf16.mxu0 0
    %2295 = vmatpush1.bf16.xpose.msra.mxu0 %v2275
    %2296 = vmatprep.subr.bf16.mxu0 0
    %2297 = vmatpush1.bf16.xpose.msra.mxu0 %v2278
    %2298 = vmatprep.subr.bf16.mxu0 0
    %2299 = vmatpush1.bf16.xpose.msra.mxu0 %v2281
    %2300 = vmatprep.subr.bf16.mxu0 0
    %2301 = vmatpush1.bf16.xpose.msra.mxu0 %v2284
    %2302 = vmatprep.subr.bf16.mxu0 0
    %2303 = vmatpush1.bf16.xpose.msra.mxu0 0
    %2304 = vmatprep.subr.bf16.mxu0 0
    %2305 = vmatpush1.bf16.xpose.msra.mxu0 0
    %2306 = vmatprep.subr.bf16.mxu0 0
    %2307 = vmatpush1.bf16.xpose.msra.mxu0 0
    %2308 = vmatprep.subr.bf16.mxu0 0
    %2309 = vmatpush1.bf16.xpose.msra.mxu0 0
    %2310 = vmatprep.subr.bf16.mxu0 0
    %2311 = vmatpush1.bf16.xpose.msra.mxu0 0
    %2312 = vmatprep.subr.bf16.mxu0 0
    %2313 = vmatpush1.bf16.xpose.msra.mxu0 0
    %2314 = vmatprep.subr.bf16.mxu0 0
    %2315 = vmatpush1.bf16.xpose.msra.mxu0 0
    %2316 = vmatprep.subr.bf16.mxu0 0
    %2317 = vmatpush1.bf16.xpose.msra.mxu0 0
    %2318 = vmatprep.mubr.bf16.mxu0 0
    %2319 = vmatmul.mubr.bf16.gmra.mrb[0].mxu0 %v2239
    %v2320 = vpop.f32.mrb[0].mxu0
    %v2321 = vadd.f32 0.0, %v2320
    %v2322 = vpop.f32.mrb[0].mxu0
    %v2323 = vpop.f32.mrb[0].mxu0
    %v2324 = vadd.f32 0.0, %v2323
    %v2325 = vpop.f32.mrb[0].mxu0
    %2326 = vmatprep.mubr.bf16.mxu0 0
    %2327 = vmatmul.mubr.bf16.gmra.mrb[0].mxu0 %v2242
    %v2328 = vpop.f32.mrb[0].mxu0
    %v2329 = vadd.f32 0.0, %v2328
    %v2330 = vpop.f32.mrb[0].mxu0
    %v2331 = vpop.f32.mrb[0].mxu0
    %v2332 = vadd.f32 0.0, %v2331
    %v2333 = vpop.f32.mrb[0].mxu0
    %2334 = vmatprep.mubr.bf16.mxu0 0
    %2335 = vmatmul.mubr.bf16.gmra.mrb[0].mxu0 %v2245
    %v2336 = vpop.f32.mrb[0].mxu0
    %v2337 = vadd.f32 0.0, %v2336
    %v2338 = vpop.f32.mrb[0].mxu0
    %v2339 = vpop.f32.mrb[0].mxu0
    %v2340 = vadd.f32 0.0, %v2339
    %v2341 = vpop.f32.mrb[0].mxu0
    %2342 = vmatprep.mubr.bf16.mxu0 0
    %2343 = vmatmul.mubr.bf16.gmra.mrb[0].mxu0 %v2248
    %v2344 = vpop.f32.mrb[0].mxu0
    %v2345 = vadd.f32 0.0, %v2344
    %v2346 = vpop.f32.mrb[0].mxu0
    %v2347 = vpop.f32.mrb[0].mxu0
    %v2348 = vadd.f32 0.0, %v2347
    %v2349 = vpop.f32.mrb[0].mxu0
    %2350 = vmatprep.mubr.bf16.mxu0 0
    %2351 = vmatmul.mubr.bf16.gmra.mrb[0].mxu0 %v2251
    %v2352 = vpop.f32.mrb[0].mxu0
    %v2353 = vadd.f32 0.0, %v2352
    %v2354 = vpop.f32.mrb[0].mxu0
    %v2355 = vpop.f32.mrb[0].mxu0
    %v2356 = vadd.f32 0.0, %v2355
    %v2357 = vpop.f32.mrb[0].mxu0
    %2358 = vmatprep.mubr.bf16.mxu0 0
    %2359 = vmatmul.mubr.bf16.gmra.mrb[0].mxu0 %v2254
    %v2360 = vpop.f32.mrb[0].mxu0
    %v2361 = vadd.f32 0.0, %v2360
    %v2362 = vpop.f32.mrb[0].mxu0
    %v2363 = vpop.f32.mrb[0].mxu0
    %v2364 = vadd.f32 0.0, %v2363
    %v2365 = vpop.f32.mrb[0].mxu0
    %2366 = vmatprep.mubr.bf16.mxu0 0
    %2367 = vmatmul.mubr.bf16.gmra.mrb[0].mxu0 %v2257
    %v2368 = vpop.f32.mrb[0].mxu0
    %v2369 = vadd.f32 0.0, %v2368
    %v2370 = vpop.f32.mrb[0].mxu0
    %v2371 = vpop.f32.mrb[0].mxu0
    %v2372 = vadd.f32 0.0, %v2371
    %v2373 = vpop.f32.mrb[0].mxu0
    %2374 = vmatprep.mubr.bf16.mxu0 0
    %2375 = vmatmul.mubr.bf16.gmra.mrb[0].mxu0 %v2260
    %v2376 = vpop.f32.mrb[0].mxu0
    %v2377 = vadd.f32 0.0, %v2376
    %v2378 = vpop.f32.mrb[0].mxu0
    %v2379 = vpop.f32.mrb[0].mxu0
    %v2380 = vadd.f32 0.0, %v2379
    %v2381 = vpop.f32.mrb[0].mxu0
    %2382 = vdwg.mxu0
    %2391 = vrot.lane.b32.xlu0 %v1996, 64
    %v2392 = vpop.permute.xlu0 %2391
    %2393 = vrot.lane.b32.xlu0 %v1997, 64
    %v2394 = vpop.permute.xlu0 %2393
    %2395 = vrot.lane.b32.xlu0 %v1998, 64
    %v2396 = vpop.permute.xlu0 %2395
    %2397 = vrot.lane.b32.xlu0 %v1999, 64
    %v2398 = vpop.permute.xlu0 %2397
    %2399 = vrot.lane.b32.xlu0 %v2000, 64
    %v2400 = vpop.permute.xlu0 %2399
    %2401 = vrot.lane.b32.xlu0 %v2001, 64
    %v2402 = vpop.permute.xlu0 %2401
    %2403 = vrot.lane.b32.xlu0 %v2002, 64
    %v2404 = vpop.permute.xlu0 %2403
    %2405 = vrot.lane.b32.xlu0 %v2003, 64
    %v2406 = vpop.permute.xlu0 %2405
    %v2408 = vsel %vm2068, %v1964, 0
    %v2411 = vsel %vm2068, %v1965, 0
    %v2414 = vsel %vm2068, %v1966, 0
    %v2417 = vsel %vm2068, %v1967, 0
    %v2420 = vsel %vm2068, %v1968, 0
    %v2423 = vsel %vm2068, %v1969, 0
    %v2426 = vsel %vm2068, %v1970, 0
    %v2429 = vsel %vm2068, %v1971, 0
    %v2432 = vsel %vm2068, %v2392, 0
    %v2435 = vsel %vm2068, %v2394, 0
    %v2438 = vsel %vm2068, %v2396, 0
    %v2441 = vsel %vm2068, %v2398, 0
    %v2444 = vsel %vm2068, %v2400, 0
    %v2447 = vsel %vm2068, %v2402, 0
    %v2450 = vsel %vm2068, %v2404, 0
    %v2453 = vsel %vm2068, %v2406, 0
    %2455 = vmatprep.subr.bf16.mxu0 0
    %2456 = vmatpush1.bf16.xpose.msra.mxu0 %v2432
    %2457 = vmatprep.subr.bf16.mxu0 0
    %2458 = vmatpush1.bf16.xpose.msra.mxu0 %v2435
    %2459 = vmatprep.subr.bf16.mxu0 0
    %2460 = vmatpush1.bf16.xpose.msra.mxu0 %v2438
    %2461 = vmatprep.subr.bf16.mxu0 0
    %2462 = vmatpush1.bf16.xpose.msra.mxu0 %v2441
    %2463 = vmatprep.subr.bf16.mxu0 0
    %2464 = vmatpush1.bf16.xpose.msra.mxu0 %v2444
    %2465 = vmatprep.subr.bf16.mxu0 0
    %2466 = vmatpush1.bf16.xpose.msra.mxu0 %v2447
    %2467 = vmatprep.subr.bf16.mxu0 0
    %2468 = vmatpush1.bf16.xpose.msra.mxu0 %v2450
    %2469 = vmatprep.subr.bf16.mxu0 0
    %2470 = vmatpush1.bf16.xpose.msra.mxu0 %v2453
    %2471 = vmatprep.subr.bf16.mxu0 0
    %2472 = vmatpush1.bf16.xpose.msra.mxu0 0
    %2473 = vmatprep.subr.bf16.mxu0 0
    %2474 = vmatpush1.bf16.xpose.msra.mxu0 0
    %2475 = vmatprep.subr.bf16.mxu0 0
    %2476 = vmatpush1.bf16.xpose.msra.mxu0 0
    %2477 = vmatprep.subr.bf16.mxu0 0
    %2478 = vmatpush1.bf16.xpose.msra.mxu0 0
    %2479 = vmatprep.subr.bf16.mxu0 0
    %2480 = vmatpush1.bf16.xpose.msra.mxu0 0
    %2481 = vmatprep.subr.bf16.mxu0 0
    %2482 = vmatpush1.bf16.xpose.msra.mxu0 0
    %2483 = vmatprep.subr.bf16.mxu0 0
    %2484 = vmatpush1.bf16.xpose.msra.mxu0 0
    %2485 = vmatprep.subr.bf16.mxu0 0
    %2486 = vmatpush1.bf16.xpose.msra.mxu0 0
    %2487 = vmatprep.mubr.bf16.mxu0 0
    %2488 = vmatmul.mubr.bf16.gmra.mrb[0].mxu0 %v2408
    %v2489 = vpop.f32.mrb[0].mxu0
    %v2490 = vadd.f32 0.0, %v2489
    %v2491 = vpop.f32.mrb[0].mxu0
    %v2492 = vpop.f32.mrb[0].mxu0
    %v2493 = vadd.f32 0.0, %v2492
    %v2494 = vpop.f32.mrb[0].mxu0
    %2495 = vmatprep.mubr.bf16.mxu0 0
    %2496 = vmatmul.mubr.bf16.gmra.mrb[0].mxu0 %v2411
    %v2497 = vpop.f32.mrb[0].mxu0
    %v2498 = vadd.f32 0.0, %v2497
    %v2499 = vpop.f32.mrb[0].mxu0
    %v2500 = vpop.f32.mrb[0].mxu0
    %v2501 = vadd.f32 0.0, %v2500
    %v2502 = vpop.f32.mrb[0].mxu0
    %2503 = vmatprep.mubr.bf16.mxu0 0
    %2504 = vmatmul.mubr.bf16.gmra.mrb[0].mxu0 %v2414
    %v2505 = vpop.f32.mrb[0].mxu0
    %v2506 = vadd.f32 0.0, %v2505
    %v2507 = vpop.f32.mrb[0].mxu0
    %v2508 = vpop.f32.mrb[0].mxu0
    %v2509 = vadd.f32 0.0, %v2508
    %v2510 = vpop.f32.mrb[0].mxu0
    %2511 = vmatprep.mubr.bf16.mxu0 0
    %2512 = vmatmul.mubr.bf16.gmra.mrb[0].mxu0 %v2417
    %v2513 = vpop.f32.mrb[0].mxu0
    %v2514 = vadd.f32 0.0, %v2513
    %v2515 = vpop.f32.mrb[0].mxu0
    %v2516 = vpop.f32.mrb[0].mxu0
    %v2517 = vadd.f32 0.0, %v2516
    %v2518 = vpop.f32.mrb[0].mxu0
    %2519 = vmatprep.mubr.bf16.mxu0 0
    %2520 = vmatmul.mubr.bf16.gmra.mrb[0].mxu0 %v2420
    %v2521 = vpop.f32.mrb[0].mxu0
    %v2522 = vadd.f32 0.0, %v2521
    %v2523 = vpop.f32.mrb[0].mxu0
    %v2524 = vpop.f32.mrb[0].mxu0
    %v2525 = vadd.f32 0.0, %v2524
    %v2526 = vpop.f32.mrb[0].mxu0
    %2527 = vmatprep.mubr.bf16.mxu0 0
    %2528 = vmatmul.mubr.bf16.gmra.mrb[0].mxu0 %v2423
    %v2529 = vpop.f32.mrb[0].mxu0
    %v2530 = vadd.f32 0.0, %v2529
    %v2531 = vpop.f32.mrb[0].mxu0
    %v2532 = vpop.f32.mrb[0].mxu0
    %v2533 = vadd.f32 0.0, %v2532
    %v2534 = vpop.f32.mrb[0].mxu0
    %2535 = vmatprep.mubr.bf16.mxu0 0
    %2536 = vmatmul.mubr.bf16.gmra.mrb[0].mxu0 %v2426
    %v2537 = vpop.f32.mrb[0].mxu0
    %v2538 = vadd.f32 0.0, %v2537
    %v2539 = vpop.f32.mrb[0].mxu0
    %v2540 = vpop.f32.mrb[0].mxu0
    %v2541 = vadd.f32 0.0, %v2540
    %v2542 = vpop.f32.mrb[0].mxu0
    %2543 = vmatprep.mubr.bf16.mxu0 0
    %2544 = vmatmul.mubr.bf16.gmra.mrb[0].mxu0 %v2429
    %v2545 = vpop.f32.mrb[0].mxu0
    %v2546 = vadd.f32 0.0, %v2545
    %v2547 = vpop.f32.mrb[0].mxu0
    %v2548 = vpop.f32.mrb[0].mxu0
    %v2549 = vadd.f32 0.0, %v2548
    %v2550 = vpop.f32.mrb[0].mxu0
    %2551 = vdwg.mxu0
    %2560 = vrot.lane.b32.xlu0 %v2004, 64
    %v2561 = vpop.permute.xlu0 %2560
    %2562 = vrot.lane.b32.xlu0 %v2005, 64
    %v2563 = vpop.permute.xlu0 %2562
    %2564 = vrot.lane.b32.xlu0 %v2006, 64
    %v2565 = vpop.permute.xlu0 %2564
    %2566 = vrot.lane.b32.xlu0 %v2007, 64
    %v2567 = vpop.permute.xlu0 %2566
    %2568 = vrot.lane.b32.xlu0 %v2008, 64
    %v2569 = vpop.permute.xlu0 %2568
    %2570 = vrot.lane.b32.xlu0 %v2009, 64
    %v2571 = vpop.permute.xlu0 %2570
    %2572 = vrot.lane.b32.xlu0 %v2010, 64
    %v2573 = vpop.permute.xlu0 %2572
    %2574 = vrot.lane.b32.xlu0 %v2011, 64
    %v2575 = vpop.permute.xlu0 %2574
    %v2577 = vsel %vm2068, %v1972, 0
    %v2580 = vsel %vm2068, %v1973, 0
    %v2583 = vsel %vm2068, %v1974, 0
    %v2586 = vsel %vm2068, %v1975, 0
    %v2589 = vsel %vm2068, %v1976, 0
    %v2592 = vsel %vm2068, %v1977, 0
    %v2595 = vsel %vm2068, %v1978, 0
    %v2598 = vsel %vm2068, %v1979, 0
    %v2601 = vsel %vm2068, %v2561, 0
    %v2604 = vsel %vm2068, %v2563, 0
    %v2607 = vsel %vm2068, %v2565, 0
    %v2610 = vsel %vm2068, %v2567, 0
    %v2613 = vsel %vm2068, %v2569, 0
    %v2616 = vsel %vm2068, %v2571, 0
    %v2619 = vsel %vm2068, %v2573, 0
    %v2622 = vsel %vm2068, %v2575, 0
    %2624 = vmatprep.subr.bf16.mxu0 0
    %2625 = vmatpush1.bf16.xpose.msra.mxu0 %v2601
    %2626 = vmatprep.subr.bf16.mxu0 0
    %2627 = vmatpush1.bf16.xpose.msra.mxu0 %v2604
    %2628 = vmatprep.subr.bf16.mxu0 0
    %2629 = vmatpush1.bf16.xpose.msra.mxu0 %v2607
    %2630 = vmatprep.subr.bf16.mxu0 0
    %2631 = vmatpush1.bf16.xpose.msra.mxu0 %v2610
    %2632 = vmatprep.subr.bf16.mxu0 0
    %2633 = vmatpush1.bf16.xpose.msra.mxu0 %v2613
    %2634 = vmatprep.subr.bf16.mxu0 0
    %2635 = vmatpush1.bf16.xpose.msra.mxu0 %v2616
    %2636 = vmatprep.subr.bf16.mxu0 0
    %2637 = vmatpush1.bf16.xpose.msra.mxu0 %v2619
    %2638 = vmatprep.subr.bf16.mxu0 0
    %2639 = vmatpush1.bf16.xpose.msra.mxu0 %v2622
    %2640 = vmatprep.subr.bf16.mxu0 0
    %2641 = vmatpush1.bf16.xpose.msra.mxu0 0
    %2642 = vmatprep.subr.bf16.mxu0 0
    %2643 = vmatpush1.bf16.xpose.msra.mxu0 0
    %2644 = vmatprep.subr.bf16.mxu0 0
    %2645 = vmatpush1.bf16.xpose.msra.mxu0 0
    %2646 = vmatprep.subr.bf16.mxu0 0
    %2647 = vmatpush1.bf16.xpose.msra.mxu0 0
    %2648 = vmatprep.subr.bf16.mxu0 0
    %2649 = vmatpush1.bf16.xpose.msra.mxu0 0
    %2650 = vmatprep.subr.bf16.mxu0 0
    %2651 = vmatpush1.bf16.xpose.msra.mxu0 0
    %2652 = vmatprep.subr.bf16.mxu0 0
    %2653 = vmatpush1.bf16.xpose.msra.mxu0 0
    %2654 = vmatprep.subr.bf16.mxu0 0
    %2655 = vmatpush1.bf16.xpose.msra.mxu0 0
    %2656 = vmatprep.mubr.bf16.mxu0 0
    %2657 = vmatmul.mubr.bf16.gmra.mrb[0].mxu0 %v2577
    %v2658 = vpop.f32.mrb[0].mxu0
    %v2659 = vadd.f32 0.0, %v2658
    %v2660 = vpop.f32.mrb[0].mxu0
    %v2661 = vpop.f32.mrb[0].mxu0
    %v2662 = vadd.f32 0.0, %v2661
    %v2663 = vpop.f32.mrb[0].mxu0
    %2664 = vmatprep.mubr.bf16.mxu0 0
    %2665 = vmatmul.mubr.bf16.gmra.mrb[0].mxu0 %v2580
    %v2666 = vpop.f32.mrb[0].mxu0
    %v2667 = vadd.f32 0.0, %v2666
    %v2668 = vpop.f32.mrb[0].mxu0
    %v2669 = vpop.f32.mrb[0].mxu0
    %v2670 = vadd.f32 0.0, %v2669
    %v2671 = vpop.f32.mrb[0].mxu0
    %2672 = vmatprep.mubr.bf16.mxu0 0
    %2673 = vmatmul.mubr.bf16.gmra.mrb[0].mxu0 %v2583
    %v2674 = vpop.f32.mrb[0].mxu0
    %v2675 = vadd.f32 0.0, %v2674
    %v2676 = vpop.f32.mrb[0].mxu0
    %v2677 = vpop.f32.mrb[0].mxu0
    %v2678 = vadd.f32 0.0, %v2677
    %v2679 = vpop.f32.mrb[0].mxu0
    %2680 = vmatprep.mubr.bf16.mxu0 0
    %2681 = vmatmul.mubr.bf16.gmra.mrb[0].mxu0 %v2586
    %v2682 = vpop.f32.mrb[0].mxu0
    %v2683 = vadd.f32 0.0, %v2682
    %v2684 = vpop.f32.mrb[0].mxu0
    %v2685 = vpop.f32.mrb[0].mxu0
    %v2686 = vadd.f32 0.0, %v2685
    %v2687 = vpop.f32.mrb[0].mxu0
    %2688 = vmatprep.mubr.bf16.mxu0 0
    %2689 = vmatmul.mubr.bf16.gmra.mrb[0].mxu0 %v2589
    %v2690 = vpop.f32.mrb[0].mxu0
    %v2691 = vadd.f32 0.0, %v2690
    %v2692 = vpop.f32.mrb[0].mxu0
    %v2693 = vpop.f32.mrb[0].mxu0
    %v2694 = vadd.f32 0.0, %v2693
    %v2695 = vpop.f32.mrb[0].mxu0
    %2696 = vmatprep.mubr.bf16.mxu0 0
    %2697 = vmatmul.mubr.bf16.gmra.mrb[0].mxu0 %v2592
    %v2698 = vpop.f32.mrb[0].mxu0
    %v2699 = vadd.f32 0.0, %v2698
    %v2700 = vpop.f32.mrb[0].mxu0
    %v2701 = vpop.f32.mrb[0].mxu0
    %v2702 = vadd.f32 0.0, %v2701
    %v2703 = vpop.f32.mrb[0].mxu0
    %2704 = vmatprep.mubr.bf16.mxu0 0
    %2705 = vmatmul.mubr.bf16.gmra.mrb[0].mxu0 %v2595
    %v2706 = vpop.f32.mrb[0].mxu0
    %v2707 = vadd.f32 0.0, %v2706
    %v2708 = vpop.f32.mrb[0].mxu0
    %v2709 = vpop.f32.mrb[0].mxu0
    %v2710 = vadd.f32 0.0, %v2709
    %v2711 = vpop.f32.mrb[0].mxu0
    %2712 = vmatprep.mubr.bf16.mxu0 0
    %2713 = vmatmul.mubr.bf16.gmra.mrb[0].mxu0 %v2598
    %v2714 = vpop.f32.mrb[0].mxu0
    %v2715 = vadd.f32 0.0, %v2714
    %v2716 = vpop.f32.mrb[0].mxu0
    %v2717 = vpop.f32.mrb[0].mxu0
    %v2718 = vadd.f32 0.0, %v2717
    %v2719 = vpop.f32.mrb[0].mxu0
    %2720 = vdwg.mxu0
    %v2721 = vlaneseq
    %v2722 = vshrl.u32 %v2721, 7
    %v2723 = vadd.s32 %v2722, 8
    %v2724 = vadd.s32 %v2722, 16
    %v2725 = vadd.s32 %v2722, 24
    %v2726 = vadd.s32 %v2722, 32
    %v2727 = vadd.s32 %v2722, 40
    %v2728 = vadd.s32 %v2722, 48
    %v2729 = vadd.s32 %v2722, 56
    %v2730 = vadd.s32 %v2722, 64
    %v2731 = vadd.s32 %v2722, 72
    %v2732 = vadd.s32 %v2722, 80
    %v2733 = vadd.s32 %v2722, 88
    %v2734 = vadd.s32 %v2722, 96
    %v2735 = vadd.s32 %v2722, 104
    %v2736 = vadd.s32 %v2722, 112
    %v2737 = vadd.s32 %v2722, 120
    %v2738 = vlaneseq
    %v2739 = vand.u32 %v2738, 127
    %vm2740 = vcmp.le.s32.totalorder %v2739, %v2722
    %vm2741 = vcmp.le.s32.totalorder %v2739, %v2723
    %vm2742 = vcmp.le.s32.totalorder %v2739, %v2724
    %vm2743 = vcmp.le.s32.totalorder %v2739, %v2725
    %vm2744 = vcmp.le.s32.totalorder %v2739, %v2726
    %vm2745 = vcmp.le.s32.totalorder %v2739, %v2727
    %vm2746 = vcmp.le.s32.totalorder %v2739, %v2728
    %vm2747 = vcmp.le.s32.totalorder %v2739, %v2729
    %vm2748 = vcmp.le.s32.totalorder %v2739, %v2730
    %vm2749 = vcmp.le.s32.totalorder %v2739, %v2731
    %vm2750 = vcmp.le.s32.totalorder %v2739, %v2732
    %vm2751 = vcmp.le.s32.totalorder %v2739, %v2733
    %vm2752 = vcmp.le.s32.totalorder %v2739, %v2734
    %vm2753 = vcmp.le.s32.totalorder %v2739, %v2735
    %vm2754 = vcmp.le.s32.totalorder %v2739, %v2736
    %vm2755 = vcmp.le.s32.totalorder %v2739, %v2737
    %v2756 = vsel %vm2740, 1, 0
    %v2757 = vsel %vm2741, 1, 0
    %v2758 = vsel %vm2742, 1, 0
    %v2759 = vsel %vm2743, 1, 0
    %v2760 = vsel %vm2744, 1, 0
    %v2761 = vsel %vm2745, 1, 0
    %v2762 = vsel %vm2746, 1, 0
    %v2763 = vsel %vm2747, 1, 0
    %v2764 = vsel %vm2748, 1, 0
    %v2765 = vsel %vm2749, 1, 0
    %v2766 = vsel %vm2750, 1, 0
    %v2767 = vsel %vm2751, 1, 0
    %v2768 = vsel %vm2752, 1, 0
    %v2769 = vsel %vm2753, 1, 0
    %v2770 = vsel %vm2754, 1, 0
    %v2771 = vsel %vm2755, 1, 0
    %vm2772 = vcmp.eq.s32.totalorder %v2756, 1
    %vm2773 = vcmp.eq.s32.totalorder %v2757, 1
    %vm2774 = vcmp.eq.s32.totalorder %v2758, 1
    %vm2775 = vcmp.eq.s32.totalorder %v2759, 1
    %vm2776 = vcmp.eq.s32.totalorder %v2760, 1
    %vm2777 = vcmp.eq.s32.totalorder %v2761, 1
    %vm2778 = vcmp.eq.s32.totalorder %v2762, 1
    %vm2779 = vcmp.eq.s32.totalorder %v2763, 1
    %vm2780 = vcmp.eq.s32.totalorder %v2764, 1
    %vm2781 = vcmp.eq.s32.totalorder %v2765, 1
    %vm2782 = vcmp.eq.s32.totalorder %v2766, 1
    %vm2783 = vcmp.eq.s32.totalorder %v2767, 1
    %vm2784 = vcmp.eq.s32.totalorder %v2768, 1
    %vm2785 = vcmp.eq.s32.totalorder %v2769, 1
    %vm2786 = vcmp.eq.s32.totalorder %v2770, 1
    %vm2787 = vcmp.eq.s32.totalorder %v2771, 1
    %v2788 = vsel %vm2772, %v2152, -inf
    %v2789 = vsel %vm2773, %v2155, -inf
    %v2790 = vsel %vm2774, %v2160, -inf
    %v2791 = vsel %vm2775, %v2163, -inf
    %v2792 = vsel %vm2776, %v2168, -inf
    %v2793 = vsel %vm2777, %v2171, -inf
    %v2794 = vsel %vm2778, %v2176, -inf
    %v2795 = vsel %vm2779, %v2179, -inf
    %v2796 = vsel %vm2780, %v2184, -inf
    %v2797 = vsel %vm2781, %v2187, -inf
    %v2798 = vsel %vm2782, %v2192, -inf
    %v2799 = vsel %vm2783, %v2195, -inf
    %v2800 = vsel %vm2784, %v2200, -inf
    %v2801 = vsel %vm2785, %v2203, -inf
    %v2802 = vsel %vm2786, %v2208, -inf
    %v2803 = vsel %vm2787, %v2211, -inf
    %v2804 = vsel %vm2772, %v2321, -inf
    %v2805 = vsel %vm2773, %v2324, -inf
    %v2806 = vsel %vm2774, %v2329, -inf
    %v2807 = vsel %vm2775, %v2332, -inf
    %v2808 = vsel %vm2776, %v2337, -inf
    %v2809 = vsel %vm2777, %v2340, -inf
    %v2810 = vsel %vm2778, %v2345, -inf
    %v2811 = vsel %vm2779, %v2348, -inf
    %v2812 = vsel %vm2780, %v2353, -inf
    %v2813 = vsel %vm2781, %v2356, -inf
    %v2814 = vsel %vm2782, %v2361, -inf
    %v2815 = vsel %vm2783, %v2364, -inf
    %v2816 = vsel %vm2784, %v2369, -inf
    %v2817 = vsel %vm2785, %v2372, -inf
    %v2818 = vsel %vm2786, %v2377, -inf
    %v2819 = vsel %vm2787, %v2380, -inf
    %v2820 = vsel %vm2772, %v2490, -inf
    %v2821 = vsel %vm2773, %v2493, -inf
    %v2822 = vsel %vm2774, %v2498, -inf
    %v2823 = vsel %vm2775, %v2501, -inf
    %v2824 = vsel %vm2776, %v2506, -inf
    %v2825 = vsel %vm2777, %v2509, -inf
    %v2826 = vsel %vm2778, %v2514, -inf
    %v2827 = vsel %vm2779, %v2517, -inf
    %v2828 = vsel %vm2780, %v2522, -inf
    %v2829 = vsel %vm2781, %v2525, -inf
    %v2830 = vsel %vm2782, %v2530, -inf
    %v2831 = vsel %vm2783, %v2533, -inf
    %v2832 = vsel %vm2784, %v2538, -inf
    %v2833 = vsel %vm2785, %v2541, -inf
    %v2834 = vsel %vm2786, %v2546, -inf
    %v2835 = vsel %vm2787, %v2549, -inf
    %v2836 = vsel %vm2772, %v2659, -inf
    %v2837 = vsel %vm2773, %v2662, -inf
    %v2838 = vsel %vm2774, %v2667, -inf
    %v2839 = vsel %vm2775, %v2670, -inf
    %v2840 = vsel %vm2776, %v2675, -inf
    %v2841 = vsel %vm2777, %v2678, -inf
    %v2842 = vsel %vm2778, %v2683, -inf
    %v2843 = vsel %vm2779, %v2686, -inf
    %v2844 = vsel %vm2780, %v2691, -inf
    %v2845 = vsel %vm2781, %v2694, -inf
    %v2846 = vsel %vm2782, %v2699, -inf
    %v2847 = vsel %vm2783, %v2702, -inf
    %v2848 = vsel %vm2784, %v2707, -inf
    %v2849 = vsel %vm2785, %v2710, -inf
    %v2850 = vsel %vm2786, %v2715, -inf
    %v2851 = vsel %vm2787, %v2718, -inf
    %2852 = vmax.xlane.f32.xlu0 %v2788
    %v2853 = vpop.xlane.xlu0 %2852
    %2854 = vmax.xlane.f32.xlu0 %v2789
    %v2855 = vpop.xlane.xlu0 %2854
    %2856 = vmax.xlane.f32.xlu0 %v2790
    %v2857 = vpop.xlane.xlu0 %2856
    %2858 = vmax.xlane.f32.xlu0 %v2791
    %v2859 = vpop.xlane.xlu0 %2858
    %2860 = vmax.xlane.f32.xlu0 %v2792
    %v2861 = vpop.xlane.xlu0 %2860
    %2862 = vmax.xlane.f32.xlu0 %v2793
    %v2863 = vpop.xlane.xlu0 %2862
    %2864 = vmax.xlane.f32.xlu0 %v2794
    %v2865 = vpop.xlane.xlu0 %2864
    %2866 = vmax.xlane.f32.xlu0 %v2795
    %v2867 = vpop.xlane.xlu0 %2866
    %2868 = vmax.xlane.f32.xlu0 %v2796
    %v2869 = vpop.xlane.xlu0 %2868
    %2870 = vmax.xlane.f32.xlu0 %v2797
    %v2871 = vpop.xlane.xlu0 %2870
    %2872 = vmax.xlane.f32.xlu0 %v2798
    %v2873 = vpop.xlane.xlu0 %2872
    %2874 = vmax.xlane.f32.xlu0 %v2799
    %v2875 = vpop.xlane.xlu0 %2874
    %2876 = vmax.xlane.f32.xlu0 %v2800
    %v2877 = vpop.xlane.xlu0 %2876
    %2878 = vmax.xlane.f32.xlu0 %v2801
    %v2879 = vpop.xlane.xlu0 %2878
    %2880 = vmax.xlane.f32.xlu0 %v2802
    %v2881 = vpop.xlane.xlu0 %2880
    %2882 = vmax.xlane.f32.xlu0 %v2803
    %v2883 = vpop.xlane.xlu0 %2882
    %2884 = vmax.xlane.f32.xlu0 %v2804
    %v2885 = vpop.xlane.xlu0 %2884
    %2886 = vmax.xlane.f32.xlu0 %v2805
    %v2887 = vpop.xlane.xlu0 %2886
    %2888 = vmax.xlane.f32.xlu0 %v2806
    %v2889 = vpop.xlane.xlu0 %2888
    %2890 = vmax.xlane.f32.xlu0 %v2807
    %v2891 = vpop.xlane.xlu0 %2890
    %2892 = vmax.xlane.f32.xlu0 %v2808
    %v2893 = vpop.xlane.xlu0 %2892
    %2894 = vmax.xlane.f32.xlu0 %v2809
    %v2895 = vpop.xlane.xlu0 %2894
    %2896 = vmax.xlane.f32.xlu0 %v2810
    %v2897 = vpop.xlane.xlu0 %2896
    %2898 = vmax.xlane.f32.xlu0 %v2811
    %v2899 = vpop.xlane.xlu0 %2898
    %2900 = vmax.xlane.f32.xlu0 %v2812
    %v2901 = vpop.xlane.xlu0 %2900
    %2902 = vmax.xlane.f32.xlu0 %v2813
    %v2903 = vpop.xlane.xlu0 %2902
    %2904 = vmax.xlane.f32.xlu0 %v2814
    %v2905 = vpop.xlane.xlu0 %2904
    %2906 = vmax.xlane.f32.xlu0 %v2815
    %v2907 = vpop.xlane.xlu0 %2906
    %2908 = vmax.xlane.f32.xlu0 %v2816
    %v2909 = vpop.xlane.xlu0 %2908
    %2910 = vmax.xlane.f32.xlu0 %v2817
    %v2911 = vpop.xlane.xlu0 %2910
    %2912 = vmax.xlane.f32.xlu0 %v2818
    %v2913 = vpop.xlane.xlu0 %2912
    %2914 = vmax.xlane.f32.xlu0 %v2819
    %v2915 = vpop.xlane.xlu0 %2914
    %2916 = vmax.xlane.f32.xlu0 %v2820
    %v2917 = vpop.xlane.xlu0 %2916
    %2918 = vmax.xlane.f32.xlu0 %v2821
    %v2919 = vpop.xlane.xlu0 %2918
    %2920 = vmax.xlane.f32.xlu0 %v2822
    %v2921 = vpop.xlane.xlu0 %2920
    %2922 = vmax.xlane.f32.xlu0 %v2823
    %v2923 = vpop.xlane.xlu0 %2922
    %2924 = vmax.xlane.f32.xlu0 %v2824
    %v2925 = vpop.xlane.xlu0 %2924
    %2926 = vmax.xlane.f32.xlu0 %v2825
    %v2927 = vpop.xlane.xlu0 %2926
    %2928 = vmax.xlane.f32.xlu0 %v2826
    %v2929 = vpop.xlane.xlu0 %2928
    %2930 = vmax.xlane.f32.xlu0 %v2827
    %v2931 = vpop.xlane.xlu0 %2930
    %2932 = vmax.xlane.f32.xlu0 %v2828
    %v2933 = vpop.xlane.xlu0 %2932
    %2934 = vmax.xlane.f32.xlu0 %v2829
    %v2935 = vpop.xlane.xlu0 %2934
    %2936 = vmax.xlane.f32.xlu0 %v2830
    %v2937 = vpop.xlane.xlu0 %2936
    %2938 = vmax.xlane.f32.xlu0 %v2831
    %v2939 = vpop.xlane.xlu0 %2938
    %2940 = vmax.xlane.f32.xlu0 %v2832
    %v2941 = vpop.xlane.xlu0 %2940
    %2942 = vmax.xlane.f32.xlu0 %v2833
    %v2943 = vpop.xlane.xlu0 %2942
    %2944 = vmax.xlane.f32.xlu0 %v2834
    %v2945 = vpop.xlane.xlu0 %2944
    %2946 = vmax.xlane.f32.xlu0 %v2835
    %v2947 = vpop.xlane.xlu0 %2946
    %2948 = vmax.xlane.f32.xlu0 %v2836
    %v2949 = vpop.xlane.xlu0 %2948
    %2950 = vmax.xlane.f32.xlu0 %v2837
    %v2951 = vpop.xlane.xlu0 %2950
    %2952 = vmax.xlane.f32.xlu0 %v2838
    %v2953 = vpop.xlane.xlu0 %2952
    %2954 = vmax.xlane.f32.xlu0 %v2839
    %v2955 = vpop.xlane.xlu0 %2954
    %2956 = vmax.xlane.f32.xlu0 %v2840
    %v2957 = vpop.xlane.xlu0 %2956
    %2958 = vmax.xlane.f32.xlu0 %v2841
    %v2959 = vpop.xlane.xlu0 %2958
    %2960 = vmax.xlane.f32.xlu0 %v2842
    %v2961 = vpop.xlane.xlu0 %2960
    %2962 = vmax.xlane.f32.xlu0 %v2843
    %v2963 = vpop.xlane.xlu0 %2962
    %2964 = vmax.xlane.f32.xlu0 %v2844
    %v2965 = vpop.xlane.xlu0 %2964
    %2966 = vmax.xlane.f32.xlu0 %v2845
    %v2967 = vpop.xlane.xlu0 %2966
    %2968 = vmax.xlane.f32.xlu0 %v2846
    %v2969 = vpop.xlane.xlu0 %2968
    %2970 = vmax.xlane.f32.xlu0 %v2847
    %v2971 = vpop.xlane.xlu0 %2970
    %2972 = vmax.xlane.f32.xlu0 %v2848
    %v2973 = vpop.xlane.xlu0 %2972
    %2974 = vmax.xlane.f32.xlu0 %v2849
    %v2975 = vpop.xlane.xlu0 %2974
    %2976 = vmax.xlane.f32.xlu0 %v2850
    %v2977 = vpop.xlane.xlu0 %2976
    %2978 = vmax.xlane.f32.xlu0 %v2851
    %v2979 = vpop.xlane.xlu0 %2978
    %v2980 = vsub.f32 %v2788, %v2853
    %v2981 = vsub.f32 %v2789, %v2855
    %v2982 = vsub.f32 %v2790, %v2857
    %v2983 = vsub.f32 %v2791, %v2859
    %v2984 = vsub.f32 %v2792, %v2861
    %v2985 = vsub.f32 %v2793, %v2863
    %v2986 = vsub.f32 %v2794, %v2865
    %v2987 = vsub.f32 %v2795, %v2867
    %v2988 = vsub.f32 %v2796, %v2869
    %v2989 = vsub.f32 %v2797, %v2871
    %v2990 = vsub.f32 %v2798, %v2873
    %v2991 = vsub.f32 %v2799, %v2875
    %v2992 = vsub.f32 %v2800, %v2877
    %v2993 = vsub.f32 %v2801, %v2879
    %v2994 = vsub.f32 %v2802, %v2881
    %v2995 = vsub.f32 %v2803, %v2883
    %v2996 = vsub.f32 %v2804, %v2885
    %v2997 = vsub.f32 %v2805, %v2887
    %v2998 = vsub.f32 %v2806, %v2889
    %v2999 = vsub.f32 %v2807, %v2891
    %v3000 = vsub.f32 %v2808, %v2893
    %v3001 = vsub.f32 %v2809, %v2895
    %v3002 = vsub.f32 %v2810, %v2897
    %v3003 = vsub.f32 %v2811, %v2899
    %v3004 = vsub.f32 %v2812, %v2901
    %v3005 = vsub.f32 %v2813, %v2903
    %v3006 = vsub.f32 %v2814, %v2905
    %v3007 = vsub.f32 %v2815, %v2907
    %v3008 = vsub.f32 %v2816, %v2909
    %v3009 = vsub.f32 %v2817, %v2911
    %v3010 = vsub.f32 %v2818, %v2913
    %v3011 = vsub.f32 %v2819, %v2915
    %v3012 = vsub.f32 %v2820, %v2917
    %v3013 = vsub.f32 %v2821, %v2919
    %v3014 = vsub.f32 %v2822, %v2921
    %v3015 = vsub.f32 %v2823, %v2923
    %v3016 = vsub.f32 %v2824, %v2925
    %v3017 = vsub.f32 %v2825, %v2927
    %v3018 = vsub.f32 %v2826, %v2929
    %v3019 = vsub.f32 %v2827, %v2931
    %v3020 = vsub.f32 %v2828, %v2933
    %v3021 = vsub.f32 %v2829, %v2935
    %v3022 = vsub.f32 %v2830, %v2937
    %v3023 = vsub.f32 %v2831, %v2939
    %v3024 = vsub.f32 %v2832, %v2941
    %v3025 = vsub.f32 %v2833, %v2943
    %v3026 = vsub.f32 %v2834, %v2945
    %v3027 = vsub.f32 %v2835, %v2947
    %v3028 = vsub.f32 %v2836, %v2949
    %v3029 = vsub.f32 %v2837, %v2951
    %v3030 = vsub.f32 %v2838, %v2953
    %v3031 = vsub.f32 %v2839, %v2955
    %v3032 = vsub.f32 %v2840, %v2957
    %v3033 = vsub.f32 %v2841, %v2959
    %v3034 = vsub.f32 %v2842, %v2961
    %v3035 = vsub.f32 %v2843, %v2963
    %v3036 = vsub.f32 %v2844, %v2965
    %v3037 = vsub.f32 %v2845, %v2967
    %v3038 = vsub.f32 %v2846, %v2969
    %v3039 = vsub.f32 %v2847, %v2971
    %v3040 = vsub.f32 %v2848, %v2973
    %v3041 = vsub.f32 %v2849, %v2975
    %v3042 = vsub.f32 %v2850, %v2977
    %v3043 = vsub.f32 %v2851, %v2979
    %v3044 = vmul.f32 %v2980, 1.442695
    %v3045 = vpow.pop %v3044
    %v3046 = vmul.f32 %v2981, 1.442695
    %v3047 = vpow.pop %v3046
    %v3048 = vmul.f32 %v2982, 1.442695
    %v3049 = vpow.pop %v3048
    %v3050 = vmul.f32 %v2983, 1.442695
    %v3051 = vpow.pop %v3050
    %v3052 = vmul.f32 %v2984, 1.442695
    %v3053 = vpow.pop %v3052
    %v3054 = vmul.f32 %v2985, 1.442695
    %v3055 = vpow.pop %v3054
    %v3056 = vmul.f32 %v2986, 1.442695
    %v3057 = vpow.pop %v3056
    %v3058 = vmul.f32 %v2987, 1.442695
    %v3059 = vpow.pop %v3058
    %v3060 = vmul.f32 %v2988, 1.442695
    %v3061 = vpow.pop %v3060
    %v3062 = vmul.f32 %v2989, 1.442695
    %v3063 = vpow.pop %v3062
    %v3064 = vmul.f32 %v2990, 1.442695
    %v3065 = vpow.pop %v3064
    %v3066 = vmul.f32 %v2991, 1.442695
    %v3067 = vpow.pop %v3066
    %v3068 = vmul.f32 %v2992, 1.442695
    %v3069 = vpow.pop %v3068
    %v3070 = vmul.f32 %v2993, 1.442695
    %v3071 = vpow.pop %v3070
    %v3072 = vmul.f32 %v2994, 1.442695
    %v3073 = vpow.pop %v3072
    %v3074 = vmul.f32 %v2995, 1.442695
    %v3075 = vpow.pop %v3074
    %v3076 = vmul.f32 %v2996, 1.442695
    %v3077 = vpow.pop %v3076
    %v3078 = vmul.f32 %v2997, 1.442695
    %v3079 = vpow.pop %v3078
    %v3080 = vmul.f32 %v2998, 1.442695
    %v3081 = vpow.pop %v3080
    %v3082 = vmul.f32 %v2999, 1.442695
    %v3083 = vpow.pop %v3082
    %v3084 = vmul.f32 %v3000, 1.442695
    %v3085 = vpow.pop %v3084
    %v3086 = vmul.f32 %v3001, 1.442695
    %v3087 = vpow.pop %v3086
    %v3088 = vmul.f32 %v3002, 1.442695
    %v3089 = vpow.pop %v3088
    %v3090 = vmul.f32 %v3003, 1.442695
    %v3091 = vpow.pop %v3090
    %v3092 = vmul.f32 %v3004, 1.442695
    %v3093 = vpow.pop %v3092
    %v3094 = vmul.f32 %v3005, 1.442695
    %v3095 = vpow.pop %v3094
    %v3096 = vmul.f32 %v3006, 1.442695
    %v3097 = vpow.pop %v3096
    %v3098 = vmul.f32 %v3007, 1.442695
    %v3099 = vpow.pop %v3098
    %v3100 = vmul.f32 %v3008, 1.442695
    %v3101 = vpow.pop %v3100
    %v3102 = vmul.f32 %v3009, 1.442695
    %v3103 = vpow.pop %v3102
    %v3104 = vmul.f32 %v3010, 1.442695
    %v3105 = vpow.pop %v3104
    %v3106 = vmul.f32 %v3011, 1.442695
    %v3107 = vpow.pop %v3106
    %v3108 = vmul.f32 %v3012, 1.442695
    %v3109 = vpow.pop %v3108
    %v3110 = vmul.f32 %v3013, 1.442695
    %v3111 = vpow.pop %v3110
    %v3112 = vmul.f32 %v3014, 1.442695
    %v3113 = vpow.pop %v3112
    %v3114 = vmul.f32 %v3015, 1.442695
    %v3115 = vpow.pop %v3114
    %v3116 = vmul.f32 %v3016, 1.442695
    %v3117 = vpow.pop %v3116
    %v3118 = vmul.f32 %v3017, 1.442695
    %v3119 = vpow.pop %v3118
    %v3120 = vmul.f32 %v3018, 1.442695
    %v3121 = vpow.pop %v3120
    %v3122 = vmul.f32 %v3019, 1.442695
    %v3123 = vpow.pop %v3122
    %v3124 = vmul.f32 %v3020, 1.442695
    %v3125 = vpow.pop %v3124
    %v3126 = vmul.f32 %v3021, 1.442695
    %v3127 = vpow.pop %v3126
    %v3128 = vmul.f32 %v3022, 1.442695
    %v3129 = vpow.pop %v3128
    %v3130 = vmul.f32 %v3023, 1.442695
    %v3131 = vpow.pop %v3130
    %v3132 = vmul.f32 %v3024, 1.442695
    %v3133 = vpow.pop %v3132
    %v3134 = vmul.f32 %v3025, 1.442695
    %v3135 = vpow.pop %v3134
    %v3136 = vmul.f32 %v3026, 1.442695
    %v3137 = vpow.pop %v3136
    %v3138 = vmul.f32 %v3027, 1.442695
    %v3139 = vpow.pop %v3138
    %v3140 = vmul.f32 %v3028, 1.442695
    %v3141 = vpow.pop %v3140
    %v3142 = vmul.f32 %v3029, 1.442695
    %v3143 = vpow.pop %v3142
    %v3144 = vmul.f32 %v3030, 1.442695
    %v3145 = vpow.pop %v3144
    %v3146 = vmul.f32 %v3031, 1.442695
    %v3147 = vpow.pop %v3146
    %v3148 = vmul.f32 %v3032, 1.442695
    %v3149 = vpow.pop %v3148
    %v3150 = vmul.f32 %v3033, 1.442695
    %v3151 = vpow.pop %v3150
    %v3152 = vmul.f32 %v3034, 1.442695
    %v3153 = vpow.pop %v3152
    %v3154 = vmul.f32 %v3035, 1.442695
    %v3155 = vpow.pop %v3154
    %v3156 = vmul.f32 %v3036, 1.442695
    %v3157 = vpow.pop %v3156
    %v3158 = vmul.f32 %v3037, 1.442695
    %v3159 = vpow.pop %v3158
    %v3160 = vmul.f32 %v3038, 1.442695
    %v3161 = vpow.pop %v3160
    %v3162 = vmul.f32 %v3039, 1.442695
    %v3163 = vpow.pop %v3162
    %v3164 = vmul.f32 %v3040, 1.442695
    %v3165 = vpow.pop %v3164
    %v3166 = vmul.f32 %v3041, 1.442695
    %v3167 = vpow.pop %v3166
    %v3168 = vmul.f32 %v3042, 1.442695
    %v3169 = vpow.pop %v3168
    %v3170 = vmul.f32 %v3043, 1.442695
    %v3171 = vpow.pop %v3170
    %3172 = vadd.xlane.f32.xlu0 %v3045
    %v3173 = vpop.xlane.xlu0 %3172
    %3174 = vadd.xlane.f32.xlu0 %v3047
    %v3175 = vpop.xlane.xlu0 %3174
    %3176 = vadd.xlane.f32.xlu0 %v3049
    %v3177 = vpop.xlane.xlu0 %3176
    %3178 = vadd.xlane.f32.xlu0 %v3051
    %v3179 = vpop.xlane.xlu0 %3178
    %3180 = vadd.xlane.f32.xlu0 %v3053
    %v3181 = vpop.xlane.xlu0 %3180
    %3182 = vadd.xlane.f32.xlu0 %v3055
    %v3183 = vpop.xlane.xlu0 %3182
    %3184 = vadd.xlane.f32.xlu0 %v3057
    %v3185 = vpop.xlane.xlu0 %3184
    %3186 = vadd.xlane.f32.xlu0 %v3059
    %v3187 = vpop.xlane.xlu0 %3186
    %3188 = vadd.xlane.f32.xlu0 %v3061
    %v3189 = vpop.xlane.xlu0 %3188
    %3190 = vadd.xlane.f32.xlu0 %v3063
    %v3191 = vpop.xlane.xlu0 %3190
    %3192 = vadd.xlane.f32.xlu0 %v3065
    %v3193 = vpop.xlane.xlu0 %3192
    %3194 = vadd.xlane.f32.xlu0 %v3067
    %v3195 = vpop.xlane.xlu0 %3194
    %3196 = vadd.xlane.f32.xlu0 %v3069
    %v3197 = vpop.xlane.xlu0 %3196
    %3198 = vadd.xlane.f32.xlu0 %v3071
    %v3199 = vpop.xlane.xlu0 %3198
    %3200 = vadd.xlane.f32.xlu0 %v3073
    %v3201 = vpop.xlane.xlu0 %3200
    %3202 = vadd.xlane.f32.xlu0 %v3075
    %v3203 = vpop.xlane.xlu0 %3202
    %3204 = vadd.xlane.f32.xlu0 %v3077
    %v3205 = vpop.xlane.xlu0 %3204
    %3206 = vadd.xlane.f32.xlu0 %v3079
    %v3207 = vpop.xlane.xlu0 %3206
    %3208 = vadd.xlane.f32.xlu0 %v3081
    %v3209 = vpop.xlane.xlu0 %3208
    %3210 = vadd.xlane.f32.xlu0 %v3083
    %v3211 = vpop.xlane.xlu0 %3210
    %3212 = vadd.xlane.f32.xlu0 %v3085
    %v3213 = vpop.xlane.xlu0 %3212
    %3214 = vadd.xlane.f32.xlu0 %v3087
    %v3215 = vpop.xlane.xlu0 %3214
    %3216 = vadd.xlane.f32.xlu0 %v3089
    %v3217 = vpop.xlane.xlu0 %3216
    %3218 = vadd.xlane.f32.xlu0 %v3091
    %v3219 = vpop.xlane.xlu0 %3218
    %3220 = vadd.xlane.f32.xlu0 %v3093
    %v3221 = vpop.xlane.xlu0 %3220
    %3222 = vadd.xlane.f32.xlu0 %v3095
    %v3223 = vpop.xlane.xlu0 %3222
    %3224 = vadd.xlane.f32.xlu0 %v3097
    %v3225 = vpop.xlane.xlu0 %3224
    %3226 = vadd.xlane.f32.xlu0 %v3099
    %v3227 = vpop.xlane.xlu0 %3226
    %3228 = vadd.xlane.f32.xlu0 %v3101
    %v3229 = vpop.xlane.xlu0 %3228
    %3230 = vadd.xlane.f32.xlu0 %v3103
    %v3231 = vpop.xlane.xlu0 %3230
    %3232 = vadd.xlane.f32.xlu0 %v3105
    %v3233 = vpop.xlane.xlu0 %3232
    %3234 = vadd.xlane.f32.xlu0 %v3107
    %v3235 = vpop.xlane.xlu0 %3234
    %3236 = vadd.xlane.f32.xlu0 %v3109
    %v3237 = vpop.xlane.xlu0 %3236
    %3238 = vadd.xlane.f32.xlu0 %v3111
    %v3239 = vpop.xlane.xlu0 %3238
    %3240 = vadd.xlane.f32.xlu0 %v3113
    %v3241 = vpop.xlane.xlu0 %3240
    %3242 = vadd.xlane.f32.xlu0 %v3115
    %v3243 = vpop.xlane.xlu0 %3242
    %3244 = vadd.xlane.f32.xlu0 %v3117
    %v3245 = vpop.xlane.xlu0 %3244
    %3246 = vadd.xlane.f32.xlu0 %v3119
    %v3247 = vpop.xlane.xlu0 %3246
    %3248 = vadd.xlane.f32.xlu0 %v3121
    %v3249 = vpop.xlane.xlu0 %3248
    %3250 = vadd.xlane.f32.xlu0 %v3123
    %v3251 = vpop.xlane.xlu0 %3250
    %3252 = vadd.xlane.f32.xlu0 %v3125
    %v3253 = vpop.xlane.xlu0 %3252
    %3254 = vadd.xlane.f32.xlu0 %v3127
    %v3255 = vpop.xlane.xlu0 %3254
    %3256 = vadd.xlane.f32.xlu0 %v3129
    %v3257 = vpop.xlane.xlu0 %3256
    %3258 = vadd.xlane.f32.xlu0 %v3131
    %v3259 = vpop.xlane.xlu0 %3258
    %3260 = vadd.xlane.f32.xlu0 %v3133
    %v3261 = vpop.xlane.xlu0 %3260
    %3262 = vadd.xlane.f32.xlu0 %v3135
    %v3263 = vpop.xlane.xlu0 %3262
    %3264 = vadd.xlane.f32.xlu0 %v3137
    %v3265 = vpop.xlane.xlu0 %3264
    %3266 = vadd.xlane.f32.xlu0 %v3139
    %v3267 = vpop.xlane.xlu0 %3266
    %3268 = vadd.xlane.f32.xlu0 %v3141
    %v3269 = vpop.xlane.xlu0 %3268
    %3270 = vadd.xlane.f32.xlu0 %v3143
    %v3271 = vpop.xlane.xlu0 %3270
    %3272 = vadd.xlane.f32.xlu0 %v3145
    %v3273 = vpop.xlane.xlu0 %3272
    %3274 = vadd.xlane.f32.xlu0 %v3147
    %v3275 = vpop.xlane.xlu0 %3274
    %3276 = vadd.xlane.f32.xlu0 %v3149
    %v3277 = vpop.xlane.xlu0 %3276
    %3278 = vadd.xlane.f32.xlu0 %v3151
    %v3279 = vpop.xlane.xlu0 %3278
    %3280 = vadd.xlane.f32.xlu0 %v3153
    %v3281 = vpop.xlane.xlu0 %3280
    %3282 = vadd.xlane.f32.xlu0 %v3155
    %v3283 = vpop.xlane.xlu0 %3282
    %3284 = vadd.xlane.f32.xlu0 %v3157
    %v3285 = vpop.xlane.xlu0 %3284
    %3286 = vadd.xlane.f32.xlu0 %v3159
    %v3287 = vpop.xlane.xlu0 %3286
    %3288 = vadd.xlane.f32.xlu0 %v3161
    %v3289 = vpop.xlane.xlu0 %3288
    %3290 = vadd.xlane.f32.xlu0 %v3163
    %v3291 = vpop.xlane.xlu0 %3290
    %3292 = vadd.xlane.f32.xlu0 %v3165
    %v3293 = vpop.xlane.xlu0 %3292
    %3294 = vadd.xlane.f32.xlu0 %v3167
    %v3295 = vpop.xlane.xlu0 %3294
    %3296 = vadd.xlane.f32.xlu0 %v3169
    %v3297 = vpop.xlane.xlu0 %3296
    %3298 = vadd.xlane.f32.xlu0 %v3171
    %v3299 = vpop.xlane.xlu0 %3298
    %v3300 = vpack.c.bf16 %v3047, %v3045
    %v3301 = vpack.c.bf16 %v3051, %v3049
    %v3302 = vpack.c.bf16 %v3055, %v3053
    %v3303 = vpack.c.bf16 %v3059, %v3057
    %v3304 = vpack.c.bf16 %v3063, %v3061
    %v3305 = vpack.c.bf16 %v3067, %v3065
    %v3306 = vpack.c.bf16 %v3071, %v3069
    %v3307 = vpack.c.bf16 %v3075, %v3073
    %v3308 = vpack.c.bf16 %v3079, %v3077
    %v3309 = vpack.c.bf16 %v3083, %v3081
    %v3310 = vpack.c.bf16 %v3087, %v3085
    %v3311 = vpack.c.bf16 %v3091, %v3089
    %v3312 = vpack.c.bf16 %v3095, %v3093
    %v3313 = vpack.c.bf16 %v3099, %v3097
    %v3314 = vpack.c.bf16 %v3103, %v3101
    %v3315 = vpack.c.bf16 %v3107, %v3105
    %v3316 = vpack.c.bf16 %v3111, %v3109
    %v3317 = vpack.c.bf16 %v3115, %v3113
    %v3318 = vpack.c.bf16 %v3119, %v3117
    %v3319 = vpack.c.bf16 %v3123, %v3121
    %v3320 = vpack.c.bf16 %v3127, %v3125
    %v3321 = vpack.c.bf16 %v3131, %v3129
    %v3322 = vpack.c.bf16 %v3135, %v3133
    %v3323 = vpack.c.bf16 %v3139, %v3137
    %v3324 = vpack.c.bf16 %v3143, %v3141
    %v3325 = vpack.c.bf16 %v3147, %v3145
    %v3326 = vpack.c.bf16 %v3151, %v3149
    %v3327 = vpack.c.bf16 %v3155, %v3153
    %v3328 = vpack.c.bf16 %v3159, %v3157
    %v3329 = vpack.c.bf16 %v3163, %v3161
    %v3330 = vpack.c.bf16 %v3167, %v3165
    %v3331 = vpack.c.bf16 %v3171, %v3169
    %3332 = vmatprep.subr.bf16.mxu0 0
    %3333 = vmatpush1.bf16.msra.mxu0 %v2012
    %3334 = vmatprep.subr.bf16.mxu0 0
    %3335 = vmatpush1.bf16.msra.mxu0 %v2013
    %3336 = vmatprep.subr.bf16.mxu0 0
    %3337 = vmatpush1.bf16.msra.mxu0 %v2014
    %3338 = vmatprep.subr.bf16.mxu0 0
    %3339 = vmatpush1.bf16.msra.mxu0 %v2015
    %3340 = vmatprep.subr.bf16.mxu0 0
    %3341 = vmatpush1.bf16.msra.mxu0 %v2016
    %3342 = vmatprep.subr.bf16.mxu0 0
    %3343 = vmatpush1.bf16.msra.mxu0 %v2017
    %3344 = vmatprep.subr.bf16.mxu0 0
    %3345 = vmatpush1.bf16.msra.mxu0 %v2018
    %3346 = vmatprep.subr.bf16.mxu0 0
    %3347 = vmatpush1.bf16.msra.mxu0 %v2019
    %3348 = vmatprep.subr.bf16.mxu0 0
    %3349 = vmatpush1.bf16.msra.mxu0 0
    %3350 = vmatprep.subr.bf16.mxu0 0
    %3351 = vmatpush1.bf16.msra.mxu0 0
    %3352 = vmatprep.subr.bf16.mxu0 0
    %3353 = vmatpush1.bf16.msra.mxu0 0
    %3354 = vmatprep.subr.bf16.mxu0 0
    %3355 = vmatpush1.bf16.msra.mxu0 0
    %3356 = vmatprep.subr.bf16.mxu0 0
    %3357 = vmatpush1.bf16.msra.mxu0 0
    %3358 = vmatprep.subr.bf16.mxu0 0
    %3359 = vmatpush1.bf16.msra.mxu0 0
    %3360 = vmatprep.subr.bf16.mxu0 0
    %3361 = vmatpush1.bf16.msra.mxu0 0
    %3362 = vmatprep.subr.bf16.mxu0 0
    %3363 = vmatpush1.bf16.msra.mxu0 0
    %3364 = vmatprep.mubr.bf16.mxu0 0
    %3365 = vmatmul.mubr.bf16.gmra.mrb[0].mxu0 %v3300
    %v3366 = vpop.f32.mrb[0].mxu0
    %v3367 = vadd.f32 0.0, %v3366
    %v3368 = vpop.f32.mrb[0].mxu0
    %v3369 = vpop.f32.mrb[0].mxu0
    %v3370 = vadd.f32 0.0, %v3369
    %v3371 = vpop.f32.mrb[0].mxu0
    %3372 = vmatprep.mubr.bf16.mxu0 0
    %3373 = vmatmul.mubr.bf16.gmra.mrb[0].mxu0 %v3301
    %v3374 = vpop.f32.mrb[0].mxu0
    %v3375 = vadd.f32 0.0, %v3374
    %v3376 = vpop.f32.mrb[0].mxu0
    %v3377 = vpop.f32.mrb[0].mxu0
    %v3378 = vadd.f32 0.0, %v3377
    %v3379 = vpop.f32.mrb[0].mxu0
    %3380 = vmatprep.mubr.bf16.mxu0 0
    %3381 = vmatmul.mubr.bf16.gmra.mrb[0].mxu0 %v3302
    %v3382 = vpop.f32.mrb[0].mxu0
    %v3383 = vadd.f32 0.0, %v3382
    %v3384 = vpop.f32.mrb[0].mxu0
    %v3385 = vpop.f32.mrb[0].mxu0
    %v3386 = vadd.f32 0.0, %v3385
    %v3387 = vpop.f32.mrb[0].mxu0
    %3388 = vmatprep.mubr.bf16.mxu0 0
    %3389 = vmatmul.mubr.bf16.gmra.mrb[0].mxu0 %v3303
    %v3390 = vpop.f32.mrb[0].mxu0
    %v3391 = vadd.f32 0.0, %v3390
    %v3392 = vpop.f32.mrb[0].mxu0
    %v3393 = vpop.f32.mrb[0].mxu0
    %v3394 = vadd.f32 0.0, %v3393
    %v3395 = vpop.f32.mrb[0].mxu0
    %3396 = vmatprep.mubr.bf16.mxu0 0
    %3397 = vmatmul.mubr.bf16.gmra.mrb[0].mxu0 %v3304
    %v3398 = vpop.f32.mrb[0].mxu0
    %v3399 = vadd.f32 0.0, %v3398
    %v3400 = vpop.f32.mrb[0].mxu0
    %v3401 = vpop.f32.mrb[0].mxu0
    %v3402 = vadd.f32 0.0, %v3401
    %v3403 = vpop.f32.mrb[0].mxu0
    %3404 = vmatprep.mubr.bf16.mxu0 0
    %3405 = vmatmul.mubr.bf16.gmra.mrb[0].mxu0 %v3305
    %v3406 = vpop.f32.mrb[0].mxu0
    %v3407 = vadd.f32 0.0, %v3406
    %v3408 = vpop.f32.mrb[0].mxu0
    %v3409 = vpop.f32.mrb[0].mxu0
    %v3410 = vadd.f32 0.0, %v3409
    %v3411 = vpop.f32.mrb[0].mxu0
    %3412 = vmatprep.mubr.bf16.mxu0 0
    %3413 = vmatmul.mubr.bf16.gmra.mrb[0].mxu0 %v3306
    %v3414 = vpop.f32.mrb[0].mxu0
    %v3415 = vadd.f32 0.0, %v3414
    %v3416 = vpop.f32.mrb[0].mxu0
    %v3417 = vpop.f32.mrb[0].mxu0
    %v3418 = vadd.f32 0.0, %v3417
    %v3419 = vpop.f32.mrb[0].mxu0
    %3420 = vmatprep.mubr.bf16.mxu0 0
    %3421 = vmatmul.mubr.bf16.gmra.mrb[0].mxu0 %v3307
    %v3422 = vpop.f32.mrb[0].mxu0
    %v3423 = vadd.f32 0.0, %v3422
    %v3424 = vpop.f32.mrb[0].mxu0
    %v3425 = vpop.f32.mrb[0].mxu0
    %v3426 = vadd.f32 0.0, %v3425
    %v3427 = vpop.f32.mrb[0].mxu0
    %3428 = vdwg.mxu0
    %3429 = vmatprep.subr.bf16.mxu0 0
    %3430 = vmatpush1.bf16.msra.mxu0 %v2020
    %3431 = vmatprep.subr.bf16.mxu0 0
    %3432 = vmatpush1.bf16.msra.mxu0 %v2021
    %3433 = vmatprep.subr.bf16.mxu0 0
    %3434 = vmatpush1.bf16.msra.mxu0 %v2022
    %3435 = vmatprep.subr.bf16.mxu0 0
    %3436 = vmatpush1.bf16.msra.mxu0 %v2023
    %3437 = vmatprep.subr.bf16.mxu0 0
    %3438 = vmatpush1.bf16.msra.mxu0 %v2024
    %3439 = vmatprep.subr.bf16.mxu0 0
    %3440 = vmatpush1.bf16.msra.mxu0 %v2025
    %3441 = vmatprep.subr.bf16.mxu0 0
    %3442 = vmatpush1.bf16.msra.mxu0 %v2026
    %3443 = vmatprep.subr.bf16.mxu0 0
    %3444 = vmatpush1.bf16.msra.mxu0 %v2027
    %3445 = vmatprep.subr.bf16.mxu0 0
    %3446 = vmatpush1.bf16.msra.mxu0 0
    %3447 = vmatprep.subr.bf16.mxu0 0
    %3448 = vmatpush1.bf16.msra.mxu0 0
    %3449 = vmatprep.subr.bf16.mxu0 0
    %3450 = vmatpush1.bf16.msra.mxu0 0
    %3451 = vmatprep.subr.bf16.mxu0 0
    %3452 = vmatpush1.bf16.msra.mxu0 0
    %3453 = vmatprep.subr.bf16.mxu0 0
    %3454 = vmatpush1.bf16.msra.mxu0 0
    %3455 = vmatprep.subr.bf16.mxu0 0
    %3456 = vmatpush1.bf16.msra.mxu0 0
    %3457 = vmatprep.subr.bf16.mxu0 0
    %3458 = vmatpush1.bf16.msra.mxu0 0
    %3459 = vmatprep.subr.bf16.mxu0 0
    %3460 = vmatpush1.bf16.msra.mxu0 0
    %3461 = vmatprep.mubr.bf16.mxu0 0
    %3462 = vmatmul.mubr.bf16.gmra.mrb[0].mxu0 %v3308
    %v3463 = vpop.f32.mrb[0].mxu0
    %v3464 = vadd.f32 0.0, %v3463
    %v3465 = vpop.f32.mrb[0].mxu0
    %v3466 = vpop.f32.mrb[0].mxu0
    %v3467 = vadd.f32 0.0, %v3466
    %v3468 = vpop.f32.mrb[0].mxu0
    %3469 = vmatprep.mubr.bf16.mxu0 0
    %3470 = vmatmul.mubr.bf16.gmra.mrb[0].mxu0 %v3309
    %v3471 = vpop.f32.mrb[0].mxu0
    %v3472 = vadd.f32 0.0, %v3471
    %v3473 = vpop.f32.mrb[0].mxu0
    %v3474 = vpop.f32.mrb[0].mxu0
    %v3475 = vadd.f32 0.0, %v3474
    %v3476 = vpop.f32.mrb[0].mxu0
    %3477 = vmatprep.mubr.bf16.mxu0 0
    %3478 = vmatmul.mubr.bf16.gmra.mrb[0].mxu0 %v3310
    %v3479 = vpop.f32.mrb[0].mxu0
    %v3480 = vadd.f32 0.0, %v3479
    %v3481 = vpop.f32.mrb[0].mxu0
    %v3482 = vpop.f32.mrb[0].mxu0
    %v3483 = vadd.f32 0.0, %v3482
    %v3484 = vpop.f32.mrb[0].mxu0
    %3485 = vmatprep.mubr.bf16.mxu0 0
    %3486 = vmatmul.mubr.bf16.gmra.mrb[0].mxu0 %v3311
    %v3487 = vpop.f32.mrb[0].mxu0
    %v3488 = vadd.f32 0.0, %v3487
    %v3489 = vpop.f32.mrb[0].mxu0
    %v3490 = vpop.f32.mrb[0].mxu0
    %v3491 = vadd.f32 0.0, %v3490
    %v3492 = vpop.f32.mrb[0].mxu0
    %3493 = vmatprep.mubr.bf16.mxu0 0
    %3494 = vmatmul.mubr.bf16.gmra.mrb[0].mxu0 %v3312
    %v3495 = vpop.f32.mrb[0].mxu0
    %v3496 = vadd.f32 0.0, %v3495
    %v3497 = vpop.f32.mrb[0].mxu0
    %v3498 = vpop.f32.mrb[0].mxu0
    %v3499 = vadd.f32 0.0, %v3498
    %v3500 = vpop.f32.mrb[0].mxu0
    %3501 = vmatprep.mubr.bf16.mxu0 0
    %3502 = vmatmul.mubr.bf16.gmra.mrb[0].mxu0 %v3313
    %v3503 = vpop.f32.mrb[0].mxu0
    %v3504 = vadd.f32 0.0, %v3503
    %v3505 = vpop.f32.mrb[0].mxu0
    %v3506 = vpop.f32.mrb[0].mxu0
    %v3507 = vadd.f32 0.0, %v3506
    %v3508 = vpop.f32.mrb[0].mxu0
    %3509 = vmatprep.mubr.bf16.mxu0 0
    %3510 = vmatmul.mubr.bf16.gmra.mrb[0].mxu0 %v3314
    %v3511 = vpop.f32.mrb[0].mxu0
    %v3512 = vadd.f32 0.0, %v3511
    %v3513 = vpop.f32.mrb[0].mxu0
    %v3514 = vpop.f32.mrb[0].mxu0
    %v3515 = vadd.f32 0.0, %v3514
    %v3516 = vpop.f32.mrb[0].mxu0
    %3517 = vmatprep.mubr.bf16.mxu0 0
    %3518 = vmatmul.mubr.bf16.gmra.mrb[0].mxu0 %v3315
    %v3519 = vpop.f32.mrb[0].mxu0
    %v3520 = vadd.f32 0.0, %v3519
    %v3521 = vpop.f32.mrb[0].mxu0
    %v3522 = vpop.f32.mrb[0].mxu0
    %v3523 = vadd.f32 0.0, %v3522
    %v3524 = vpop.f32.mrb[0].mxu0
    %3525 = vdwg.mxu0
    %3526 = vmatprep.subr.bf16.mxu0 0
    %3527 = vmatpush1.bf16.msra.mxu0 %v2028
    %3528 = vmatprep.subr.bf16.mxu0 0
    %3529 = vmatpush1.bf16.msra.mxu0 %v2029
    %3530 = vmatprep.subr.bf16.mxu0 0
    %3531 = vmatpush1.bf16.msra.mxu0 %v2030
    %3532 = vmatprep.subr.bf16.mxu0 0
    %3533 = vmatpush1.bf16.msra.mxu0 %v2031
    %3534 = vmatprep.subr.bf16.mxu0 0
    %3535 = vmatpush1.bf16.msra.mxu0 %v2032
    %3536 = vmatprep.subr.bf16.mxu0 0
    %3537 = vmatpush1.bf16.msra.mxu0 %v2033
    %3538 = vmatprep.subr.bf16.mxu0 0
    %3539 = vmatpush1.bf16.msra.mxu0 %v2034
    %3540 = vmatprep.subr.bf16.mxu0 0
    %3541 = vmatpush1.bf16.msra.mxu0 %v2035
    %3542 = vmatprep.subr.bf16.mxu0 0
    %3543 = vmatpush1.bf16.msra.mxu0 0
    %3544 = vmatprep.subr.bf16.mxu0 0
    %3545 = vmatpush1.bf16.msra.mxu0 0
    %3546 = vmatprep.subr.bf16.mxu0 0
    %3547 = vmatpush1.bf16.msra.mxu0 0
    %3548 = vmatprep.subr.bf16.mxu0 0
    %3549 = vmatpush1.bf16.msra.mxu0 0
    %3550 = vmatprep.subr.bf16.mxu0 0
    %3551 = vmatpush1.bf16.msra.mxu0 0
    %3552 = vmatprep.subr.bf16.mxu0 0
    %3553 = vmatpush1.bf16.msra.mxu0 0
    %3554 = vmatprep.subr.bf16.mxu0 0
    %3555 = vmatpush1.bf16.msra.mxu0 0
    %3556 = vmatprep.subr.bf16.mxu0 0
    %3557 = vmatpush1.bf16.msra.mxu0 0
    %3558 = vmatprep.mubr.bf16.mxu0 0
    %3559 = vmatmul.mubr.bf16.gmra.mrb[0].mxu0 %v3316
    %v3560 = vpop.f32.mrb[0].mxu0
    %v3561 = vadd.f32 0.0, %v3560
    %v3562 = vpop.f32.mrb[0].mxu0
    %v3563 = vpop.f32.mrb[0].mxu0
    %v3564 = vadd.f32 0.0, %v3563
    %v3565 = vpop.f32.mrb[0].mxu0
    %3566 = vmatprep.mubr.bf16.mxu0 0
    %3567 = vmatmul.mubr.bf16.gmra.mrb[0].mxu0 %v3317
    %v3568 = vpop.f32.mrb[0].mxu0
    %v3569 = vadd.f32 0.0, %v3568
    %v3570 = vpop.f32.mrb[0].mxu0
    %v3571 = vpop.f32.mrb[0].mxu0
    %v3572 = vadd.f32 0.0, %v3571
    %v3573 = vpop.f32.mrb[0].mxu0
    %3574 = vmatprep.mubr.bf16.mxu0 0
    %3575 = vmatmul.mubr.bf16.gmra.mrb[0].mxu0 %v3318
    %v3576 = vpop.f32.mrb[0].mxu0
    %v3577 = vadd.f32 0.0, %v3576
    %v3578 = vpop.f32.mrb[0].mxu0
    %v3579 = vpop.f32.mrb[0].mxu0
    %v3580 = vadd.f32 0.0, %v3579
    %v3581 = vpop.f32.mrb[0].mxu0
    %3582 = vmatprep.mubr.bf16.mxu0 0
    %3583 = vmatmul.mubr.bf16.gmra.mrb[0].mxu0 %v3319
    %v3584 = vpop.f32.mrb[0].mxu0
    %v3585 = vadd.f32 0.0, %v3584
    %v3586 = vpop.f32.mrb[0].mxu0
    %v3587 = vpop.f32.mrb[0].mxu0
    %v3588 = vadd.f32 0.0, %v3587
    %v3589 = vpop.f32.mrb[0].mxu0
    %3590 = vmatprep.mubr.bf16.mxu0 0
    %3591 = vmatmul.mubr.bf16.gmra.mrb[0].mxu0 %v3320
    %v3592 = vpop.f32.mrb[0].mxu0
    %v3593 = vadd.f32 0.0, %v3592
    %v3594 = vpop.f32.mrb[0].mxu0
    %v3595 = vpop.f32.mrb[0].mxu0
    %v3596 = vadd.f32 0.0, %v3595
    %v3597 = vpop.f32.mrb[0].mxu0
    %3598 = vmatprep.mubr.bf16.mxu0 0
    %3599 = vmatmul.mubr.bf16.gmra.mrb[0].mxu0 %v3321
    %v3600 = vpop.f32.mrb[0].mxu0
    %v3601 = vadd.f32 0.0, %v3600
    %v3602 = vpop.f32.mrb[0].mxu0
    %v3603 = vpop.f32.mrb[0].mxu0
    %v3604 = vadd.f32 0.0, %v3603
    %v3605 = vpop.f32.mrb[0].mxu0
    %3606 = vmatprep.mubr.bf16.mxu0 0
    %3607 = vmatmul.mubr.bf16.gmra.mrb[0].mxu0 %v3322
    %v3608 = vpop.f32.mrb[0].mxu0
    %v3609 = vadd.f32 0.0, %v3608
    %v3610 = vpop.f32.mrb[0].mxu0
    %v3611 = vpop.f32.mrb[0].mxu0
    %v3612 = vadd.f32 0.0, %v3611
    %v3613 = vpop.f32.mrb[0].mxu0
    %3614 = vmatprep.mubr.bf16.mxu0 0
    %3615 = vmatmul.mubr.bf16.gmra.mrb[0].mxu0 %v3323
    %v3616 = vpop.f32.mrb[0].mxu0
    %v3617 = vadd.f32 0.0, %v3616
    %v3618 = vpop.f32.mrb[0].mxu0
    %v3619 = vpop.f32.mrb[0].mxu0
    %v3620 = vadd.f32 0.0, %v3619
    %v3621 = vpop.f32.mrb[0].mxu0
    %3622 = vdwg.mxu0
    %3623 = vmatprep.subr.bf16.mxu0 0
    %3624 = vmatpush1.bf16.msra.mxu0 %v2036
    %3625 = vmatprep.subr.bf16.mxu0 0
    %3626 = vmatpush1.bf16.msra.mxu0 %v2037
    %3627 = vmatprep.subr.bf16.mxu0 0
    %3628 = vmatpush1.bf16.msra.mxu0 %v2038
    %3629 = vmatprep.subr.bf16.mxu0 0
    %3630 = vmatpush1.bf16.msra.mxu0 %v2039
    %3631 = vmatprep.subr.bf16.mxu0 0
    %3632 = vmatpush1.bf16.msra.mxu0 %v2040
    %3633 = vmatprep.subr.bf16.mxu0 0
    %3634 = vmatpush1.bf16.msra.mxu0 %v2041
    %3635 = vmatprep.subr.bf16.mxu0 0
    %3636 = vmatpush1.bf16.msra.mxu0 %v2042
    %3637 = vmatprep.subr.bf16.mxu0 0
    %3638 = vmatpush1.bf16.msra.mxu0 %v2043
    %3639 = vmatprep.subr.bf16.mxu0 0
    %3640 = vmatpush1.bf16.msra.mxu0 0
    %3641 = vmatprep.subr.bf16.mxu0 0
    %3642 = vmatpush1.bf16.msra.mxu0 0
    %3643 = vmatprep.subr.bf16.mxu0 0
    %3644 = vmatpush1.bf16.msra.mxu0 0
    %3645 = vmatprep.subr.bf16.mxu0 0
    %3646 = vmatpush1.bf16.msra.mxu0 0
    %3647 = vmatprep.subr.bf16.mxu0 0
    %3648 = vmatpush1.bf16.msra.mxu0 0
    %3649 = vmatprep.subr.bf16.mxu0 0
    %3650 = vmatpush1.bf16.msra.mxu0 0
    %3651 = vmatprep.subr.bf16.mxu0 0
    %3652 = vmatpush1.bf16.msra.mxu0 0
    %3653 = vmatprep.subr.bf16.mxu0 0
    %3654 = vmatpush1.bf16.msra.mxu0 0
    %3655 = vmatprep.mubr.bf16.mxu0 0
    %3656 = vmatmul.mubr.bf16.gmra.mrb[0].mxu0 %v3324
    %v3657 = vpop.f32.mrb[0].mxu0
    %v3658 = vadd.f32 0.0, %v3657
    %v3659 = vpop.f32.mrb[0].mxu0
    %v3660 = vpop.f32.mrb[0].mxu0
    %v3661 = vadd.f32 0.0, %v3660
    %v3662 = vpop.f32.mrb[0].mxu0
    %3663 = vmatprep.mubr.bf16.mxu0 0
    %3664 = vmatmul.mubr.bf16.gmra.mrb[0].mxu0 %v3325
    %v3665 = vpop.f32.mrb[0].mxu0
    %v3666 = vadd.f32 0.0, %v3665
    %v3667 = vpop.f32.mrb[0].mxu0
    %v3668 = vpop.f32.mrb[0].mxu0
    %v3669 = vadd.f32 0.0, %v3668
    %v3670 = vpop.f32.mrb[0].mxu0
    %3671 = vmatprep.mubr.bf16.mxu0 0
    %3672 = vmatmul.mubr.bf16.gmra.mrb[0].mxu0 %v3326
    %v3673 = vpop.f32.mrb[0].mxu0
    %v3674 = vadd.f32 0.0, %v3673
    %v3675 = vpop.f32.mrb[0].mxu0
    %v3676 = vpop.f32.mrb[0].mxu0
    %v3677 = vadd.f32 0.0, %v3676
    %v3678 = vpop.f32.mrb[0].mxu0
    %3679 = vmatprep.mubr.bf16.mxu0 0
    %3680 = vmatmul.mubr.bf16.gmra.mrb[0].mxu0 %v3327
    %v3681 = vpop.f32.mrb[0].mxu0
    %v3682 = vadd.f32 0.0, %v3681
    %v3683 = vpop.f32.mrb[0].mxu0
    %v3684 = vpop.f32.mrb[0].mxu0
    %v3685 = vadd.f32 0.0, %v3684
    %v3686 = vpop.f32.mrb[0].mxu0
    %3687 = vmatprep.mubr.bf16.mxu0 0
    %3688 = vmatmul.mubr.bf16.gmra.mrb[0].mxu0 %v3328
    %v3689 = vpop.f32.mrb[0].mxu0
    %v3690 = vadd.f32 0.0, %v3689
    %v3691 = vpop.f32.mrb[0].mxu0
    %v3692 = vpop.f32.mrb[0].mxu0
    %v3693 = vadd.f32 0.0, %v3692
    %v3694 = vpop.f32.mrb[0].mxu0
    %3695 = vmatprep.mubr.bf16.mxu0 0
    %3696 = vmatmul.mubr.bf16.gmra.mrb[0].mxu0 %v3329
    %v3697 = vpop.f32.mrb[0].mxu0
    %v3698 = vadd.f32 0.0, %v3697
    %v3699 = vpop.f32.mrb[0].mxu0
    %v3700 = vpop.f32.mrb[0].mxu0
    %v3701 = vadd.f32 0.0, %v3700
    %v3702 = vpop.f32.mrb[0].mxu0
    %3703 = vmatprep.mubr.bf16.mxu0 0
    %3704 = vmatmul.mubr.bf16.gmra.mrb[0].mxu0 %v3330
    %v3705 = vpop.f32.mrb[0].mxu0
    %v3706 = vadd.f32 0.0, %v3705
    %v3707 = vpop.f32.mrb[0].mxu0
    %v3708 = vpop.f32.mrb[0].mxu0
    %v3709 = vadd.f32 0.0, %v3708
    %v3710 = vpop.f32.mrb[0].mxu0
    %3711 = vmatprep.mubr.bf16.mxu0 0
    %3712 = vmatmul.mubr.bf16.gmra.mrb[0].mxu0 %v3331
    %v3713 = vpop.f32.mrb[0].mxu0
    %v3714 = vadd.f32 0.0, %v3713
    %v3715 = vpop.f32.mrb[0].mxu0
    %v3716 = vpop.f32.mrb[0].mxu0
    %v3717 = vadd.f32 0.0, %v3716
    %v3718 = vpop.f32.mrb[0].mxu0
    %3719 = vdwg.mxu0
    %v3720 = vrcp.pop %v3173
    %v3721 = vrcp.pop %v3175
    %v3722 = vrcp.pop %v3177
    %v3723 = vrcp.pop %v3179
    %v3724 = vrcp.pop %v3181
    %v3725 = vrcp.pop %v3183
    %v3726 = vrcp.pop %v3185
    %v3727 = vrcp.pop %v3187
    %v3728 = vrcp.pop %v3189
    %v3729 = vrcp.pop %v3191
    %v3730 = vrcp.pop %v3193
    %v3731 = vrcp.pop %v3195
    %v3732 = vrcp.pop %v3197
    %v3733 = vrcp.pop %v3199
    %v3734 = vrcp.pop %v3201
    %v3735 = vrcp.pop %v3203
    %v3736 = vrcp.pop %v3205
    %v3737 = vrcp.pop %v3207
    %v3738 = vrcp.pop %v3209
    %v3739 = vrcp.pop %v3211
    %v3740 = vrcp.pop %v3213
    %v3741 = vrcp.pop %v3215
    %v3742 = vrcp.pop %v3217
    %v3743 = vrcp.pop %v3219
    %v3744 = vrcp.pop %v3221
    %v3745 = vrcp.pop %v3223
    %v3746 = vrcp.pop %v3225
    %v3747 = vrcp.pop %v3227
    %v3748 = vrcp.pop %v3229
    %v3749 = vrcp.pop %v3231
    %v3750 = vrcp.pop %v3233
    %v3751 = vrcp.pop %v3235
    %v3752 = vrcp.pop %v3237
    %v3753 = vrcp.pop %v3239
    %v3754 = vrcp.pop %v3241
    %v3755 = vrcp.pop %v3243
    %v3756 = vrcp.pop %v3245
    %v3757 = vrcp.pop %v3247
    %v3758 = vrcp.pop %v3249
    %v3759 = vrcp.pop %v3251
    %v3760 = vrcp.pop %v3253
    %v3761 = vrcp.pop %v3255
    %v3762 = vrcp.pop %v3257
    %v3763 = vrcp.pop %v3259
    %v3764 = vrcp.pop %v3261
    %v3765 = vrcp.pop %v3263
    %v3766 = vrcp.pop %v3265
    %v3767 = vrcp.pop %v3267
    %v3768 = vrcp.pop %v3269
    %v3769 = vrcp.pop %v3271
    %v3770 = vrcp.pop %v3273
    %v3771 = vrcp.pop %v3275
    %v3772 = vrcp.pop %v3277
    %v3773 = vrcp.pop %v3279
    %v3774 = vrcp.pop %v3281
    %v3775 = vrcp.pop %v3283
    %v3776 = vrcp.pop %v3285
    %v3777 = vrcp.pop %v3287
    %v3778 = vrcp.pop %v3289
    %v3779 = vrcp.pop %v3291
    %v3780 = vrcp.pop %v3293
    %v3781 = vrcp.pop %v3295
    %v3782 = vrcp.pop %v3297
    %v3783 = vrcp.pop %v3299
    %v3784 = vmul.f32 %v3367, %v3720
    %v3785 = vmul.f32 %v3370, %v3721
    %v3786 = vmul.f32 %v3375, %v3722
    %v3787 = vmul.f32 %v3378, %v3723
    %v3788 = vmul.f32 %v3383, %v3724
    %v3789 = vmul.f32 %v3386, %v3725
    %v3790 = vmul.f32 %v3391, %v3726
    %v3791 = vmul.f32 %v3394, %v3727
    %v3792 = vmul.f32 %v3399, %v3728
    %v3793 = vmul.f32 %v3402, %v3729
    %v3794 = vmul.f32 %v3407, %v3730
    %v3795 = vmul.f32 %v3410, %v3731
    %v3796 = vmul.f32 %v3415, %v3732
    %v3797 = vmul.f32 %v3418, %v3733
    %v3798 = vmul.f32 %v3423, %v3734
    %v3799 = vmul.f32 %v3426, %v3735
    %v3800 = vmul.f32 %v3464, %v3736
    %v3801 = vmul.f32 %v3467, %v3737
    %v3802 = vmul.f32 %v3472, %v3738
    %v3803 = vmul.f32 %v3475, %v3739
    %v3804 = vmul.f32 %v3480, %v3740
    %v3805 = vmul.f32 %v3483, %v3741
    %v3806 = vmul.f32 %v3488, %v3742
    %v3807 = vmul.f32 %v3491, %v3743
    %v3808 = vmul.f32 %v3496, %v3744
    %v3809 = vmul.f32 %v3499, %v3745
    %v3810 = vmul.f32 %v3504, %v3746
    %v3811 = vmul.f32 %v3507, %v3747
    %v3812 = vmul.f32 %v3512, %v3748
    %v3813 = vmul.f32 %v3515, %v3749
    %v3814 = vmul.f32 %v3520, %v3750
    %v3815 = vmul.f32 %v3523, %v3751
    %v3816 = vmul.f32 %v3561, %v3752
    %v3817 = vmul.f32 %v3564, %v3753
    %v3818 = vmul.f32 %v3569, %v3754
    %v3819 = vmul.f32 %v3572, %v3755
    %v3820 = vmul.f32 %v3577, %v3756
    %v3821 = vmul.f32 %v3580, %v3757
    %v3822 = vmul.f32 %v3585, %v3758
    %v3823 = vmul.f32 %v3588, %v3759
    %v3824 = vmul.f32 %v3593, %v3760
    %v3825 = vmul.f32 %v3596, %v3761
    %v3826 = vmul.f32 %v3601, %v3762
    %v3827 = vmul.f32 %v3604, %v3763
    %v3828 = vmul.f32 %v3609, %v3764
    %v3829 = vmul.f32 %v3612, %v3765
    %v3830 = vmul.f32 %v3617, %v3766
    %v3831 = vmul.f32 %v3620, %v3767
    %v3832 = vmul.f32 %v3658, %v3768
    %v3833 = vmul.f32 %v3661, %v3769
    %v3834 = vmul.f32 %v3666, %v3770
    %v3835 = vmul.f32 %v3669, %v3771
    %v3836 = vmul.f32 %v3674, %v3772
    %v3837 = vmul.f32 %v3677, %v3773
    %v3838 = vmul.f32 %v3682, %v3774
    %v3839 = vmul.f32 %v3685, %v3775
    %v3840 = vmul.f32 %v3690, %v3776
    %v3841 = vmul.f32 %v3693, %v3777
    %v3842 = vmul.f32 %v3698, %v3778
    %v3843 = vmul.f32 %v3701, %v3779
    %v3844 = vmul.f32 %v3706, %v3780
    %v3845 = vmul.f32 %v3709, %v3781
    %v3846 = vmul.f32 %v3714, %v3782
    %v3847 = vmul.f32 %v3717, %v3783
    %3848 = vst.msk [vmem:[%s2] sm:$0xff] %vm2068, %v3784
    %3849 = vst.msk [vmem:[%s2 + $0x8] sm:$0xff] %vm2068, %v3785
    %3850 = vst.msk [vmem:[%s2 + $0x10] sm:$0xff] %vm2068, %v3786
    %3851 = vst.msk [vmem:[%s2 + $0x18] sm:$0xff] %vm2068, %v3787
    %3852 = vst.msk [vmem:[%s2 + $0x20] sm:$0xff] %vm2068, %v3788
    %3853 = vst.msk [vmem:[%s2 + $0x28] sm:$0xff] %vm2068, %v3789
    %3854 = vst.msk [vmem:[%s2 + $0x30] sm:$0xff] %vm2068, %v3790
    %3855 = vst.msk [vmem:[%s2 + $0x38] sm:$0xff] %vm2068, %v3791
    %3856 = vst.msk [vmem:[%s2 + $0x40] sm:$0xff] %vm2068, %v3792
    %3857 = vst.msk [vmem:[%s2 + $0x48] sm:$0xff] %vm2068, %v3793
    %3858 = vst.msk [vmem:[%s2 + $0x50] sm:$0xff] %vm2068, %v3794
    %3859 = vst.msk [vmem:[%s2 + $0x58] sm:$0xff] %vm2068, %v3795
    %3860 = vst.msk [vmem:[%s2 + $0x60] sm:$0xff] %vm2068, %v3796
    %3861 = vst.msk [vmem:[%s2 + $0x68] sm:$0xff] %vm2068, %v3797
    %3862 = vst.msk [vmem:[%s2 + $0x70] sm:$0xff] %vm2068, %v3798
    %3863 = vst.msk [vmem:[%s2 + $0x78] sm:$0xff] %vm2068, %v3799
    %3864 = vst.msk [vmem:[%s2 + $0x80] sm:$0xff] %vm2068, %v3800
    %3865 = vst.msk [vmem:[%s2 + $0x88] sm:$0xff] %vm2068, %v3801
    %3866 = vst.msk [vmem:[%s2 + $0x90] sm:$0xff] %vm2068, %v3802
    %3867 = vst.msk [vmem:[%s2 + $0x98] sm:$0xff] %vm2068, %v3803
    %3868 = vst.msk [vmem:[%s2 + $0xa0] sm:$0xff] %vm2068, %v3804
    %3869 = vst.msk [vmem:[%s2 + $0xa8] sm:$0xff] %vm2068, %v3805
    %3870 = vst.msk [vmem:[%s2 + $0xb0] sm:$0xff] %vm2068, %v3806
    %3871 = vst.msk [vmem:[%s2 + $0xb8] sm:$0xff] %vm2068, %v3807
    %3872 = vst.msk [vmem:[%s2 + $0xc0] sm:$0xff] %vm2068, %v3808
    %3873 = vst.msk [vmem:[%s2 + $0xc8] sm:$0xff] %vm2068, %v3809
    %3874 = vst.msk [vmem:[%s2 + $0xd0] sm:$0xff] %vm2068, %v3810
    %3875 = vst.msk [vmem:[%s2 + $0xd8] sm:$0xff] %vm2068, %v3811
    %3876 = vst.msk [vmem:[%s2 + $0xe0] sm:$0xff] %vm2068, %v3812
    %3877 = vst.msk [vmem:[%s2 + $0xe8] sm:$0xff] %vm2068, %v3813
    %3878 = vst.msk [vmem:[%s2 + $0xf0] sm:$0xff] %vm2068, %v3814
    %3879 = vst.msk [vmem:[%s2 + $0xf8] sm:$0xff] %vm2068, %v3815
    %3880 = vst.msk [vmem:[%s2 + $0x100] sm:$0xff] %vm2068, %v3816
    %3881 = vst.msk [vmem:[%s2 + $0x108] sm:$0xff] %vm2068, %v3817
    %3882 = vst.msk [vmem:[%s2 + $0x110] sm:$0xff] %vm2068, %v3818
    %3883 = vst.msk [vmem:[%s2 + $0x118] sm:$0xff] %vm2068, %v3819
    %3884 = vst.msk [vmem:[%s2 + $0x120] sm:$0xff] %vm2068, %v3820
    %3885 = vst.msk [vmem:[%s2 + $0x128] sm:$0xff] %vm2068, %v3821
    %3886 = vst.msk [vmem:[%s2 + $0x130] sm:$0xff] %vm2068, %v3822
    %3887 = vst.msk [vmem:[%s2 + $0x138] sm:$0xff] %vm2068, %v3823
    %3888 = vst.msk [vmem:[%s2 + $0x140] sm:$0xff] %vm2068, %v3824
    %3889 = vst.msk [vmem:[%s2 + $0x148] sm:$0xff] %vm2068, %v3825
    %3890 = vst.msk [vmem:[%s2 + $0x150] sm:$0xff] %vm2068, %v3826
    %3891 = vst.msk [vmem:[%s2 + $0x158] sm:$0xff] %vm2068, %v3827
    %3892 = vst.msk [vmem:[%s2 + $0x160] sm:$0xff] %vm2068, %v3828
    %3893 = vst.msk [vmem:[%s2 + $0x168] sm:$0xff] %vm2068, %v3829
    %3894 = vst.msk [vmem:[%s2 + $0x170] sm:$0xff] %vm2068, %v3830
    %3895 = vst.msk [vmem:[%s2 + $0x178] sm:$0xff] %vm2068, %v3831
    %3896 = vst.msk [vmem:[%s2 + $0x180] sm:$0xff] %vm2068, %v3832
    %3897 = vst.msk [vmem:[%s2 + $0x188] sm:$0xff] %vm2068, %v3833
    %3898 = vst.msk [vmem:[%s2 + $0x190] sm:$0xff] %vm2068, %v3834
    %3899 = vst.msk [vmem:[%s2 + $0x198] sm:$0xff] %vm2068, %v3835
    %3900 = vst.msk [vmem:[%s2 + $0x1a0] sm:$0xff] %vm2068, %v3836
    %3901 = vst.msk [vmem:[%s2 + $0x1a8] sm:$0xff] %vm2068, %v3837
    %3902 = vst.msk [vmem:[%s2 + $0x1b0] sm:$0xff] %vm2068, %v3838
    %3903 = vst.msk [vmem:[%s2 + $0x1b8] sm:$0xff] %vm2068, %v3839
    %3904 = vst.msk [vmem:[%s2 + $0x1c0] sm:$0xff] %vm2068, %v3840
    %3905 = vst.msk [vmem:[%s2 + $0x1c8] sm:$0xff] %vm2068, %v3841
    %3906 = vst.msk [vmem:[%s2 + $0x1d0] sm:$0xff] %vm2068, %v3842
    %3907 = vst.msk [vmem:[%s2 + $0x1d8] sm:$0xff] %vm2068, %v3843
    %3908 = vst.msk [vmem:[%s2 + $0x1e0] sm:$0xff] %vm2068, %v3844
    %3909 = vst.msk [vmem:[%s2 + $0x1e8] sm:$0xff] %vm2068, %v3845
    %3910 = vst.msk [vmem:[%s2 + $0x1f0] sm:$0xff] %vm2068, %v3846
    %3911 = vst.msk [vmem:[%s2 + $0x1f8] sm:$0xff] %vm2068, %v3847
    // Predicated region
    $region14: #{tpu_custom_call.1} parent=1 // pred_check
      _
    $region15: #{tpu_custom_call.1} parent=1 // pred_check_branch
      %3913 = sbr.rel (0) target = $region17
    $region16: #{tpu_custom_call.1} parent=1 // pred_region
      _
    $region17: #{tpu_custom_call.1} parent=1 // pred_fallthru
      _
    // Predicated region
    $region18: #{tpu_custom_call.1} parent=1 // pred_check
      _
    $region19: #{tpu_custom_call.1} parent=1 // pred_check_branch
      %3915 = sbr.rel (0) target = $region21
    $region20: #{tpu_custom_call.1} parent=1 // pred_region
      _
    $region21: #{tpu_custom_call.1} parent=1 // pred_fallthru
      _
    %3916 = vsyncpa [#allocation3], 1

</llo_original>
